<compile_context>
chip_gen: v5e
topology: v5e:2x2
jax: 0.10.0
libtpu: 0.0.40
codegen_flags: <defaults>
</compile_context>

<pallas_src>
import functools

import numpy as np
import jax
import jax.numpy as jnp
from jax.experimental import pallas as pl
from jax.experimental.pallas import tpu as pltpu


def _stage(x_val, w_ref, b_ref, pad_ref, H, W, Cin, Cout, TB, fused):
    """Conv3x3(pad=1) + ReLU + MaxPool2d(2) on a batched (H*TB, W*Cin) slab.

    x_val:   (H*TB, W*Cin) value, row order y*TB + t, lane order w*Cin + ci
    w_ref:   fused: (3*W*Cin, W*Cout) bf16;  unfused: (3, W*Cin, W*Cout) bf16
    b_ref:   (1, W*Cout) f32 tiled bias
    pad_ref: ((H+2)*TB, W*Cin) bf16 scratch (H zero padding, batched)
    returns: ((H//2)*TB, (W//2)*Cout) f32, row order ho*TB + t, lane order wo*Cout + co
    """
    M = H * TB
    WCin = W * Cin
    L = W * Cout
    Ho, Wo = H // 2, W // 2

    # H zero padding: only the two TB-row boundary blocks are zeroed; the middle
    # rows are fully overwritten every grid step, so no stale data can leak in.
    pad_ref[0:TB, :] = jnp.zeros((TB, WCin), jnp.bfloat16)
    pad_ref[(H + 1) * TB:(H + 2) * TB, :] = jnp.zeros((TB, WCin), jnp.bfloat16)
    pad_ref[TB:(H + 1) * TB, :] = x_val.astype(jnp.bfloat16)   # single bf16 cast/store

    if fused:
        # One MXU dot with K = 3*W*Cin (dy stacked along K, lane-tile aligned pieces).
        lhs = jnp.concatenate(
            [pad_ref[dy * TB:dy * TB + M, :] for dy in range(3)], axis=-1)
        acc = jnp.dot(lhs, w_ref[...], preferred_element_type=jnp.float32)
    else:
        # 3 lane-dense dots; accumulator initialized from the dy=0 dot (no zeros add).
        acc = jnp.dot(pad_ref[0:M, :], w_ref[0],
                      preferred_element_type=jnp.float32)
        for dy in (1, 2):
            acc = acc + jnp.dot(pad_ref[dy * TB:dy * TB + M, :], w_ref[dy],
                                preferred_element_type=jnp.float32)

    # Bias + ReLU in f32 (v5e has no bf16 VPU).
    r = jnp.maximum(acc + b_ref[...], 0.0)                     # (M, L)

    # 2x2 max pool.
    # Rows: with (y, t) ordering, the two rows of a pool window are adjacent TB-row
    # blocks -> split the leading dim (tile aligned: 2*TB % 8 == 0) and take the max.
    r = r.reshape(Ho, 2 * TB, L)
    hp = jnp.maximum(r[:, :TB, :], r[:, TB:, :])                # (Ho, TB, L)
    # Columns: the (parity, wo, co) permutation folded into the banded weights makes
    # the width pool a max of the two lane halves (both halves 128-lane aligned).
    vp = jnp.maximum(hp[:, :, :Wo * Cout], hp[:, :, Wo * Cout:])  # (Ho, TB, Wo*Cout)
    return vp.reshape(Ho * TB, Wo * Cout)


def _alexnet_kernel(x_ref, w1_ref, b1_ref, w2_ref, b2_ref, w3_ref, b3_ref,
                    out_ref, pad1, pad2, pad3, *, dims, tb):
    (H1, W1, C0, C1, f1), (H2, W2, _, C2, f2), (H3, W3, _, C3, f3) = dims
    a = _stage(x_ref[0], w1_ref, b1_ref, pad1, H1, W1, C0, C1, tb, f1)
    a = _stage(a, w2_ref, b2_ref, pad2, H2, W2, C1, C2, tb, f2)
    a = _stage(a, w3_ref, b3_ref, pad3, H3, W3, C2, C3, tb, f3)
    out_ref[0] = a.astype(out_ref.dtype)


def _banded_weights(w_oihw, W, fused):
    """(Cout, Cin, 3, 3) conv weights -> banded matrices (bf16).

    Row index    = w_in * Cin + ci  (per dy block).
    Column index = ((w_out % 2) * (W//2) + w_out // 2) * Cout + co  (pool-friendly order).
    The conv's zero padding along W is encoded by the absent bands at the borders.
    Returns (3, W*Cin, W*Cout) or, if `fused`, (3*W*Cin, W*Cout) with dy stacked on K.
    """
    w = np.asarray(w_oihw, np.float32)            # host-side prep (tiny)
    Cout, Cin = w.shape[0], w.shape[1]
    Wo = W // 2
    m = np.zeros((3, W * Cin, W * Cout), np.float32)
    for dy in range(3):
        for w_out in range(W):
            col = ((w_out % 2) * Wo + w_out // 2) * Cout
            for dx in range(3):
                w_in = w_out + dx - 1
                if 0 <= w_in < W:
                    m[dy, w_in * Cin:(w_in + 1) * Cin, col:col + Cout] = w[:, :, dy, dx].T
    if fused:
        m = m.reshape(3 * W * Cin, W * Cout)
    return jnp.asarray(m, jnp.bfloat16)


def _pick_tb(N, H):
    """Samples per grid step: aim for ~256 MXU rows in the mid stage (H/2 rows/sample),
    multiple of 16 (bf16 sublane-tile aligned slab offsets), capped for tiny batches."""
    tb = -(-512 // H)
    tb = max(16, min(64, ((tb + 15) // 16) * 16))
    n_pad = ((N + 15) // 16) * 16
    return min(tb, n_pad)


def _const_spec(shape):
    if len(shape) == 3:
        return pl.BlockSpec(shape, lambda g: (0, 0, 0))
    return pl.BlockSpec(shape, lambda g: (0, 0))


def alexnet_forward(params, x_nchw, tb=None):
    """Forward pass matching the PyTorch module (input NCHW, output (N, C*H*W))."""
    (w1, b1), (w2, b2), (w3, b3) = params
    N, Cin, H, W = x_nchw.shape
    assert H % 8 == 0 and W % 8 == 0, "three 2x2 pools require H, W divisible by 8"

    C1, C2, C3 = w1.shape[0], w2.shape[0], w3.shape[0]
    H1, W1 = H, W
    H2, W2 = H1 // 2, W1 // 2
    H3, W3 = H2 // 2, W2 // 2
    Ho, Wo = H3 // 2, W3 // 2

    TB = _pick_tb(N, H) if tb is None else tb
    G = -(-N // TB)                      # grid steps; stays >= 2 for large N (v7x 2 TCs)
    Np = G * TB

    # dy-fusion (single stacked-K dot) only where W*Cin is 128-lane aligned.
    f1 = (W1 * Cin) % 128 == 0
    f2 = (W2 * C1) % 128 == 0
    f3 = (W3 * C2) % 128 == 0
    dims = ((H1, W1, Cin, C1, f1), (H2, W2, C1, C2, f2), (H3, W3, C2, C3, f3))

    # NCHW -> bf16 -> (G, H*TB, W*Cin) blocks with row order (y, t) inside each block.
    x = x_nchw.astype(jnp.bfloat16)
    if Np != N:
        x = jnp.pad(x, ((0, Np - N), (0, 0), (0, 0), (0, 0)))
    x2d = jnp.transpose(x, (0, 2, 3, 1)).reshape(Np, H, W * Cin)
    x2d = (x2d.reshape(G, TB, H, W * Cin)
               .transpose(0, 2, 1, 3)
               .reshape(G, H * TB, W * Cin))

    wm1 = _banded_weights(w1, W1, f1)
    wm2 = _banded_weights(w2, W2, f2)
    wm3 = _banded_weights(w3, W3, f3)
    bt1 = jnp.tile(b1, W1).reshape(1, W1 * C1).astype(jnp.float32)
    bt2 = jnp.tile(b2, W2).reshape(1, W2 * C2).astype(jnp.float32)
    bt3 = jnp.tile(b3, W3).reshape(1, W3 * C3).astype(jnp.float32)

    kernel = functools.partial(_alexnet_kernel, dims=dims, tb=TB)
    out = pl.pallas_call(
        kernel,
        out_shape=jax.ShapeDtypeStruct((G, Ho * TB, Wo * C3), jnp.float32),
        grid=(G,),
        in_specs=[
            pl.BlockSpec((1, H1 * TB, W1 * Cin), lambda g: (g, 0, 0)),
            _const_spec(wm1.shape), _const_spec(bt1.shape),
            _const_spec(wm2.shape), _const_spec(bt2.shape),
            _const_spec(wm3.shape), _const_spec(bt3.shape),
        ],
        out_specs=pl.BlockSpec((1, Ho * TB, Wo * C3), lambda g: (g, 0, 0)),
        scratch_shapes=[
            pltpu.VMEM(((H1 + 2) * TB, W1 * Cin), jnp.bfloat16),   # pad1
            pltpu.VMEM(((H2 + 2) * TB, W2 * C1), jnp.bfloat16),    # pad2
            pltpu.VMEM(((H3 + 2) * TB, W3 * C2), jnp.bfloat16),    # pad3
        ],
        compiler_params=pltpu.CompilerParams(dimension_semantics=("parallel",)),
    )(x2d, wm1, bt1, wm2, bt2, wm3, bt3)

    # Kernel output rows are (ho, t), lanes (wo, co); torch's Flatten is on NCHW.
    out = out.reshape(G, Ho, TB, Wo, C3).transpose(0, 2, 4, 1, 3)
    return out.reshape(Np, C3 * Ho * Wo)[:N]


def _reference_forward(params, x_nchw):
    """Pure-JAX reference (no Pallas) for a correctness check."""
    x = x_nchw
    for w, b in params:
        x = jax.lax.conv_general_dilated(
            x, w, window_strides=(1, 1), padding=((1, 1), (1, 1)),
            dimension_numbers=("NCHW", "OIHW", "NCHW"))
        x = jax.nn.relu(x + b[None, :, None, None])
        x = jax.lax.reduce_window(x, -jnp.inf, jax.lax.max,
                                  (1, 1, 2, 2), (1, 1, 2, 2), "VALID")
    return x.reshape(x.shape[0], -1)


def init_params(key, input_channels):
    """Deterministic synthetic parameters (shapes from the module's __init__)."""
    shapes = [(32, input_channels, 3, 3), (32, 32, 3, 3), (64, 32, 3, 3)]
    params = []
    for i, s in enumerate(shapes):
        kw, kb = jax.random.split(jax.random.fold_in(key, i))
        w = 0.1 * jax.random.normal(kw, s, jnp.float32)
        b = 0.01 * jax.random.normal(kb, (s[0],), jnp.float32)
        params.append((w, b))
    return params


if __name__ == "__main__":
    key = jax.random.PRNGKey(0)
    N, Cin, H, W = 2, 4, 16, 16
    x = jax.random.normal(jax.random.fold_in(key, 100), (N, Cin, H, W), jnp.float32)
    params = init_params(key, Cin)

    out = jax.block_until_ready(alexnet_forward(params, x))

    expected_shape = (N, 64 * (H // 8) * (W // 8))
    assert out.shape == expected_shape, (out.shape, expected_shape)

    ref = jax.block_until_ready(_reference_forward(params, x))
    assert jnp.allclose(out, ref, atol=5e-2, rtol=5e-2), \
        float(jnp.max(jnp.abs(out - ref)))

    print("KERNEL_OK")
</pallas_src>

<mosaic_0001>
module attributes {stable_mosaic.version = 11 : i64} {
  func.func @_alexnet_kernel(%arg0: i32, %arg1: memref<1x256x64xbf16, #tpu.memory_space<vmem>>, %arg2: memref<3x64x512xbf16, #tpu.memory_space<vmem>>, %arg3: memref<1x512xf32, #tpu.memory_space<vmem>>, %arg4: memref<768x256xbf16, #tpu.memory_space<vmem>>, %arg5: memref<1x256xf32, #tpu.memory_space<vmem>>, %arg6: memref<384x256xbf16, #tpu.memory_space<vmem>>, %arg7: memref<1x256xf32, #tpu.memory_space<vmem>>, %arg8: memref<1x32x128xf32, #tpu.memory_space<vmem>>, %arg9: memref<288x64xbf16, #tpu.memory_space<vmem>>, %arg10: memref<160x256xbf16, #tpu.memory_space<vmem>>, %arg11: memref<96x128xbf16, #tpu.memory_space<vmem>>) attributes {dimension_semantics = [#tpu.dimension_semantics<parallel>], iteration_bounds = array<i64: 1>, scalar_prefetch = 0 : i64, scratch_operands = 3 : i64, tpu.core_type = #tpu.core_type<tc>, window_params = [{transform_indices = @transform_0, window_bounds = array<i64: 1, 256, 64>}, {pipeline_mode = #tpu.pipeline_mode<synchronous>, transform_indices = @transform_1, window_bounds = array<i64: 3, 64, 512>}, {pipeline_mode = #tpu.pipeline_mode<synchronous>, transform_indices = @transform_2, window_bounds = array<i64: 1, 512>}, {pipeline_mode = #tpu.pipeline_mode<synchronous>, transform_indices = @transform_3, window_bounds = array<i64: 768, 256>}, {pipeline_mode = #tpu.pipeline_mode<synchronous>, transform_indices = @transform_4, window_bounds = array<i64: 1, 256>}, {pipeline_mode = #tpu.pipeline_mode<synchronous>, transform_indices = @transform_5, window_bounds = array<i64: 384, 256>}, {pipeline_mode = #tpu.pipeline_mode<synchronous>, transform_indices = @transform_6, window_bounds = array<i64: 1, 256>}, {transform_indices = @transform_7, window_bounds = array<i64: 1, 32, 128>}]} {
    %c0 = arith.constant 0 : index
    %c0_0 = arith.constant 0 : index
    %c0_1 = arith.constant 0 : index
    %0 = vector.load %arg1[%c0, %c0_0, %c0_1] : memref<1x256x64xbf16, #tpu.memory_space<vmem>>, vector<1x256x64xbf16>
    %1 = vector.shape_cast %0 : vector<1x256x64xbf16> to vector<256x64xbf16>
    %cst = arith.constant 0.000000e+00 : bf16
    %2 = vector.broadcast %cst : bf16 to vector<16x64xbf16>
    %c0_2 = arith.constant 0 : index
    %c0_3 = arith.constant 0 : index
    %3 = vector.load %arg9[%c0_2, %c0_3] : memref<288x64xbf16, #tpu.memory_space<vmem>>, vector<16x64xbf16>
    tpu.vector_store %arg9[%c0_2, %c0_3], %2 {strides = array<i32>} : memref<288x64xbf16, #tpu.memory_space<vmem>>, vector<16x64xbf16>,
    %cst_4 = arith.constant 0.000000e+00 : bf16
    %4 = vector.broadcast %cst_4 : bf16 to vector<16x64xbf16>
    %c272 = arith.constant 272 : index
    %c0_5 = arith.constant 0 : index
    %5 = vector.load %arg9[%c272, %c0_5] : memref<288x64xbf16, #tpu.memory_space<vmem>>, vector<16x64xbf16>
    tpu.vector_store %arg9[%c272, %c0_5], %4 {strides = array<i32>} : memref<288x64xbf16, #tpu.memory_space<vmem>>, vector<16x64xbf16>,
    %c16 = arith.constant 16 : index
    %c0_6 = arith.constant 0 : index
    %6 = vector.load %arg9[%c16, %c0_6] : memref<288x64xbf16, #tpu.memory_space<vmem>>, vector<256x64xbf16>
    tpu.vector_store %arg9[%c16, %c0_6], %1 {strides = array<i32>} : memref<288x64xbf16, #tpu.memory_space<vmem>>, vector<256x64xbf16>,
    %c0_7 = arith.constant 0 : index
    %c0_8 = arith.constant 0 : index
    %7 = vector.load %arg9[%c0_7, %c0_8] : memref<288x64xbf16, #tpu.memory_space<vmem>>, vector<256x64xbf16>
    %c0_9 = arith.constant 0 : index
    %c0_10 = arith.constant 0 : index
    %c0_11 = arith.constant 0 : index
    %8 = vector.load %arg2[%c0_9, %c0_10, %c0_11] : memref<3x64x512xbf16, #tpu.memory_space<vmem>>, vector<1x64x512xbf16>
    %9 = vector.shape_cast %8 : vector<1x64x512xbf16> to vector<64x512xbf16>
    %cst_12 = arith.constant dense<0.000000e+00> : vector<256x512xf32>
    %10 = tpu.matmul %7, %9, %cst_12 {dimension_numbers = #tpu.dot_dimension_numbers<[1], [0], [0], [1], [0, 0, 1, 1], [], []>} : vector<256x64xbf16>, vector<64x512xbf16>, vector<256x512xf32> -> vector<256x512xf32>
    %c16_13 = arith.constant 16 : index
    %c0_14 = arith.constant 0 : index
    %11 = vector.load %arg9[%c16_13, %c0_14] : memref<288x64xbf16, #tpu.memory_space<vmem>>, vector<256x64xbf16>
    %c1 = arith.constant 1 : index
    %c0_15 = arith.constant 0 : index
    %c0_16 = arith.constant 0 : index
    %12 = vector.load %arg2[%c1, %c0_15, %c0_16] : memref<3x64x512xbf16, #tpu.memory_space<vmem>>, vector<1x64x512xbf16>
    %13 = vector.shape_cast %12 : vector<1x64x512xbf16> to vector<64x512xbf16>
    %cst_17 = arith.constant dense<0.000000e+00> : vector<256x512xf32>
    %14 = tpu.matmul %11, %13, %cst_17 {dimension_numbers = #tpu.dot_dimension_numbers<[1], [0], [0], [1], [0, 0, 1, 1], [], []>} : vector<256x64xbf16>, vector<64x512xbf16>, vector<256x512xf32> -> vector<256x512xf32>
    %15 = arith.addf %10, %14 : vector<256x512xf32>
    %c32 = arith.constant 32 : index
    %c0_18 = arith.constant 0 : index
    %16 = vector.load %arg9[%c32, %c0_18] : memref<288x64xbf16, #tpu.memory_space<vmem>>, vector<256x64xbf16>
    %c2 = arith.constant 2 : index
    %c0_19 = arith.constant 0 : index
    %c0_20 = arith.constant 0 : index
    %17 = vector.load %arg2[%c2, %c0_19, %c0_20] : memref<3x64x512xbf16, #tpu.memory_space<vmem>>, vector<1x64x512xbf16>
    %18 = vector.shape_cast %17 : vector<1x64x512xbf16> to vector<64x512xbf16>
    %cst_21 = arith.constant dense<0.000000e+00> : vector<256x512xf32>
    %19 = tpu.matmul %16, %18, %cst_21 {dimension_numbers = #tpu.dot_dimension_numbers<[1], [0], [0], [1], [0, 0, 1, 1], [], []>} : vector<256x64xbf16>, vector<64x512xbf16>, vector<256x512xf32> -> vector<256x512xf32>
    %20 = arith.addf %15, %19 : vector<256x512xf32>
    %c0_22 = arith.constant 0 : index
    %c0_23 = arith.constant 0 : index
    %21 = vector.load %arg3[%c0_22, %c0_23] : memref<1x512xf32, #tpu.memory_space<vmem>>, vector<1x512xf32>
    %22 = vector.broadcast %21 : vector<1x512xf32> to vector<256x512xf32>
    %23 = arith.addf %20, %22 : vector<256x512xf32>
    %cst_24 = arith.constant 0.000000e+00 : f32
    %24 = vector.broadcast %cst_24 : f32 to vector<256x512xf32>
    %25 = arith.maximumf %23, %24 : vector<256x512xf32>
    %26 = vector.shape_cast %25 : vector<256x512xf32> to vector<8x32x512xf32>
    %27 = vector.extract_strided_slice %26 {offsets = [0, 0, 0], sizes = [8, 16, 512], strides = [1, 1, 1]} : vector<8x32x512xf32> to vector<8x16x512xf32>
    %28 = vector.extract_strided_slice %26 {offsets = [0, 16, 0], sizes = [8, 16, 512], strides = [1, 1, 1]} : vector<8x32x512xf32> to vector<8x16x512xf32>
    %29 = arith.maximumf %27, %28 : vector<8x16x512xf32>
    %30 = vector.extract_strided_slice %29 {offsets = [0, 0, 0], sizes = [8, 16, 256], strides = [1, 1, 1]} : vector<8x16x512xf32> to vector<8x16x256xf32>
    %31 = vector.extract_strided_slice %29 {offsets = [0, 0, 256], sizes = [8, 16, 256], strides = [1, 1, 1]} : vector<8x16x512xf32> to vector<8x16x256xf32>
    %32 = arith.maximumf %30, %31 : vector<8x16x256xf32>
    %33 = vector.shape_cast %32 : vector<8x16x256xf32> to vector<128x256xf32>
    %cst_25 = arith.constant 0.000000e+00 : bf16
    %34 = vector.broadcast %cst_25 : bf16 to vector<16x256xbf16>
    %c0_26 = arith.constant 0 : index
    %c0_27 = arith.constant 0 : index
    %35 = vector.load %arg10[%c0_26, %c0_27] : memref<160x256xbf16, #tpu.memory_space<vmem>>, vector<16x256xbf16>
    tpu.vector_store %arg10[%c0_26, %c0_27], %34 {strides = array<i32>} : memref<160x256xbf16, #tpu.memory_space<vmem>>, vector<16x256xbf16>,
    %cst_28 = arith.constant 0.000000e+00 : bf16
    %36 = vector.broadcast %cst_28 : bf16 to vector<16x256xbf16>
    %c144 = arith.constant 144 : index
    %c0_29 = arith.constant 0 : index
    %37 = vector.load %arg10[%c144, %c0_29] : memref<160x256xbf16, #tpu.memory_space<vmem>>, vector<16x256xbf16>
    tpu.vector_store %arg10[%c144, %c0_29], %36 {strides = array<i32>} : memref<160x256xbf16, #tpu.memory_space<vmem>>, vector<16x256xbf16>,
    %38 = arith.truncf %33 : vector<128x256xf32> to vector<128x256xbf16>
    %c16_30 = arith.constant 16 : index
    %c0_31 = arith.constant 0 : index
    %39 = vector.load %arg10[%c16_30, %c0_31] : memref<160x256xbf16, #tpu.memory_space<vmem>>, vector<128x256xbf16>
    tpu.vector_store %arg10[%c16_30, %c0_31], %38 {strides = array<i32>} : memref<160x256xbf16, #tpu.memory_space<vmem>>, vector<128x256xbf16>,
    %c0_32 = arith.constant 0 : index
    %c0_33 = arith.constant 0 : index
    %40 = vector.load %arg10[%c0_32, %c0_33] : memref<160x256xbf16, #tpu.memory_space<vmem>>, vector<128x256xbf16>
    %c16_34 = arith.constant 16 : index
    %c0_35 = arith.constant 0 : index
    %41 = vector.load %arg10[%c16_34, %c0_35] : memref<160x256xbf16, #tpu.memory_space<vmem>>, vector<128x256xbf16>
    %c32_36 = arith.constant 32 : index
    %c0_37 = arith.constant 0 : index
    %42 = vector.load %arg10[%c32_36, %c0_37] : memref<160x256xbf16, #tpu.memory_space<vmem>>, vector<128x256xbf16>
    %43 = tpu.concatenate %40, %41, %42 in 1 : vector<128x256xbf16>, vector<128x256xbf16>, vector<128x256xbf16> -> vector<128x768xbf16>
    %c0_38 = arith.constant 0 : index
    %c0_39 = arith.constant 0 : index
    %44 = vector.load %arg4[%c0_38, %c0_39] : memref<768x256xbf16, #tpu.memory_space<vmem>>, vector<768x256xbf16>
    %cst_40 = arith.constant dense<0.000000e+00> : vector<128x256xf32>
    %45 = tpu.matmul %43, %44, %cst_40 {dimension_numbers = #tpu.dot_dimension_numbers<[1], [0], [0], [1], [0, 0, 1, 1], [], []>} : vector<128x768xbf16>, vector<768x256xbf16>, vector<128x256xf32> -> vector<128x256xf32>
    %c0_41 = arith.constant 0 : index
    %c0_42 = arith.constant 0 : index
    %46 = vector.load %arg5[%c0_41, %c0_42] : memref<1x256xf32, #tpu.memory_space<vmem>>, vector<1x256xf32>
    %47 = vector.broadcast %46 : vector<1x256xf32> to vector<128x256xf32>
    %48 = arith.addf %45, %47 : vector<128x256xf32>
    %cst_43 = arith.constant 0.000000e+00 : f32
    %49 = vector.broadcast %cst_43 : f32 to vector<128x256xf32>
    %50 = arith.maximumf %48, %49 : vector<128x256xf32>
    %51 = vector.shape_cast %50 : vector<128x256xf32> to vector<4x32x256xf32>
    %52 = vector.extract_strided_slice %51 {offsets = [0, 0, 0], sizes = [4, 16, 256], strides = [1, 1, 1]} : vector<4x32x256xf32> to vector<4x16x256xf32>
    %53 = vector.extract_strided_slice %51 {offsets = [0, 16, 0], sizes = [4, 16, 256], strides = [1, 1, 1]} : vector<4x32x256xf32> to vector<4x16x256xf32>
    %54 = arith.maximumf %52, %53 : vector<4x16x256xf32>
    %55 = vector.extract_strided_slice %54 {offsets = [0, 0, 0], sizes = [4, 16, 128], strides = [1, 1, 1]} : vector<4x16x256xf32> to vector<4x16x128xf32>
    %56 = vector.extract_strided_slice %54 {offsets = [0, 0, 128], sizes = [4, 16, 128], strides = [1, 1, 1]} : vector<4x16x256xf32> to vector<4x16x128xf32>
    %57 = arith.maximumf %55, %56 : vector<4x16x128xf32>
    %58 = vector.shape_cast %57 : vector<4x16x128xf32> to vector<64x128xf32>
    %cst_44 = arith.constant 0.000000e+00 : bf16
    %59 = vector.broadcast %cst_44 : bf16 to vector<16x128xbf16>
    %c0_45 = arith.constant 0 : index
    %c0_46 = arith.constant 0 : index
    %60 = vector.load %arg11[%c0_45, %c0_46] : memref<96x128xbf16, #tpu.memory_space<vmem>>, vector<16x128xbf16>
    tpu.vector_store %arg11[%c0_45, %c0_46], %59 {strides = array<i32>} : memref<96x128xbf16, #tpu.memory_space<vmem>>, vector<16x128xbf16>,
    %cst_47 = arith.constant 0.000000e+00 : bf16
    %61 = vector.broadcast %cst_47 : bf16 to vector<16x128xbf16>
    %c80 = arith.constant 80 : index
    %c0_48 = arith.constant 0 : index
    %62 = vector.load %arg11[%c80, %c0_48] : memref<96x128xbf16, #tpu.memory_space<vmem>>, vector<16x128xbf16>
    tpu.vector_store %arg11[%c80, %c0_48], %61 {strides = array<i32>} : memref<96x128xbf16, #tpu.memory_space<vmem>>, vector<16x128xbf16>,
    %63 = arith.truncf %58 : vector<64x128xf32> to vector<64x128xbf16>
    %c16_49 = arith.constant 16 : index
    %c0_50 = arith.constant 0 : index
    %64 = vector.load %arg11[%c16_49, %c0_50] : memref<96x128xbf16, #tpu.memory_space<vmem>>, vector<64x128xbf16>
    tpu.vector_store %arg11[%c16_49, %c0_50], %63 {strides = array<i32>} : memref<96x128xbf16, #tpu.memory_space<vmem>>, vector<64x128xbf16>,
    %c0_51 = arith.constant 0 : index
    %c0_52 = arith.constant 0 : index
    %65 = vector.load %arg11[%c0_51, %c0_52] : memref<96x128xbf16, #tpu.memory_space<vmem>>, vector<64x128xbf16>
    %c16_53 = arith.constant 16 : index
    %c0_54 = arith.constant 0 : index
    %66 = vector.load %arg11[%c16_53, %c0_54] : memref<96x128xbf16, #tpu.memory_space<vmem>>, vector<64x128xbf16>
    %c32_55 = arith.constant 32 : index
    %c0_56 = arith.constant 0 : index
    %67 = vector.load %arg11[%c32_55, %c0_56] : memref<96x128xbf16, #tpu.memory_space<vmem>>, vector<64x128xbf16>
    %68 = tpu.concatenate %65, %66, %67 in 1 : vector<64x128xbf16>, vector<64x128xbf16>, vector<64x128xbf16> -> vector<64x384xbf16>
    %c0_57 = arith.constant 0 : index
    %c0_58 = arith.constant 0 : index
    %69 = vector.load %arg6[%c0_57, %c0_58] : memref<384x256xbf16, #tpu.memory_space<vmem>>, vector<384x256xbf16>
    %cst_59 = arith.constant dense<0.000000e+00> : vector<64x256xf32>
    %70 = tpu.matmul %68, %69, %cst_59 {dimension_numbers = #tpu.dot_dimension_numbers<[1], [0], [0], [1], [0, 0, 1, 1], [], []>} : vector<64x384xbf16>, vector<384x256xbf16>, vector<64x256xf32> -> vector<64x256xf32>
    %c0_60 = arith.constant 0 : index
    %c0_61 = arith.constant 0 : index
    %71 = vector.load %arg7[%c0_60, %c0_61] : memref<1x256xf32, #tpu.memory_space<vmem>>, vector<1x256xf32>
    %72 = vector.broadcast %71 : vector<1x256xf32> to vector<64x256xf32>
    %73 = arith.addf %70, %72 : vector<64x256xf32>
    %cst_62 = arith.constant 0.000000e+00 : f32
    %74 = vector.broadcast %cst_62 : f32 to vector<64x256xf32>
    %75 = arith.maximumf %73, %74 : vector<64x256xf32>
    %76 = vector.shape_cast %75 : vector<64x256xf32> to vector<2x32x256xf32>
    %77 = vector.extract_strided_slice %76 {offsets = [0, 0, 0], sizes = [2, 16, 256], strides = [1, 1, 1]} : vector<2x32x256xf32> to vector<2x16x256xf32>
    %78 = vector.extract_strided_slice %76 {offsets = [0, 16, 0], sizes = [2, 16, 256], strides = [1, 1, 1]} : vector<2x32x256xf32> to vector<2x16x256xf32>
    %79 = arith.maximumf %77, %78 : vector<2x16x256xf32>
    %80 = vector.extract_strided_slice %79 {offsets = [0, 0, 0], sizes = [2, 16, 128], strides = [1, 1, 1]} : vector<2x16x256xf32> to vector<2x16x128xf32>
    %81 = vector.extract_strided_slice %79 {offsets = [0, 0, 128], sizes = [2, 16, 128], strides = [1, 1, 1]} : vector<2x16x256xf32> to vector<2x16x128xf32>
    %82 = arith.maximumf %80, %81 : vector<2x16x128xf32>
    %83 = vector.shape_cast %82 : vector<2x16x128xf32> to vector<32x128xf32>
    %c0_63 = arith.constant 0 : index
    %c0_64 = arith.constant 0 : index
    %c0_65 = arith.constant 0 : index
    %84 = vector.load %arg8[%c0_63, %c0_64, %c0_65] : memref<1x32x128xf32, #tpu.memory_space<vmem>>, vector<1x32x128xf32>
    %85 = vector.shape_cast %84 : vector<1x32x128xf32> to vector<32x128xf32>
    %86 = vector.shape_cast %83 : vector<32x128xf32> to vector<1x32x128xf32>
    tpu.vector_store %arg8[%c0_63, %c0_64, %c0_65], %86 {strides = array<i32>} : memref<1x32x128xf32, #tpu.memory_space<vmem>>, vector<1x32x128xf32>,
    return
  }
  func.func @transform_0(%arg0: i32) -> (i32, i32, i32) {
    %c0_i32 = arith.constant 0 : i32
    %c0_i32_0 = arith.constant 0 : i32
    %c0_i32_1 = arith.constant 0 : i32
    return %arg0, %c0_i32, %c0_i32_0 : i32, i32, i32
  }
  func.func @transform_1(%arg0: i32) -> (i32, i32, i32) {
    %c0_i32 = arith.constant 0 : i32
    %c0_i32_0 = arith.constant 0 : i32
    %c0_i32_1 = arith.constant 0 : i32
    %c0_i32_2 = arith.constant 0 : i32
    return %c0_i32, %c0_i32_0, %c0_i32_1 : i32, i32, i32
  }
  func.func @transform_2(%arg0: i32) -> (i32, i32) {
    %c0_i32 = arith.constant 0 : i32
    %c0_i32_0 = arith.constant 0 : i32
    %c0_i32_1 = arith.constant 0 : i32
    return %c0_i32, %c0_i32_0 : i32, i32
  }
  func.func @transform_3(%arg0: i32) -> (i32, i32) {
    %c0_i32 = arith.constant 0 : i32
    %c0_i32_0 = arith.constant 0 : i32
    %c0_i32_1 = arith.constant 0 : i32
    return %c0_i32, %c0_i32_0 : i32, i32
  }
  func.func @transform_4(%arg0: i32) -> (i32, i32) {
    %c0_i32 = arith.constant 0 : i32
    %c0_i32_0 = arith.constant 0 : i32
    %c0_i32_1 = arith.constant 0 : i32
    return %c0_i32, %c0_i32_0 : i32, i32
  }
  func.func @transform_5(%arg0: i32) -> (i32, i32) {
    %c0_i32 = arith.constant 0 : i32
    %c0_i32_0 = arith.constant 0 : i32
    %c0_i32_1 = arith.constant 0 : i32
    return %c0_i32, %c0_i32_0 : i32, i32
  }
  func.func @transform_6(%arg0: i32) -> (i32, i32) {
    %c0_i32 = arith.constant 0 : i32
    %c0_i32_0 = arith.constant 0 : i32
    %c0_i32_1 = arith.constant 0 : i32
    return %c0_i32, %c0_i32_0 : i32, i32
  }
  func.func @transform_7(%arg0: i32) -> (i32, i32, i32) {
    %c0_i32 = arith.constant 0 : i32
    %c0_i32_0 = arith.constant 0 : i32
    %c0_i32_1 = arith.constant 0 : i32
    return %arg0, %c0_i32, %c0_i32_0 : i32, i32, i32
  }
}

</mosaic_0001>

<llo_original>
// kernel: tpu_custom_call.1
$region0: #{tpu_custom_call.1}
  #allocation0 [shape = 'u32[]', space=smem, size = 0x4, offset = 0x4, fixed_abs, tag = 'smem constant byte address 0x4 - core index']
  #allocation1 [shape = 'u32[72,128]{1,0:T(1,128)}', space=vmem, size = 0x9000, scoped, tag = 'internal scratch']
  #allocation2 [shape = 'bf16[288,64]{1,0:T(8,128)(2,1)}', space=vmem, size = 0x12000, scoped, tag = 'scratch operand']
  #allocation3 [shape = 'bf16[160,256]{1,0:T(8,128)(2,1)}', space=vmem, size = 0x14000, scoped, tag = 'scratch operand']
  #allocation4 [shape = 'bf16[96,128]{1,0:T(8,128)(2,1)}', space=vmem, size = 0x6000, scoped, tag = 'scratch operand']
  %s0 = inlined_call_operand.vmem [shape: bf16[1,256,64], index: 0, kind: input, shape index: {}]
  %s1 = inlined_call_operand.hbm [shape: bf16[3,64,512], index: 1, kind: input, shape index: {}]
  %s2 = inlined_call_operand.vmem [shape: f32[1,512], index: 2, kind: input, shape index: {}]
  %s3 = inlined_call_operand.hbm [shape: bf16[768,256], index: 3, kind: input, shape index: {}]
  %s4 = inlined_call_operand.vmem [shape: f32[1,256], index: 4, kind: input, shape index: {}]
  %s5 = inlined_call_operand.hbm [shape: bf16[384,256], index: 5, kind: input, shape index: {}]
  %s6 = inlined_call_operand.vmem [shape: f32[1,256], index: 6, kind: input, shape index: {}]
  %s7 = inlined_call_operand.hbm [shape: f32[1,32,128], index: 7, kind: output, shape index: {}]
  %s8 = sld [smem:[#allocation0]]
  $region50: #{tpu_custom_call.1} parent=0
    _
  %s10 = ssub.s32 1, %s8
  %s11 = scalar_select 0, %s10, %s8
  $region1: #{tpu_custom_call.1} parent=0
    #allocation5 [shape = 'u8[196608]{0}', space=vmem, size = 0x30000, scoped, tag = 'input window, operand 1, single buffered']
    #allocation6 [shape = 's32[1]{0}', space=sflag, size = 0x4, scoped, tag = 'scoped memory for tpu_custom_call.1']
    #allocation7 [shape = 's32[1]{0}', space=sflag, size = 0x4, scoped, tag = 'scoped memory for tpu_custom_call.1']
    #allocation8 [shape = 'u8[393216]{0}', space=vmem, size = 0x60000, scoped, tag = 'input window, operand 3, single buffered']
    #allocation9 [shape = 's32[1]{0}', space=sflag, size = 0x4, scoped, tag = 'scoped memory for tpu_custom_call.1']
    #allocation10 [shape = 'u8[196608]{0}', space=vmem, size = 0x30000, scoped, tag = 'input window, operand 5, single buffered']
    #allocation11 [shape = 'u8[16384]{0}', space=vmem, size = 0x4000, scoped, tag = 'output window, operand 0, single buffered']
    %12 = vsyncpa [#allocation6], 0
    %13 = vsyncpa [#allocation9], 0
    %14 = vsyncpa [#allocation7], 0
    // Predicated region
    $region2: #{tpu_custom_call.1} parent=1 // pred_check
      _
    $region3: #{tpu_custom_call.1} parent=1 // pred_check_branch
      %16 = sbr.rel (0) target = $region5
    $region4: #{tpu_custom_call.1} parent=1 // pred_region
      _
    $region5: #{tpu_custom_call.1} parent=1 // pred_fallthru
      _
    // Predicated region
    $region6: #{tpu_custom_call.1} parent=1 // pred_check
      _
    $region7: #{tpu_custom_call.1} parent=1 // pred_check_branch
      %18 = sbr.rel (0) target = $region9
    $region8: #{tpu_custom_call.1} parent=1 // pred_region
      %20 = vsyncadd [#allocation6], 0
      %s21 = sshll.u32 %s1, 4
      %s22 = int_to_ptr.hbm [resolvable:$true] %s21
      %s23 = sshll.u32 [#allocation5], 4
      %s24 = int_to_ptr.vmem [resolvable:$true] %s23
      %29 = dma.hbm_to_vmem [thread:$0]  %s22, 6144, %s24, [#allocation6], 256, 256, 16
    $region9: #{tpu_custom_call.1} parent=1 // pred_fallthru
      _
    // Predicated region
    $region10: #{tpu_custom_call.1} parent=1 // pred_check
      _
    $region11: #{tpu_custom_call.1} parent=1 // pred_check_branch
      %31 = sbr.rel (0) target = $region13
    $region12: #{tpu_custom_call.1} parent=1 // pred_region
      _
    $region13: #{tpu_custom_call.1} parent=1 // pred_fallthru
      _
    // Predicated region
    $region14: #{tpu_custom_call.1} parent=1 // pred_check
      _
    $region15: #{tpu_custom_call.1} parent=1 // pred_check_branch
      %33 = sbr.rel (0) target = $region17
    $region16: #{tpu_custom_call.1} parent=1 // pred_region
      %35 = vsyncadd [#allocation9], 0
      %s36 = sshll.u32 %s3, 4
      %s37 = int_to_ptr.hbm [resolvable:$true] %s36
      %s38 = sshll.u32 [#allocation8], 4
      %s39 = int_to_ptr.vmem [resolvable:$true] %s38
      %44 = dma.hbm_to_vmem [thread:$0]  %s37, 12288, %s39, [#allocation9], 128, 128, 8
    $region17: #{tpu_custom_call.1} parent=1 // pred_fallthru
      _
    // Predicated region
    $region18: #{tpu_custom_call.1} parent=1 // pred_check
      _
    $region19: #{tpu_custom_call.1} parent=1 // pred_check_branch
      %46 = sbr.rel (0) target = $region21
    $region20: #{tpu_custom_call.1} parent=1 // pred_region
      _
    $region21: #{tpu_custom_call.1} parent=1 // pred_fallthru
      _
    // Predicated region
    $region22: #{tpu_custom_call.1} parent=1 // pred_check
      _
    $region23: #{tpu_custom_call.1} parent=1 // pred_check_branch
      %48 = sbr.rel (0) target = $region25
    $region24: #{tpu_custom_call.1} parent=1 // pred_region
      %50 = vsyncadd [#allocation9], 0
      %s51 = sshll.u32 %s5, 4
      %s52 = int_to_ptr.hbm [resolvable:$true] %s51
      %s53 = sshll.u32 [#allocation10], 4
      %s54 = int_to_ptr.vmem [resolvable:$true] %s53
      %59 = dma.hbm_to_vmem [thread:$0]  %s52, 6144, %s54, [#allocation9], 128, 128, 8
    $region25: #{tpu_custom_call.1} parent=1 // pred_fallthru
      _
    // Predicated region
    $region26: #{tpu_custom_call.1} parent=1 // pred_check
      _
    $region27: #{tpu_custom_call.1} parent=1 // pred_check_branch
      %61 = sbr.rel (0) target = $region29
    $region28: #{tpu_custom_call.1} parent=1 // pred_region
      _
    $region29: #{tpu_custom_call.1} parent=1 // pred_fallthru
      _
    // Predicated region
    $region30: #{tpu_custom_call.1} parent=1 // pred_check
      _
    $region31: #{tpu_custom_call.1} parent=1 // pred_check_branch
      %63 = sbr.rel (0) target = $region33
    $region32: #{tpu_custom_call.1} parent=1 // pred_region
      %65 = dma.done [#allocation6], 6144
    $region33: #{tpu_custom_call.1} parent=1 // pred_fallthru
      _
    // Predicated region
    $region34: #{tpu_custom_call.1} parent=1 // pred_check
      _
    $region35: #{tpu_custom_call.1} parent=1 // pred_check_branch
      %67 = sbr.rel (0) target = $region37
    $region36: #{tpu_custom_call.1} parent=1 // pred_region
      %69 = dma.done [#allocation9], 12288
    $region37: #{tpu_custom_call.1} parent=1 // pred_fallthru
      _
    // Predicated region
    $region38: #{tpu_custom_call.1} parent=1 // pred_check
      _
    $region39: #{tpu_custom_call.1} parent=1 // pred_check_branch
      %71 = sbr.rel (0) target = $region41
    $region40: #{tpu_custom_call.1} parent=1 // pred_region
      %73 = dma.done [#allocation9], 6144
    $region41: #{tpu_custom_call.1} parent=1 // pred_fallthru
      _
    %v75 = vld [vmem:[%s0] sm:$0xf]
    %v76 = vld [vmem:[%s0 + $0x4] sm:$0xf]
    %v77 = vld [vmem:[%s0 + $0x8] sm:$0xf]
    %v78 = vld [vmem:[%s0 + $0xc] sm:$0xf]
    %v79 = vld [vmem:[%s0 + $0x10] sm:$0xf]
    %v80 = vld [vmem:[%s0 + $0x14] sm:$0xf]
    %v81 = vld [vmem:[%s0 + $0x18] sm:$0xf]
    %v82 = vld [vmem:[%s0 + $0x1c] sm:$0xf]
    %v83 = vld [vmem:[%s0 + $0x20] sm:$0xf]
    %v84 = vld [vmem:[%s0 + $0x24] sm:$0xf]
    %v85 = vld [vmem:[%s0 + $0x28] sm:$0xf]
    %v86 = vld [vmem:[%s0 + $0x2c] sm:$0xf]
    %v87 = vld [vmem:[%s0 + $0x30] sm:$0xf]
    %v88 = vld [vmem:[%s0 + $0x34] sm:$0xf]
    %v89 = vld [vmem:[%s0 + $0x38] sm:$0xf]
    %v90 = vld [vmem:[%s0 + $0x3c] sm:$0xf]
    %v91 = vld [vmem:[%s0 + $0x40] sm:$0xf]
    %v92 = vld [vmem:[%s0 + $0x44] sm:$0xf]
    %v93 = vld [vmem:[%s0 + $0x48] sm:$0xf]
    %v94 = vld [vmem:[%s0 + $0x4c] sm:$0xf]
    %v95 = vld [vmem:[%s0 + $0x50] sm:$0xf]
    %v96 = vld [vmem:[%s0 + $0x54] sm:$0xf]
    %v97 = vld [vmem:[%s0 + $0x58] sm:$0xf]
    %v98 = vld [vmem:[%s0 + $0x5c] sm:$0xf]
    %v99 = vld [vmem:[%s0 + $0x60] sm:$0xf]
    %v100 = vld [vmem:[%s0 + $0x64] sm:$0xf]
    %v101 = vld [vmem:[%s0 + $0x68] sm:$0xf]
    %v102 = vld [vmem:[%s0 + $0x6c] sm:$0xf]
    %v103 = vld [vmem:[%s0 + $0x70] sm:$0xf]
    %v104 = vld [vmem:[%s0 + $0x74] sm:$0xf]
    %v105 = vld [vmem:[%s0 + $0x78] sm:$0xf]
    %v106 = vld [vmem:[%s0 + $0x7c] sm:$0xf]
    %vm107 = vcmask 519168
    %108 = vst.msk [vmem:[#allocation2] sm:$0xf] %vm107, 0
    %109 = vst.msk [vmem:[#allocation2 + $0x4] sm:$0xf] %vm107, 0
    %110 = vst.msk [vmem:[#allocation2 + $0x88] sm:$0xf] %vm107, 0
    %111 = vst.msk [vmem:[#allocation2 + $0x8c] sm:$0xf] %vm107, 0
    %112 = vst.msk [vmem:[#allocation2 + $0x8] sm:$0xf] %vm107, %v75
    %113 = vst.msk [vmem:[#allocation2 + $0xc] sm:$0xf] %vm107, %v76
    %114 = vst.msk [vmem:[#allocation2 + $0x10] sm:$0xf] %vm107, %v77
    %115 = vst.msk [vmem:[#allocation2 + $0x14] sm:$0xf] %vm107, %v78
    %116 = vst.msk [vmem:[#allocation2 + $0x18] sm:$0xf] %vm107, %v79
    %117 = vst.msk [vmem:[#allocation2 + $0x1c] sm:$0xf] %vm107, %v80
    %118 = vst.msk [vmem:[#allocation2 + $0x20] sm:$0xf] %vm107, %v81
    %119 = vst.msk [vmem:[#allocation2 + $0x24] sm:$0xf] %vm107, %v82
    %120 = vst.msk [vmem:[#allocation2 + $0x28] sm:$0xf] %vm107, %v83
    %121 = vst.msk [vmem:[#allocation2 + $0x2c] sm:$0xf] %vm107, %v84
    %122 = vst.msk [vmem:[#allocation2 + $0x30] sm:$0xf] %vm107, %v85
    %123 = vst.msk [vmem:[#allocation2 + $0x34] sm:$0xf] %vm107, %v86
    %124 = vst.msk [vmem:[#allocation2 + $0x38] sm:$0xf] %vm107, %v87
    %125 = vst.msk [vmem:[#allocation2 + $0x3c] sm:$0xf] %vm107, %v88
    %126 = vst.msk [vmem:[#allocation2 + $0x40] sm:$0xf] %vm107, %v89
    %127 = vst.msk [vmem:[#allocation2 + $0x44] sm:$0xf] %vm107, %v90
    %128 = vst.msk [vmem:[#allocation2 + $0x48] sm:$0xf] %vm107, %v91
    %129 = vst.msk [vmem:[#allocation2 + $0x4c] sm:$0xf] %vm107, %v92
    %130 = vst.msk [vmem:[#allocation2 + $0x50] sm:$0xf] %vm107, %v93
    %131 = vst.msk [vmem:[#allocation2 + $0x54] sm:$0xf] %vm107, %v94
    %132 = vst.msk [vmem:[#allocation2 + $0x58] sm:$0xf] %vm107, %v95
    %133 = vst.msk [vmem:[#allocation2 + $0x5c] sm:$0xf] %vm107, %v96
    %134 = vst.msk [vmem:[#allocation2 + $0x60] sm:$0xf] %vm107, %v97
    %135 = vst.msk [vmem:[#allocation2 + $0x64] sm:$0xf] %vm107, %v98
    %136 = vst.msk [vmem:[#allocation2 + $0x68] sm:$0xf] %vm107, %v99
    %137 = vst.msk [vmem:[#allocation2 + $0x6c] sm:$0xf] %vm107, %v100
    %138 = vst.msk [vmem:[#allocation2 + $0x70] sm:$0xf] %vm107, %v101
    %139 = vst.msk [vmem:[#allocation2 + $0x74] sm:$0xf] %vm107, %v102
    %140 = vst.msk [vmem:[#allocation2 + $0x78] sm:$0xf] %vm107, %v103
    %141 = vst.msk [vmem:[#allocation2 + $0x7c] sm:$0xf] %vm107, %v104
    %142 = vst.msk [vmem:[#allocation2 + $0x80] sm:$0xf] %vm107, %v105
    %143 = vst.msk [vmem:[#allocation2 + $0x84] sm:$0xf] %vm107, %v106
    %v144 = vld [vmem:[#allocation2] sm:$0xf]
    %v145 = vld [vmem:[#allocation2 + $0x4] sm:$0xf]
    %v146 = vld [vmem:[#allocation2 + $0x8] sm:$0xf]
    %v147 = vld [vmem:[#allocation2 + $0xc] sm:$0xf]
    %v148 = vld [vmem:[#allocation2 + $0x10] sm:$0xf]
    %v149 = vld [vmem:[#allocation2 + $0x14] sm:$0xf]
    %v150 = vld [vmem:[#allocation2 + $0x18] sm:$0xf]
    %v151 = vld [vmem:[#allocation2 + $0x1c] sm:$0xf]
    %v152 = vld [vmem:[#allocation2 + $0x20] sm:$0xf]
    %v153 = vld [vmem:[#allocation2 + $0x24] sm:$0xf]
    %v154 = vld [vmem:[#allocation2 + $0x28] sm:$0xf]
    %v155 = vld [vmem:[#allocation2 + $0x2c] sm:$0xf]
    %v156 = vld [vmem:[#allocation2 + $0x30] sm:$0xf]
    %v157 = vld [vmem:[#allocation2 + $0x34] sm:$0xf]
    %v158 = vld [vmem:[#allocation2 + $0x38] sm:$0xf]
    %v159 = vld [vmem:[#allocation2 + $0x3c] sm:$0xf]
    %v160 = vld [vmem:[#allocation2 + $0x40] sm:$0xf]
    %v161 = vld [vmem:[#allocation2 + $0x44] sm:$0xf]
    %v162 = vld [vmem:[#allocation2 + $0x48] sm:$0xf]
    %v163 = vld [vmem:[#allocation2 + $0x4c] sm:$0xf]
    %v164 = vld [vmem:[#allocation2 + $0x50] sm:$0xf]
    %v165 = vld [vmem:[#allocation2 + $0x54] sm:$0xf]
    %v166 = vld [vmem:[#allocation2 + $0x58] sm:$0xf]
    %v167 = vld [vmem:[#allocation2 + $0x5c] sm:$0xf]
    %v168 = vld [vmem:[#allocation2 + $0x60] sm:$0xf]
    %v169 = vld [vmem:[#allocation2 + $0x64] sm:$0xf]
    %v170 = vld [vmem:[#allocation2 + $0x68] sm:$0xf]
    %v171 = vld [vmem:[#allocation2 + $0x6c] sm:$0xf]
    %v172 = vld [vmem:[#allocation2 + $0x70] sm:$0xf]
    %v173 = vld [vmem:[#allocation2 + $0x74] sm:$0xf]
    %v174 = vld [vmem:[#allocation2 + $0x78] sm:$0xf]
    %v175 = vld [vmem:[#allocation2 + $0x7c] sm:$0xf]
    %v176 = vld [vmem:[#allocation5] sm:$0xff]
    %v177 = vld [vmem:[#allocation5 + $0x8] sm:$0xff]
    %v178 = vld [vmem:[#allocation5 + $0x10] sm:$0xff]
    %v179 = vld [vmem:[#allocation5 + $0x18] sm:$0xff]
    %v180 = vld [vmem:[#allocation5 + $0x20] sm:$0xff]
    %v181 = vld [vmem:[#allocation5 + $0x28] sm:$0xff]
    %v182 = vld [vmem:[#allocation5 + $0x30] sm:$0xff]
    %v183 = vld [vmem:[#allocation5 + $0x38] sm:$0xff]
    %v184 = vld [vmem:[#allocation5 + $0x40] sm:$0xff]
    %v185 = vld [vmem:[#allocation5 + $0x48] sm:$0xff]
    %v186 = vld [vmem:[#allocation5 + $0x50] sm:$0xff]
    %v187 = vld [vmem:[#allocation5 + $0x58] sm:$0xff]
    %v188 = vld [vmem:[#allocation5 + $0x60] sm:$0xff]
    %v189 = vld [vmem:[#allocation5 + $0x68] sm:$0xff]
    %v190 = vld [vmem:[#allocation5 + $0x70] sm:$0xff]
    %v191 = vld [vmem:[#allocation5 + $0x78] sm:$0xff]
    %v192 = vld [vmem:[#allocation2 + $0x80] sm:$0xf]
    %v193 = vld [vmem:[#allocation2 + $0x84] sm:$0xf]
    %s194 = scalar_lea.vmem [#allocation5], 128
    %v195 = vld [vmem:[%s194] sm:$0xff]
    %v196 = vld [vmem:[%s194 + $0x8] sm:$0xff]
    %v197 = vld [vmem:[%s194 + $0x10] sm:$0xff]
    %v198 = vld [vmem:[%s194 + $0x18] sm:$0xff]
    %v199 = vld [vmem:[%s194 + $0x20] sm:$0xff]
    %v200 = vld [vmem:[%s194 + $0x28] sm:$0xff]
    %v201 = vld [vmem:[%s194 + $0x30] sm:$0xff]
    %v202 = vld [vmem:[%s194 + $0x38] sm:$0xff]
    %v203 = vld [vmem:[%s194 + $0x40] sm:$0xff]
    %v204 = vld [vmem:[%s194 + $0x48] sm:$0xff]
    %v205 = vld [vmem:[%s194 + $0x50] sm:$0xff]
    %v206 = vld [vmem:[%s194 + $0x58] sm:$0xff]
    %v207 = vld [vmem:[%s194 + $0x60] sm:$0xff]
    %v208 = vld [vmem:[%s194 + $0x68] sm:$0xff]
    %v209 = vld [vmem:[%s194 + $0x70] sm:$0xff]
    %v210 = vld [vmem:[%s194 + $0x78] sm:$0xff]
    %v243 = vunpack.c.l.b16 %v146
    %v244 = vunpack.c.l.b16 %v147
    %v245 = vunpack.c.l.b16 %v148
    %v246 = vunpack.c.l.b16 %v149
    %v247 = vunpack.c.l.b16 %v150
    %v248 = vunpack.c.l.b16 %v151
    %v249 = vunpack.c.l.b16 %v152
    %v250 = vunpack.c.l.b16 %v153
    %v251 = vunpack.c.l.b16 %v154
    %v252 = vunpack.c.l.b16 %v155
    %v253 = vunpack.c.l.b16 %v156
    %v254 = vunpack.c.l.b16 %v157
    %v255 = vunpack.c.l.b16 %v158
    %v256 = vunpack.c.l.b16 %v159
    %v257 = vunpack.c.l.b16 %v160
    %v258 = vunpack.c.l.b16 %v161
    %v259 = vunpack.c.l.b16 %v162
    %v260 = vunpack.c.l.b16 %v163
    %v261 = vunpack.c.l.b16 %v164
    %v262 = vunpack.c.l.b16 %v165
    %v263 = vunpack.c.l.b16 %v166
    %v264 = vunpack.c.l.b16 %v167
    %v265 = vunpack.c.l.b16 %v168
    %v266 = vunpack.c.l.b16 %v169
    %v267 = vunpack.c.l.b16 %v170
    %v268 = vunpack.c.l.b16 %v171
    %v269 = vunpack.c.l.b16 %v172
    %v270 = vunpack.c.l.b16 %v173
    %v271 = vunpack.c.l.b16 %v174
    %v272 = vunpack.c.l.b16 %v175
    %v273 = vunpack.c.l.b16 %v192
    %v274 = vunpack.c.l.b16 %v193
    %v275 = vpack.c.b16 %v244, %v243
    %v276 = vpack.c.b16 %v246, %v245
    %v277 = vpack.c.b16 %v248, %v247
    %v278 = vpack.c.b16 %v250, %v249
    %v279 = vpack.c.b16 %v252, %v251
    %v280 = vpack.c.b16 %v254, %v253
    %v281 = vpack.c.b16 %v256, %v255
    %v282 = vpack.c.b16 %v258, %v257
    %v283 = vpack.c.b16 %v260, %v259
    %v284 = vpack.c.b16 %v262, %v261
    %v285 = vpack.c.b16 %v264, %v263
    %v286 = vpack.c.b16 %v266, %v265
    %v287 = vpack.c.b16 %v268, %v267
    %v288 = vpack.c.b16 %v270, %v269
    %v289 = vpack.c.b16 %v272, %v271
    %v290 = vpack.c.b16 %v274, %v273
    %v307 = vunpack.c.l.b16 %v195
    %v308 = vunpack.c.h.b16 %v195
    %v309 = vunpack.c.l.b16 %v196
    %v310 = vunpack.c.h.b16 %v196
    %v311 = vunpack.c.l.b16 %v197
    %v312 = vunpack.c.h.b16 %v197
    %v313 = vunpack.c.l.b16 %v198
    %v314 = vunpack.c.h.b16 %v198
    %v315 = vunpack.c.l.b16 %v199
    %v316 = vunpack.c.h.b16 %v199
    %v317 = vunpack.c.l.b16 %v200
    %v318 = vunpack.c.h.b16 %v200
    %v319 = vunpack.c.l.b16 %v201
    %v320 = vunpack.c.h.b16 %v201
    %v321 = vunpack.c.l.b16 %v202
    %v322 = vunpack.c.h.b16 %v202
    %v323 = vunpack.c.l.b16 %v203
    %v324 = vunpack.c.h.b16 %v203
    %v325 = vunpack.c.l.b16 %v204
    %v326 = vunpack.c.h.b16 %v204
    %v327 = vunpack.c.l.b16 %v205
    %v328 = vunpack.c.h.b16 %v205
    %v329 = vunpack.c.l.b16 %v206
    %v330 = vunpack.c.h.b16 %v206
    %v331 = vunpack.c.l.b16 %v207
    %v332 = vunpack.c.h.b16 %v207
    %v333 = vunpack.c.l.b16 %v208
    %v334 = vunpack.c.h.b16 %v208
    %v335 = vunpack.c.l.b16 %v209
    %v336 = vunpack.c.h.b16 %v209
    %v337 = vunpack.c.l.b16 %v210
    %v338 = vunpack.c.h.b16 %v210
    %v339 = vpack.c.b16 %v311, %v307
    %v340 = vpack.c.b16 %v312, %v308
    %v341 = vpack.c.b16 %v313, %v309
    %v342 = vpack.c.b16 %v314, %v310
    %v343 = vpack.c.b16 %v319, %v315
    %v344 = vpack.c.b16 %v320, %v316
    %v345 = vpack.c.b16 %v321, %v317
    %v346 = vpack.c.b16 %v322, %v318
    %v347 = vpack.c.b16 %v327, %v323
    %v348 = vpack.c.b16 %v328, %v324
    %v349 = vpack.c.b16 %v329, %v325
    %v350 = vpack.c.b16 %v330, %v326
    %v351 = vpack.c.b16 %v335, %v331
    %v352 = vpack.c.b16 %v336, %v332
    %v353 = vpack.c.b16 %v337, %v333
    %v354 = vpack.c.b16 %v338, %v334
    %vm371 = vcmask 523264
    %v373 = vsel %vm371, %v275, 0
    %v376 = vsel %vm371, %v276, 0
    %v379 = vsel %vm371, %v277, 0
    %v382 = vsel %vm371, %v278, 0
    %v385 = vsel %vm371, %v279, 0
    %v388 = vsel %vm371, %v280, 0
    %v391 = vsel %vm371, %v281, 0
    %v394 = vsel %vm371, %v282, 0
    %v397 = vsel %vm371, %v283, 0
    %v400 = vsel %vm371, %v284, 0
    %v403 = vsel %vm371, %v285, 0
    %v406 = vsel %vm371, %v286, 0
    %v409 = vsel %vm371, %v287, 0
    %v412 = vsel %vm371, %v288, 0
    %v415 = vsel %vm371, %v289, 0
    %v418 = vsel %vm371, %v290, 0
    %420 = vmatpush.bf16.msra.mxu0 0
    %421 = vmatpush.bf16.msra.mxu0 0
    %422 = vmatpush.bf16.msra.mxu0 0
    %423 = vmatpush.bf16.msra.mxu0 0
    %424 = vmatpush.bf16.msra.mxu0 %v351
    %425 = vmatpush.bf16.msra.mxu0 %v347
    %426 = vmatpush.bf16.msra.mxu0 %v343
    %427 = vmatpush.bf16.msra.mxu0 %v339
    %428 = vmatmul.bf16.gmra.mxu0 %v373
    %v429 = vpop.f32.mrf.mxu0
    %v430 = vadd.f32 0.0, %v429
    %v431 = vpop.f32.mrf.mxu0
    %v432 = vadd.f32 0.0, %v431
    %433 = vmatmul.bf16.gmra.mxu0 %v376
    %v434 = vpop.f32.mrf.mxu0
    %v435 = vadd.f32 0.0, %v434
    %v436 = vpop.f32.mrf.mxu0
    %v437 = vadd.f32 0.0, %v436
    %438 = vmatmul.bf16.gmra.mxu0 %v379
    %v439 = vpop.f32.mrf.mxu0
    %v440 = vadd.f32 0.0, %v439
    %v441 = vpop.f32.mrf.mxu0
    %v442 = vadd.f32 0.0, %v441
    %443 = vmatmul.bf16.gmra.mxu0 %v382
    %v444 = vpop.f32.mrf.mxu0
    %v445 = vadd.f32 0.0, %v444
    %v446 = vpop.f32.mrf.mxu0
    %v447 = vadd.f32 0.0, %v446
    %448 = vmatmul.bf16.gmra.mxu0 %v385
    %v449 = vpop.f32.mrf.mxu0
    %v450 = vadd.f32 0.0, %v449
    %v451 = vpop.f32.mrf.mxu0
    %v452 = vadd.f32 0.0, %v451
    %453 = vmatmul.bf16.gmra.mxu0 %v388
    %v454 = vpop.f32.mrf.mxu0
    %v455 = vadd.f32 0.0, %v454
    %v456 = vpop.f32.mrf.mxu0
    %v457 = vadd.f32 0.0, %v456
    %458 = vmatmul.bf16.gmra.mxu0 %v391
    %v459 = vpop.f32.mrf.mxu0
    %v460 = vadd.f32 0.0, %v459
    %v461 = vpop.f32.mrf.mxu0
    %v462 = vadd.f32 0.0, %v461
    %463 = vmatmul.bf16.gmra.mxu0 %v394
    %v464 = vpop.f32.mrf.mxu0
    %v465 = vadd.f32 0.0, %v464
    %v466 = vpop.f32.mrf.mxu0
    %v467 = vadd.f32 0.0, %v466
    %468 = vmatmul.bf16.gmra.mxu0 %v397
    %v469 = vpop.f32.mrf.mxu0
    %v470 = vadd.f32 0.0, %v469
    %v471 = vpop.f32.mrf.mxu0
    %v472 = vadd.f32 0.0, %v471
    %473 = vmatmul.bf16.gmra.mxu0 %v400
    %v474 = vpop.f32.mrf.mxu0
    %v475 = vadd.f32 0.0, %v474
    %v476 = vpop.f32.mrf.mxu0
    %v477 = vadd.f32 0.0, %v476
    %478 = vmatmul.bf16.gmra.mxu0 %v403
    %v479 = vpop.f32.mrf.mxu0
    %v480 = vadd.f32 0.0, %v479
    %v481 = vpop.f32.mrf.mxu0
    %v482 = vadd.f32 0.0, %v481
    %483 = vmatmul.bf16.gmra.mxu0 %v406
    %v484 = vpop.f32.mrf.mxu0
    %v485 = vadd.f32 0.0, %v484
    %v486 = vpop.f32.mrf.mxu0
    %v487 = vadd.f32 0.0, %v486
    %488 = vmatmul.bf16.gmra.mxu0 %v409
    %v489 = vpop.f32.mrf.mxu0
    %v490 = vadd.f32 0.0, %v489
    %v491 = vpop.f32.mrf.mxu0
    %v492 = vadd.f32 0.0, %v491
    %493 = vmatmul.bf16.gmra.mxu0 %v412
    %v494 = vpop.f32.mrf.mxu0
    %v495 = vadd.f32 0.0, %v494
    %v496 = vpop.f32.mrf.mxu0
    %v497 = vadd.f32 0.0, %v496
    %498 = vmatmul.bf16.gmra.mxu0 %v415
    %v499 = vpop.f32.mrf.mxu0
    %v500 = vadd.f32 0.0, %v499
    %v501 = vpop.f32.mrf.mxu0
    %v502 = vadd.f32 0.0, %v501
    %503 = vmatmul.bf16.gmra.mxu0 %v418
    %v504 = vpop.f32.mrf.mxu0
    %v505 = vadd.f32 0.0, %v504
    %v506 = vpop.f32.mrf.mxu0
    %v507 = vadd.f32 0.0, %v506
    %508 = vdwg.mxu0
    %509 = vmatpush.bf16.msra.mxu0 0
    %510 = vmatpush.bf16.msra.mxu0 0
    %511 = vmatpush.bf16.msra.mxu0 0
    %512 = vmatpush.bf16.msra.mxu0 0
    %513 = vmatpush.bf16.msra.mxu0 %v352
    %514 = vmatpush.bf16.msra.mxu0 %v348
    %515 = vmatpush.bf16.msra.mxu0 %v344
    %516 = vmatpush.bf16.msra.mxu0 %v340
    %517 = vmatmul.bf16.gmra.mxu0 %v373
    %v518 = vpop.f32.mrf.mxu0
    %v519 = vadd.f32 0.0, %v518
    %v520 = vpop.f32.mrf.mxu0
    %v521 = vadd.f32 0.0, %v520
    %522 = vmatmul.bf16.gmra.mxu0 %v376
    %v523 = vpop.f32.mrf.mxu0
    %v524 = vadd.f32 0.0, %v523
    %v525 = vpop.f32.mrf.mxu0
    %v526 = vadd.f32 0.0, %v525
    %527 = vmatmul.bf16.gmra.mxu0 %v379
    %v528 = vpop.f32.mrf.mxu0
    %v529 = vadd.f32 0.0, %v528
    %v530 = vpop.f32.mrf.mxu0
    %v531 = vadd.f32 0.0, %v530
    %532 = vmatmul.bf16.gmra.mxu0 %v382
    %v533 = vpop.f32.mrf.mxu0
    %v534 = vadd.f32 0.0, %v533
    %v535 = vpop.f32.mrf.mxu0
    %v536 = vadd.f32 0.0, %v535
    %537 = vmatmul.bf16.gmra.mxu0 %v385
    %v538 = vpop.f32.mrf.mxu0
    %v539 = vadd.f32 0.0, %v538
    %v540 = vpop.f32.mrf.mxu0
    %v541 = vadd.f32 0.0, %v540
    %542 = vmatmul.bf16.gmra.mxu0 %v388
    %v543 = vpop.f32.mrf.mxu0
    %v544 = vadd.f32 0.0, %v543
    %v545 = vpop.f32.mrf.mxu0
    %v546 = vadd.f32 0.0, %v545
    %547 = vmatmul.bf16.gmra.mxu0 %v391
    %v548 = vpop.f32.mrf.mxu0
    %v549 = vadd.f32 0.0, %v548
    %v550 = vpop.f32.mrf.mxu0
    %v551 = vadd.f32 0.0, %v550
    %552 = vmatmul.bf16.gmra.mxu0 %v394
    %v553 = vpop.f32.mrf.mxu0
    %v554 = vadd.f32 0.0, %v553
    %v555 = vpop.f32.mrf.mxu0
    %v556 = vadd.f32 0.0, %v555
    %557 = vmatmul.bf16.gmra.mxu0 %v397
    %v558 = vpop.f32.mrf.mxu0
    %v559 = vadd.f32 0.0, %v558
    %v560 = vpop.f32.mrf.mxu0
    %v561 = vadd.f32 0.0, %v560
    %562 = vmatmul.bf16.gmra.mxu0 %v400
    %v563 = vpop.f32.mrf.mxu0
    %v564 = vadd.f32 0.0, %v563
    %v565 = vpop.f32.mrf.mxu0
    %v566 = vadd.f32 0.0, %v565
    %567 = vmatmul.bf16.gmra.mxu0 %v403
    %v568 = vpop.f32.mrf.mxu0
    %v569 = vadd.f32 0.0, %v568
    %v570 = vpop.f32.mrf.mxu0
    %v571 = vadd.f32 0.0, %v570
    %572 = vmatmul.bf16.gmra.mxu0 %v406
    %v573 = vpop.f32.mrf.mxu0
    %v574 = vadd.f32 0.0, %v573
    %v575 = vpop.f32.mrf.mxu0
    %v576 = vadd.f32 0.0, %v575
    %577 = vmatmul.bf16.gmra.mxu0 %v409
    %v578 = vpop.f32.mrf.mxu0
    %v579 = vadd.f32 0.0, %v578
    %v580 = vpop.f32.mrf.mxu0
    %v581 = vadd.f32 0.0, %v580
    %582 = vmatmul.bf16.gmra.mxu0 %v412
    %v583 = vpop.f32.mrf.mxu0
    %v584 = vadd.f32 0.0, %v583
    %v585 = vpop.f32.mrf.mxu0
    %v586 = vadd.f32 0.0, %v585
    %587 = vmatmul.bf16.gmra.mxu0 %v415
    %v588 = vpop.f32.mrf.mxu0
    %v589 = vadd.f32 0.0, %v588
    %v590 = vpop.f32.mrf.mxu0
    %v591 = vadd.f32 0.0, %v590
    %592 = vmatmul.bf16.gmra.mxu0 %v418
    %v593 = vpop.f32.mrf.mxu0
    %v594 = vadd.f32 0.0, %v593
    %v595 = vpop.f32.mrf.mxu0
    %v596 = vadd.f32 0.0, %v595
    %597 = vdwg.mxu0
    %598 = vmatpush.bf16.msra.mxu0 0
    %599 = vmatpush.bf16.msra.mxu0 0
    %600 = vmatpush.bf16.msra.mxu0 0
    %601 = vmatpush.bf16.msra.mxu0 0
    %602 = vmatpush.bf16.msra.mxu0 %v353
    %603 = vmatpush.bf16.msra.mxu0 %v349
    %604 = vmatpush.bf16.msra.mxu0 %v345
    %605 = vmatpush.bf16.msra.mxu0 %v341
    %606 = vmatmul.bf16.gmra.mxu0 %v373
    %v607 = vpop.f32.mrf.mxu0
    %v608 = vadd.f32 0.0, %v607
    %v609 = vpop.f32.mrf.mxu0
    %v610 = vadd.f32 0.0, %v609
    %611 = vmatmul.bf16.gmra.mxu0 %v376
    %v612 = vpop.f32.mrf.mxu0
    %v613 = vadd.f32 0.0, %v612
    %v614 = vpop.f32.mrf.mxu0
    %v615 = vadd.f32 0.0, %v614
    %616 = vmatmul.bf16.gmra.mxu0 %v379
    %v617 = vpop.f32.mrf.mxu0
    %v618 = vadd.f32 0.0, %v617
    %v619 = vpop.f32.mrf.mxu0
    %v620 = vadd.f32 0.0, %v619
    %621 = vmatmul.bf16.gmra.mxu0 %v382
    %v622 = vpop.f32.mrf.mxu0
    %v623 = vadd.f32 0.0, %v622
    %v624 = vpop.f32.mrf.mxu0
    %v625 = vadd.f32 0.0, %v624
    %626 = vmatmul.bf16.gmra.mxu0 %v385
    %v627 = vpop.f32.mrf.mxu0
    %v628 = vadd.f32 0.0, %v627
    %v629 = vpop.f32.mrf.mxu0
    %v630 = vadd.f32 0.0, %v629
    %631 = vmatmul.bf16.gmra.mxu0 %v388
    %v632 = vpop.f32.mrf.mxu0
    %v633 = vadd.f32 0.0, %v632
    %v634 = vpop.f32.mrf.mxu0
    %v635 = vadd.f32 0.0, %v634
    %636 = vmatmul.bf16.gmra.mxu0 %v391
    %v637 = vpop.f32.mrf.mxu0
    %v638 = vadd.f32 0.0, %v637
    %v639 = vpop.f32.mrf.mxu0
    %v640 = vadd.f32 0.0, %v639
    %641 = vmatmul.bf16.gmra.mxu0 %v394
    %v642 = vpop.f32.mrf.mxu0
    %v643 = vadd.f32 0.0, %v642
    %v644 = vpop.f32.mrf.mxu0
    %v645 = vadd.f32 0.0, %v644
    %646 = vmatmul.bf16.gmra.mxu0 %v397
    %v647 = vpop.f32.mrf.mxu0
    %v648 = vadd.f32 0.0, %v647
    %v649 = vpop.f32.mrf.mxu0
    %v650 = vadd.f32 0.0, %v649
    %651 = vmatmul.bf16.gmra.mxu0 %v400
    %v652 = vpop.f32.mrf.mxu0
    %v653 = vadd.f32 0.0, %v652
    %v654 = vpop.f32.mrf.mxu0
    %v655 = vadd.f32 0.0, %v654
    %656 = vmatmul.bf16.gmra.mxu0 %v403
    %v657 = vpop.f32.mrf.mxu0
    %v658 = vadd.f32 0.0, %v657
    %v659 = vpop.f32.mrf.mxu0
    %v660 = vadd.f32 0.0, %v659
    %661 = vmatmul.bf16.gmra.mxu0 %v406
    %v662 = vpop.f32.mrf.mxu0
    %v663 = vadd.f32 0.0, %v662
    %v664 = vpop.f32.mrf.mxu0
    %v665 = vadd.f32 0.0, %v664
    %666 = vmatmul.bf16.gmra.mxu0 %v409
    %v667 = vpop.f32.mrf.mxu0
    %v668 = vadd.f32 0.0, %v667
    %v669 = vpop.f32.mrf.mxu0
    %v670 = vadd.f32 0.0, %v669
    %671 = vmatmul.bf16.gmra.mxu0 %v412
    %v672 = vpop.f32.mrf.mxu0
    %v673 = vadd.f32 0.0, %v672
    %v674 = vpop.f32.mrf.mxu0
    %v675 = vadd.f32 0.0, %v674
    %676 = vmatmul.bf16.gmra.mxu0 %v415
    %v677 = vpop.f32.mrf.mxu0
    %v678 = vadd.f32 0.0, %v677
    %v679 = vpop.f32.mrf.mxu0
    %v680 = vadd.f32 0.0, %v679
    %681 = vmatmul.bf16.gmra.mxu0 %v418
    %v682 = vpop.f32.mrf.mxu0
    %v683 = vadd.f32 0.0, %v682
    %v684 = vpop.f32.mrf.mxu0
    %v685 = vadd.f32 0.0, %v684
    %686 = vdwg.mxu0
    %687 = vmatpush.bf16.msra.mxu0 0
    %688 = vmatpush.bf16.msra.mxu0 0
    %689 = vmatpush.bf16.msra.mxu0 0
    %690 = vmatpush.bf16.msra.mxu0 0
    %691 = vmatpush.bf16.msra.mxu0 %v354
    %692 = vmatpush.bf16.msra.mxu0 %v350
    %693 = vmatpush.bf16.msra.mxu0 %v346
    %694 = vmatpush.bf16.msra.mxu0 %v342
    %695 = vmatmul.bf16.gmra.mxu0 %v373
    %v696 = vpop.f32.mrf.mxu0
    %v697 = vadd.f32 0.0, %v696
    %v698 = vpop.f32.mrf.mxu0
    %v699 = vadd.f32 0.0, %v698
    %700 = vmatmul.bf16.gmra.mxu0 %v376
    %v701 = vpop.f32.mrf.mxu0
    %v702 = vadd.f32 0.0, %v701
    %v703 = vpop.f32.mrf.mxu0
    %v704 = vadd.f32 0.0, %v703
    %705 = vmatmul.bf16.gmra.mxu0 %v379
    %v706 = vpop.f32.mrf.mxu0
    %v707 = vadd.f32 0.0, %v706
    %v708 = vpop.f32.mrf.mxu0
    %v709 = vadd.f32 0.0, %v708
    %710 = vmatmul.bf16.gmra.mxu0 %v382
    %v711 = vpop.f32.mrf.mxu0
    %v712 = vadd.f32 0.0, %v711
    %v713 = vpop.f32.mrf.mxu0
    %v714 = vadd.f32 0.0, %v713
    %715 = vmatmul.bf16.gmra.mxu0 %v385
    %v716 = vpop.f32.mrf.mxu0
    %v717 = vadd.f32 0.0, %v716
    %v718 = vpop.f32.mrf.mxu0
    %v719 = vadd.f32 0.0, %v718
    %720 = vmatmul.bf16.gmra.mxu0 %v388
    %v721 = vpop.f32.mrf.mxu0
    %v722 = vadd.f32 0.0, %v721
    %v723 = vpop.f32.mrf.mxu0
    %v724 = vadd.f32 0.0, %v723
    %725 = vmatmul.bf16.gmra.mxu0 %v391
    %v726 = vpop.f32.mrf.mxu0
    %v727 = vadd.f32 0.0, %v726
    %v728 = vpop.f32.mrf.mxu0
    %v729 = vadd.f32 0.0, %v728
    %730 = vmatmul.bf16.gmra.mxu0 %v394
    %v731 = vpop.f32.mrf.mxu0
    %v732 = vadd.f32 0.0, %v731
    %v733 = vpop.f32.mrf.mxu0
    %v734 = vadd.f32 0.0, %v733
    %735 = vmatmul.bf16.gmra.mxu0 %v397
    %v736 = vpop.f32.mrf.mxu0
    %v737 = vadd.f32 0.0, %v736
    %v738 = vpop.f32.mrf.mxu0
    %v739 = vadd.f32 0.0, %v738
    %740 = vmatmul.bf16.gmra.mxu0 %v400
    %v741 = vpop.f32.mrf.mxu0
    %v742 = vadd.f32 0.0, %v741
    %v743 = vpop.f32.mrf.mxu0
    %v744 = vadd.f32 0.0, %v743
    %745 = vmatmul.bf16.gmra.mxu0 %v403
    %v746 = vpop.f32.mrf.mxu0
    %v747 = vadd.f32 0.0, %v746
    %v748 = vpop.f32.mrf.mxu0
    %v749 = vadd.f32 0.0, %v748
    %750 = vmatmul.bf16.gmra.mxu0 %v406
    %v751 = vpop.f32.mrf.mxu0
    %v752 = vadd.f32 0.0, %v751
    %v753 = vpop.f32.mrf.mxu0
    %v754 = vadd.f32 0.0, %v753
    %755 = vmatmul.bf16.gmra.mxu0 %v409
    %v756 = vpop.f32.mrf.mxu0
    %v757 = vadd.f32 0.0, %v756
    %v758 = vpop.f32.mrf.mxu0
    %v759 = vadd.f32 0.0, %v758
    %760 = vmatmul.bf16.gmra.mxu0 %v412
    %v761 = vpop.f32.mrf.mxu0
    %v762 = vadd.f32 0.0, %v761
    %v763 = vpop.f32.mrf.mxu0
    %v764 = vadd.f32 0.0, %v763
    %765 = vmatmul.bf16.gmra.mxu0 %v415
    %v766 = vpop.f32.mrf.mxu0
    %v767 = vadd.f32 0.0, %v766
    %v768 = vpop.f32.mrf.mxu0
    %v769 = vadd.f32 0.0, %v768
    %770 = vmatmul.bf16.gmra.mxu0 %v418
    %v771 = vpop.f32.mrf.mxu0
    %v772 = vadd.f32 0.0, %v771
    %v773 = vpop.f32.mrf.mxu0
    %v774 = vadd.f32 0.0, %v773
    %775 = vdwg.mxu0
    %v778 = vunpack.c.l.b16 %v144
    %v779 = vunpack.c.l.b16 %v145
    %v780 = vpack.c.b16 %v779, %v778
    %v797 = vunpack.c.l.b16 %v176
    %v798 = vunpack.c.h.b16 %v176
    %v799 = vunpack.c.l.b16 %v177
    %v800 = vunpack.c.h.b16 %v177
    %v801 = vunpack.c.l.b16 %v178
    %v802 = vunpack.c.h.b16 %v178
    %v803 = vunpack.c.l.b16 %v179
    %v804 = vunpack.c.h.b16 %v179
    %v805 = vunpack.c.l.b16 %v180
    %v806 = vunpack.c.h.b16 %v180
    %v807 = vunpack.c.l.b16 %v181
    %v808 = vunpack.c.h.b16 %v181
    %v809 = vunpack.c.l.b16 %v182
    %v810 = vunpack.c.h.b16 %v182
    %v811 = vunpack.c.l.b16 %v183
    %v812 = vunpack.c.h.b16 %v183
    %v813 = vunpack.c.l.b16 %v184
    %v814 = vunpack.c.h.b16 %v184
    %v815 = vunpack.c.l.b16 %v185
    %v816 = vunpack.c.h.b16 %v185
    %v817 = vunpack.c.l.b16 %v186
    %v818 = vunpack.c.h.b16 %v186
    %v819 = vunpack.c.l.b16 %v187
    %v820 = vunpack.c.h.b16 %v187
    %v821 = vunpack.c.l.b16 %v188
    %v822 = vunpack.c.h.b16 %v188
    %v823 = vunpack.c.l.b16 %v189
    %v824 = vunpack.c.h.b16 %v189
    %v825 = vunpack.c.l.b16 %v190
    %v826 = vunpack.c.h.b16 %v190
    %v827 = vunpack.c.l.b16 %v191
    %v828 = vunpack.c.h.b16 %v191
    %v829 = vpack.c.b16 %v801, %v797
    %v830 = vpack.c.b16 %v802, %v798
    %v831 = vpack.c.b16 %v803, %v799
    %v832 = vpack.c.b16 %v804, %v800
    %v833 = vpack.c.b16 %v809, %v805
    %v834 = vpack.c.b16 %v810, %v806
    %v835 = vpack.c.b16 %v811, %v807
    %v836 = vpack.c.b16 %v812, %v808
    %v837 = vpack.c.b16 %v817, %v813
    %v838 = vpack.c.b16 %v818, %v814
    %v839 = vpack.c.b16 %v819, %v815
    %v840 = vpack.c.b16 %v820, %v816
    %v841 = vpack.c.b16 %v825, %v821
    %v842 = vpack.c.b16 %v826, %v822
    %v843 = vpack.c.b16 %v827, %v823
    %v844 = vpack.c.b16 %v828, %v824
    %v862 = vsel %vm371, %v780, 0
    %864 = vmatpush.bf16.msra.mxu0 0
    %865 = vmatpush.bf16.msra.mxu0 0
    %866 = vmatpush.bf16.msra.mxu0 0
    %867 = vmatpush.bf16.msra.mxu0 0
    %868 = vmatpush.bf16.msra.mxu0 %v841
    %869 = vmatpush.bf16.msra.mxu0 %v837
    %870 = vmatpush.bf16.msra.mxu0 %v833
    %871 = vmatpush.bf16.msra.mxu0 %v829
    %872 = vmatmul.bf16.gmra.mxu0 %v862
    %v873 = vpop.f32.mrf.mxu0
    %v874 = vadd.f32 %v430, %v873
    %v875 = vpop.f32.mrf.mxu0
    %v876 = vadd.f32 %v432, %v875
    %877 = vmatmul.bf16.gmra.mxu0 %v373
    %v878 = vpop.f32.mrf.mxu0
    %v879 = vadd.f32 %v435, %v878
    %v880 = vpop.f32.mrf.mxu0
    %v881 = vadd.f32 %v437, %v880
    %882 = vmatmul.bf16.gmra.mxu0 %v376
    %v883 = vpop.f32.mrf.mxu0
    %v884 = vadd.f32 %v440, %v883
    %v885 = vpop.f32.mrf.mxu0
    %v886 = vadd.f32 %v442, %v885
    %887 = vmatmul.bf16.gmra.mxu0 %v379
    %v888 = vpop.f32.mrf.mxu0
    %v889 = vadd.f32 %v445, %v888
    %v890 = vpop.f32.mrf.mxu0
    %v891 = vadd.f32 %v447, %v890
    %892 = vmatmul.bf16.gmra.mxu0 %v382
    %v893 = vpop.f32.mrf.mxu0
    %v894 = vadd.f32 %v450, %v893
    %v895 = vpop.f32.mrf.mxu0
    %v896 = vadd.f32 %v452, %v895
    %897 = vmatmul.bf16.gmra.mxu0 %v385
    %v898 = vpop.f32.mrf.mxu0
    %v899 = vadd.f32 %v455, %v898
    %v900 = vpop.f32.mrf.mxu0
    %v901 = vadd.f32 %v457, %v900
    %902 = vmatmul.bf16.gmra.mxu0 %v388
    %v903 = vpop.f32.mrf.mxu0
    %v904 = vadd.f32 %v460, %v903
    %v905 = vpop.f32.mrf.mxu0
    %v906 = vadd.f32 %v462, %v905
    %907 = vmatmul.bf16.gmra.mxu0 %v391
    %v908 = vpop.f32.mrf.mxu0
    %v909 = vadd.f32 %v465, %v908
    %v910 = vpop.f32.mrf.mxu0
    %v911 = vadd.f32 %v467, %v910
    %912 = vmatmul.bf16.gmra.mxu0 %v394
    %v913 = vpop.f32.mrf.mxu0
    %v914 = vadd.f32 %v470, %v913
    %v915 = vpop.f32.mrf.mxu0
    %v916 = vadd.f32 %v472, %v915
    %917 = vmatmul.bf16.gmra.mxu0 %v397
    %v918 = vpop.f32.mrf.mxu0
    %v919 = vadd.f32 %v475, %v918
    %v920 = vpop.f32.mrf.mxu0
    %v921 = vadd.f32 %v477, %v920
    %922 = vmatmul.bf16.gmra.mxu0 %v400
    %v923 = vpop.f32.mrf.mxu0
    %v924 = vadd.f32 %v480, %v923
    %v925 = vpop.f32.mrf.mxu0
    %v926 = vadd.f32 %v482, %v925
    %927 = vmatmul.bf16.gmra.mxu0 %v403
    %v928 = vpop.f32.mrf.mxu0
    %v929 = vadd.f32 %v485, %v928
    %v930 = vpop.f32.mrf.mxu0
    %v931 = vadd.f32 %v487, %v930
    %932 = vmatmul.bf16.gmra.mxu0 %v406
    %v933 = vpop.f32.mrf.mxu0
    %v934 = vadd.f32 %v490, %v933
    %v935 = vpop.f32.mrf.mxu0
    %v936 = vadd.f32 %v492, %v935
    %937 = vmatmul.bf16.gmra.mxu0 %v409
    %v938 = vpop.f32.mrf.mxu0
    %v939 = vadd.f32 %v495, %v938
    %v940 = vpop.f32.mrf.mxu0
    %v941 = vadd.f32 %v497, %v940
    %942 = vmatmul.bf16.gmra.mxu0 %v412
    %v943 = vpop.f32.mrf.mxu0
    %v944 = vadd.f32 %v500, %v943
    %v945 = vpop.f32.mrf.mxu0
    %v946 = vadd.f32 %v502, %v945
    %947 = vmatmul.bf16.gmra.mxu0 %v415
    %v948 = vpop.f32.mrf.mxu0
    %v949 = vadd.f32 %v505, %v948
    %v950 = vpop.f32.mrf.mxu0
    %v951 = vadd.f32 %v507, %v950
    %952 = vdwg.mxu0
    %953 = vmatpush.bf16.msra.mxu0 0
    %954 = vmatpush.bf16.msra.mxu0 0
    %955 = vmatpush.bf16.msra.mxu0 0
    %956 = vmatpush.bf16.msra.mxu0 0
    %957 = vmatpush.bf16.msra.mxu0 %v842
    %958 = vmatpush.bf16.msra.mxu0 %v838
    %959 = vmatpush.bf16.msra.mxu0 %v834
    %960 = vmatpush.bf16.msra.mxu0 %v830
    %961 = vmatmul.bf16.gmra.mxu0 %v862
    %v962 = vpop.f32.mrf.mxu0
    %v963 = vadd.f32 %v519, %v962
    %v964 = vpop.f32.mrf.mxu0
    %v965 = vadd.f32 %v521, %v964
    %966 = vmatmul.bf16.gmra.mxu0 %v373
    %v967 = vpop.f32.mrf.mxu0
    %v968 = vadd.f32 %v524, %v967
    %v969 = vpop.f32.mrf.mxu0
    %v970 = vadd.f32 %v526, %v969
    %971 = vmatmul.bf16.gmra.mxu0 %v376
    %v972 = vpop.f32.mrf.mxu0
    %v973 = vadd.f32 %v529, %v972
    %v974 = vpop.f32.mrf.mxu0
    %v975 = vadd.f32 %v531, %v974
    %976 = vmatmul.bf16.gmra.mxu0 %v379
    %v977 = vpop.f32.mrf.mxu0
    %v978 = vadd.f32 %v534, %v977
    %v979 = vpop.f32.mrf.mxu0
    %v980 = vadd.f32 %v536, %v979
    %981 = vmatmul.bf16.gmra.mxu0 %v382
    %v982 = vpop.f32.mrf.mxu0
    %v983 = vadd.f32 %v539, %v982
    %v984 = vpop.f32.mrf.mxu0
    %v985 = vadd.f32 %v541, %v984
    %986 = vmatmul.bf16.gmra.mxu0 %v385
    %v987 = vpop.f32.mrf.mxu0
    %v988 = vadd.f32 %v544, %v987
    %v989 = vpop.f32.mrf.mxu0
    %v990 = vadd.f32 %v546, %v989
    %991 = vmatmul.bf16.gmra.mxu0 %v388
    %v992 = vpop.f32.mrf.mxu0
    %v993 = vadd.f32 %v549, %v992
    %v994 = vpop.f32.mrf.mxu0
    %v995 = vadd.f32 %v551, %v994
    %996 = vmatmul.bf16.gmra.mxu0 %v391
    %v997 = vpop.f32.mrf.mxu0
    %v998 = vadd.f32 %v554, %v997
    %v999 = vpop.f32.mrf.mxu0
    %v1000 = vadd.f32 %v556, %v999
    %1001 = vmatmul.bf16.gmra.mxu0 %v394
    %v1002 = vpop.f32.mrf.mxu0
    %v1003 = vadd.f32 %v559, %v1002
    %v1004 = vpop.f32.mrf.mxu0
    %v1005 = vadd.f32 %v561, %v1004
    %1006 = vmatmul.bf16.gmra.mxu0 %v397
    %v1007 = vpop.f32.mrf.mxu0
    %v1008 = vadd.f32 %v564, %v1007
    %v1009 = vpop.f32.mrf.mxu0
    %v1010 = vadd.f32 %v566, %v1009
    %1011 = vmatmul.bf16.gmra.mxu0 %v400
    %v1012 = vpop.f32.mrf.mxu0
    %v1013 = vadd.f32 %v569, %v1012
    %v1014 = vpop.f32.mrf.mxu0
    %v1015 = vadd.f32 %v571, %v1014
    %1016 = vmatmul.bf16.gmra.mxu0 %v403
    %v1017 = vpop.f32.mrf.mxu0
    %v1018 = vadd.f32 %v574, %v1017
    %v1019 = vpop.f32.mrf.mxu0
    %v1020 = vadd.f32 %v576, %v1019
    %1021 = vmatmul.bf16.gmra.mxu0 %v406
    %v1022 = vpop.f32.mrf.mxu0
    %v1023 = vadd.f32 %v579, %v1022
    %v1024 = vpop.f32.mrf.mxu0
    %v1025 = vadd.f32 %v581, %v1024
    %1026 = vmatmul.bf16.gmra.mxu0 %v409
    %v1027 = vpop.f32.mrf.mxu0
    %v1028 = vadd.f32 %v584, %v1027
    %v1029 = vpop.f32.mrf.mxu0
    %v1030 = vadd.f32 %v586, %v1029
    %1031 = vmatmul.bf16.gmra.mxu0 %v412
    %v1032 = vpop.f32.mrf.mxu0
    %v1033 = vadd.f32 %v589, %v1032
    %v1034 = vpop.f32.mrf.mxu0
    %v1035 = vadd.f32 %v591, %v1034
    %1036 = vmatmul.bf16.gmra.mxu0 %v415
    %v1037 = vpop.f32.mrf.mxu0
    %v1038 = vadd.f32 %v594, %v1037
    %v1039 = vpop.f32.mrf.mxu0
    %v1040 = vadd.f32 %v596, %v1039
    %1041 = vdwg.mxu0
    %1042 = vmatpush.bf16.msra.mxu0 0
    %1043 = vmatpush.bf16.msra.mxu0 0
    %1044 = vmatpush.bf16.msra.mxu0 0
    %1045 = vmatpush.bf16.msra.mxu0 0
    %1046 = vmatpush.bf16.msra.mxu0 %v843
    %1047 = vmatpush.bf16.msra.mxu0 %v839
    %1048 = vmatpush.bf16.msra.mxu0 %v835
    %1049 = vmatpush.bf16.msra.mxu0 %v831
    %1050 = vmatmul.bf16.gmra.mxu0 %v862
    %v1051 = vpop.f32.mrf.mxu0
    %v1052 = vadd.f32 %v608, %v1051
    %v1053 = vpop.f32.mrf.mxu0
    %v1054 = vadd.f32 %v610, %v1053
    %1055 = vmatmul.bf16.gmra.mxu0 %v373
    %v1056 = vpop.f32.mrf.mxu0
    %v1057 = vadd.f32 %v613, %v1056
    %v1058 = vpop.f32.mrf.mxu0
    %v1059 = vadd.f32 %v615, %v1058
    %1060 = vmatmul.bf16.gmra.mxu0 %v376
    %v1061 = vpop.f32.mrf.mxu0
    %v1062 = vadd.f32 %v618, %v1061
    %v1063 = vpop.f32.mrf.mxu0
    %v1064 = vadd.f32 %v620, %v1063
    %1065 = vmatmul.bf16.gmra.mxu0 %v379
    %v1066 = vpop.f32.mrf.mxu0
    %v1067 = vadd.f32 %v623, %v1066
    %v1068 = vpop.f32.mrf.mxu0
    %v1069 = vadd.f32 %v625, %v1068
    %1070 = vmatmul.bf16.gmra.mxu0 %v382
    %v1071 = vpop.f32.mrf.mxu0
    %v1072 = vadd.f32 %v628, %v1071
    %v1073 = vpop.f32.mrf.mxu0
    %v1074 = vadd.f32 %v630, %v1073
    %1075 = vmatmul.bf16.gmra.mxu0 %v385
    %v1076 = vpop.f32.mrf.mxu0
    %v1077 = vadd.f32 %v633, %v1076
    %v1078 = vpop.f32.mrf.mxu0
    %v1079 = vadd.f32 %v635, %v1078
    %1080 = vmatmul.bf16.gmra.mxu0 %v388
    %v1081 = vpop.f32.mrf.mxu0
    %v1082 = vadd.f32 %v638, %v1081
    %v1083 = vpop.f32.mrf.mxu0
    %v1084 = vadd.f32 %v640, %v1083
    %1085 = vmatmul.bf16.gmra.mxu0 %v391
    %v1086 = vpop.f32.mrf.mxu0
    %v1087 = vadd.f32 %v643, %v1086
    %v1088 = vpop.f32.mrf.mxu0
    %v1089 = vadd.f32 %v645, %v1088
    %1090 = vmatmul.bf16.gmra.mxu0 %v394
    %v1091 = vpop.f32.mrf.mxu0
    %v1092 = vadd.f32 %v648, %v1091
    %v1093 = vpop.f32.mrf.mxu0
    %v1094 = vadd.f32 %v650, %v1093
    %1095 = vmatmul.bf16.gmra.mxu0 %v397
    %v1096 = vpop.f32.mrf.mxu0
    %v1097 = vadd.f32 %v653, %v1096
    %v1098 = vpop.f32.mrf.mxu0
    %v1099 = vadd.f32 %v655, %v1098
    %1100 = vmatmul.bf16.gmra.mxu0 %v400
    %v1101 = vpop.f32.mrf.mxu0
    %v1102 = vadd.f32 %v658, %v1101
    %v1103 = vpop.f32.mrf.mxu0
    %v1104 = vadd.f32 %v660, %v1103
    %1105 = vmatmul.bf16.gmra.mxu0 %v403
    %v1106 = vpop.f32.mrf.mxu0
    %v1107 = vadd.f32 %v663, %v1106
    %v1108 = vpop.f32.mrf.mxu0
    %v1109 = vadd.f32 %v665, %v1108
    %1110 = vmatmul.bf16.gmra.mxu0 %v406
    %v1111 = vpop.f32.mrf.mxu0
    %v1112 = vadd.f32 %v668, %v1111
    %v1113 = vpop.f32.mrf.mxu0
    %v1114 = vadd.f32 %v670, %v1113
    %1115 = vmatmul.bf16.gmra.mxu0 %v409
    %v1116 = vpop.f32.mrf.mxu0
    %v1117 = vadd.f32 %v673, %v1116
    %v1118 = vpop.f32.mrf.mxu0
    %v1119 = vadd.f32 %v675, %v1118
    %1120 = vmatmul.bf16.gmra.mxu0 %v412
    %v1121 = vpop.f32.mrf.mxu0
    %v1122 = vadd.f32 %v678, %v1121
    %v1123 = vpop.f32.mrf.mxu0
    %v1124 = vadd.f32 %v680, %v1123
    %1125 = vmatmul.bf16.gmra.mxu0 %v415
    %v1126 = vpop.f32.mrf.mxu0
    %v1127 = vadd.f32 %v683, %v1126
    %v1128 = vpop.f32.mrf.mxu0
    %v1129 = vadd.f32 %v685, %v1128
    %1130 = vdwg.mxu0
    %1131 = vmatpush.bf16.msra.mxu0 0
    %1132 = vmatpush.bf16.msra.mxu0 0
    %1133 = vmatpush.bf16.msra.mxu0 0
    %1134 = vmatpush.bf16.msra.mxu0 0
    %1135 = vmatpush.bf16.msra.mxu0 %v844
    %1136 = vmatpush.bf16.msra.mxu0 %v840
    %1137 = vmatpush.bf16.msra.mxu0 %v836
    %1138 = vmatpush.bf16.msra.mxu0 %v832
    %1139 = vmatmul.bf16.gmra.mxu0 %v862
    %v1140 = vpop.f32.mrf.mxu0
    %v1141 = vadd.f32 %v697, %v1140
    %v1142 = vpop.f32.mrf.mxu0
    %v1143 = vadd.f32 %v699, %v1142
    %1144 = vmatmul.bf16.gmra.mxu0 %v373
    %v1145 = vpop.f32.mrf.mxu0
    %v1146 = vadd.f32 %v702, %v1145
    %v1147 = vpop.f32.mrf.mxu0
    %v1148 = vadd.f32 %v704, %v1147
    %1149 = vmatmul.bf16.gmra.mxu0 %v376
    %v1150 = vpop.f32.mrf.mxu0
    %v1151 = vadd.f32 %v707, %v1150
    %v1152 = vpop.f32.mrf.mxu0
    %v1153 = vadd.f32 %v709, %v1152
    %1154 = vmatmul.bf16.gmra.mxu0 %v379
    %v1155 = vpop.f32.mrf.mxu0
    %v1156 = vadd.f32 %v712, %v1155
    %v1157 = vpop.f32.mrf.mxu0
    %v1158 = vadd.f32 %v714, %v1157
    %1159 = vmatmul.bf16.gmra.mxu0 %v382
    %v1160 = vpop.f32.mrf.mxu0
    %v1161 = vadd.f32 %v717, %v1160
    %v1162 = vpop.f32.mrf.mxu0
    %v1163 = vadd.f32 %v719, %v1162
    %1164 = vmatmul.bf16.gmra.mxu0 %v385
    %v1165 = vpop.f32.mrf.mxu0
    %v1166 = vadd.f32 %v722, %v1165
    %v1167 = vpop.f32.mrf.mxu0
    %v1168 = vadd.f32 %v724, %v1167
    %1169 = vmatmul.bf16.gmra.mxu0 %v388
    %v1170 = vpop.f32.mrf.mxu0
    %v1171 = vadd.f32 %v727, %v1170
    %v1172 = vpop.f32.mrf.mxu0
    %v1173 = vadd.f32 %v729, %v1172
    %1174 = vmatmul.bf16.gmra.mxu0 %v391
    %v1175 = vpop.f32.mrf.mxu0
    %v1176 = vadd.f32 %v732, %v1175
    %v1177 = vpop.f32.mrf.mxu0
    %v1178 = vadd.f32 %v734, %v1177
    %1179 = vmatmul.bf16.gmra.mxu0 %v394
    %v1180 = vpop.f32.mrf.mxu0
    %v1181 = vadd.f32 %v737, %v1180
    %v1182 = vpop.f32.mrf.mxu0
    %v1183 = vadd.f32 %v739, %v1182
    %1184 = vmatmul.bf16.gmra.mxu0 %v397
    %v1185 = vpop.f32.mrf.mxu0
    %v1186 = vadd.f32 %v742, %v1185
    %v1187 = vpop.f32.mrf.mxu0
    %v1188 = vadd.f32 %v744, %v1187
    %1189 = vmatmul.bf16.gmra.mxu0 %v400
    %v1190 = vpop.f32.mrf.mxu0
    %v1191 = vadd.f32 %v747, %v1190
    %v1192 = vpop.f32.mrf.mxu0
    %v1193 = vadd.f32 %v749, %v1192
    %1194 = vmatmul.bf16.gmra.mxu0 %v403
    %v1195 = vpop.f32.mrf.mxu0
    %v1196 = vadd.f32 %v752, %v1195
    %v1197 = vpop.f32.mrf.mxu0
    %v1198 = vadd.f32 %v754, %v1197
    %1199 = vmatmul.bf16.gmra.mxu0 %v406
    %v1200 = vpop.f32.mrf.mxu0
    %v1201 = vadd.f32 %v757, %v1200
    %v1202 = vpop.f32.mrf.mxu0
    %v1203 = vadd.f32 %v759, %v1202
    %1204 = vmatmul.bf16.gmra.mxu0 %v409
    %v1205 = vpop.f32.mrf.mxu0
    %v1206 = vadd.f32 %v762, %v1205
    %v1207 = vpop.f32.mrf.mxu0
    %v1208 = vadd.f32 %v764, %v1207
    %1209 = vmatmul.bf16.gmra.mxu0 %v412
    %v1210 = vpop.f32.mrf.mxu0
    %v1211 = vadd.f32 %v767, %v1210
    %v1212 = vpop.f32.mrf.mxu0
    %v1213 = vadd.f32 %v769, %v1212
    %1214 = vmatmul.bf16.gmra.mxu0 %v415
    %v1215 = vpop.f32.mrf.mxu0
    %v1216 = vadd.f32 %v772, %v1215
    %v1217 = vpop.f32.mrf.mxu0
    %v1218 = vadd.f32 %v774, %v1217
    %1219 = vdwg.mxu0
    %v1220 = vld [vmem:[#allocation2 + $0x10] sm:$0xf]
    %v1221 = vld [vmem:[#allocation2 + $0x14] sm:$0xf]
    %v1222 = vld [vmem:[#allocation2 + $0x18] sm:$0xf]
    %v1223 = vld [vmem:[#allocation2 + $0x1c] sm:$0xf]
    %v1224 = vld [vmem:[#allocation2 + $0x20] sm:$0xf]
    %v1225 = vld [vmem:[#allocation2 + $0x24] sm:$0xf]
    %v1226 = vld [vmem:[#allocation2 + $0x28] sm:$0xf]
    %v1227 = vld [vmem:[#allocation2 + $0x2c] sm:$0xf]
    %v1228 = vld [vmem:[#allocation2 + $0x30] sm:$0xf]
    %v1229 = vld [vmem:[#allocation2 + $0x34] sm:$0xf]
    %v1230 = vld [vmem:[#allocation2 + $0x38] sm:$0xf]
    %v1231 = vld [vmem:[#allocation2 + $0x3c] sm:$0xf]
    %v1232 = vld [vmem:[#allocation2 + $0x40] sm:$0xf]
    %v1233 = vld [vmem:[#allocation2 + $0x44] sm:$0xf]
    %v1234 = vld [vmem:[#allocation2 + $0x48] sm:$0xf]
    %v1235 = vld [vmem:[#allocation2 + $0x4c] sm:$0xf]
    %v1236 = vld [vmem:[#allocation2 + $0x50] sm:$0xf]
    %v1237 = vld [vmem:[#allocation2 + $0x54] sm:$0xf]
    %v1238 = vld [vmem:[#allocation2 + $0x58] sm:$0xf]
    %v1239 = vld [vmem:[#allocation2 + $0x5c] sm:$0xf]
    %v1240 = vld [vmem:[#allocation2 + $0x60] sm:$0xf]
    %v1241 = vld [vmem:[#allocation2 + $0x64] sm:$0xf]
    %v1242 = vld [vmem:[#allocation2 + $0x68] sm:$0xf]
    %v1243 = vld [vmem:[#allocation2 + $0x6c] sm:$0xf]
    %v1244 = vld [vmem:[#allocation2 + $0x70] sm:$0xf]
    %v1245 = vld [vmem:[#allocation2 + $0x74] sm:$0xf]
    %v1246 = vld [vmem:[#allocation2 + $0x78] sm:$0xf]
    %v1247 = vld [vmem:[#allocation2 + $0x7c] sm:$0xf]
    %v1248 = vld [vmem:[#allocation2 + $0x80] sm:$0xf]
    %v1249 = vld [vmem:[#allocation2 + $0x84] sm:$0xf]
    %v1250 = vld [vmem:[#allocation2 + $0x88] sm:$0xf]
    %v1251 = vld [vmem:[#allocation2 + $0x8c] sm:$0xf]
    %s1252 = scalar_lea.vmem [#allocation5], 256
    %v1253 = vld [vmem:[%s1252] sm:$0xff]
    %v1254 = vld [vmem:[%s1252 + $0x8] sm:$0xff]
    %v1255 = vld [vmem:[%s1252 + $0x10] sm:$0xff]
    %v1256 = vld [vmem:[%s1252 + $0x18] sm:$0xff]
    %v1257 = vld [vmem:[%s1252 + $0x20] sm:$0xff]
    %v1258 = vld [vmem:[%s1252 + $0x28] sm:$0xff]
    %v1259 = vld [vmem:[%s1252 + $0x30] sm:$0xff]
    %v1260 = vld [vmem:[%s1252 + $0x38] sm:$0xff]
    %v1261 = vld [vmem:[%s1252 + $0x40] sm:$0xff]
    %v1262 = vld [vmem:[%s1252 + $0x48] sm:$0xff]
    %v1263 = vld [vmem:[%s1252 + $0x50] sm:$0xff]
    %v1264 = vld [vmem:[%s1252 + $0x58] sm:$0xff]
    %v1265 = vld [vmem:[%s1252 + $0x60] sm:$0xff]
    %v1266 = vld [vmem:[%s1252 + $0x68] sm:$0xff]
    %v1267 = vld [vmem:[%s1252 + $0x70] sm:$0xff]
    %v1268 = vld [vmem:[%s1252 + $0x78] sm:$0xff]
    %v1301 = vunpack.c.l.b16 %v1220
    %v1302 = vunpack.c.l.b16 %v1221
    %v1303 = vunpack.c.l.b16 %v1222
    %v1304 = vunpack.c.l.b16 %v1223
    %v1305 = vunpack.c.l.b16 %v1224
    %v1306 = vunpack.c.l.b16 %v1225
    %v1307 = vunpack.c.l.b16 %v1226
    %v1308 = vunpack.c.l.b16 %v1227
    %v1309 = vunpack.c.l.b16 %v1228
    %v1310 = vunpack.c.l.b16 %v1229
    %v1311 = vunpack.c.l.b16 %v1230
    %v1312 = vunpack.c.l.b16 %v1231
    %v1313 = vunpack.c.l.b16 %v1232
    %v1314 = vunpack.c.l.b16 %v1233
    %v1315 = vunpack.c.l.b16 %v1234
    %v1316 = vunpack.c.l.b16 %v1235
    %v1317 = vunpack.c.l.b16 %v1236
    %v1318 = vunpack.c.l.b16 %v1237
    %v1319 = vunpack.c.l.b16 %v1238
    %v1320 = vunpack.c.l.b16 %v1239
    %v1321 = vunpack.c.l.b16 %v1240
    %v1322 = vunpack.c.l.b16 %v1241
    %v1323 = vunpack.c.l.b16 %v1242
    %v1324 = vunpack.c.l.b16 %v1243
    %v1325 = vunpack.c.l.b16 %v1244
    %v1326 = vunpack.c.l.b16 %v1245
    %v1327 = vunpack.c.l.b16 %v1246
    %v1328 = vunpack.c.l.b16 %v1247
    %v1329 = vunpack.c.l.b16 %v1248
    %v1330 = vunpack.c.l.b16 %v1249
    %v1331 = vunpack.c.l.b16 %v1250
    %v1332 = vunpack.c.l.b16 %v1251
    %v1333 = vpack.c.b16 %v1302, %v1301
    %v1334 = vpack.c.b16 %v1304, %v1303
    %v1335 = vpack.c.b16 %v1306, %v1305
    %v1336 = vpack.c.b16 %v1308, %v1307
    %v1337 = vpack.c.b16 %v1310, %v1309
    %v1338 = vpack.c.b16 %v1312, %v1311
    %v1339 = vpack.c.b16 %v1314, %v1313
    %v1340 = vpack.c.b16 %v1316, %v1315
    %v1341 = vpack.c.b16 %v1318, %v1317
    %v1342 = vpack.c.b16 %v1320, %v1319
    %v1343 = vpack.c.b16 %v1322, %v1321
    %v1344 = vpack.c.b16 %v1324, %v1323
    %v1345 = vpack.c.b16 %v1326, %v1325
    %v1346 = vpack.c.b16 %v1328, %v1327
    %v1347 = vpack.c.b16 %v1330, %v1329
    %v1348 = vpack.c.b16 %v1332, %v1331
    %v1365 = vunpack.c.l.b16 %v1253
    %v1366 = vunpack.c.h.b16 %v1253
    %v1367 = vunpack.c.l.b16 %v1254
    %v1368 = vunpack.c.h.b16 %v1254
    %v1369 = vunpack.c.l.b16 %v1255
    %v1370 = vunpack.c.h.b16 %v1255
    %v1371 = vunpack.c.l.b16 %v1256
    %v1372 = vunpack.c.h.b16 %v1256
    %v1373 = vunpack.c.l.b16 %v1257
    %v1374 = vunpack.c.h.b16 %v1257
    %v1375 = vunpack.c.l.b16 %v1258
    %v1376 = vunpack.c.h.b16 %v1258
    %v1377 = vunpack.c.l.b16 %v1259
    %v1378 = vunpack.c.h.b16 %v1259
    %v1379 = vunpack.c.l.b16 %v1260
    %v1380 = vunpack.c.h.b16 %v1260
    %v1381 = vunpack.c.l.b16 %v1261
    %v1382 = vunpack.c.h.b16 %v1261
    %v1383 = vunpack.c.l.b16 %v1262
    %v1384 = vunpack.c.h.b16 %v1262
    %v1385 = vunpack.c.l.b16 %v1263
    %v1386 = vunpack.c.h.b16 %v1263
    %v1387 = vunpack.c.l.b16 %v1264
    %v1388 = vunpack.c.h.b16 %v1264
    %v1389 = vunpack.c.l.b16 %v1265
    %v1390 = vunpack.c.h.b16 %v1265
    %v1391 = vunpack.c.l.b16 %v1266
    %v1392 = vunpack.c.h.b16 %v1266
    %v1393 = vunpack.c.l.b16 %v1267
    %v1394 = vunpack.c.h.b16 %v1267
    %v1395 = vunpack.c.l.b16 %v1268
    %v1396 = vunpack.c.h.b16 %v1268
    %v1397 = vpack.c.b16 %v1369, %v1365
    %v1398 = vpack.c.b16 %v1370, %v1366
    %v1399 = vpack.c.b16 %v1371, %v1367
    %v1400 = vpack.c.b16 %v1372, %v1368
    %v1401 = vpack.c.b16 %v1377, %v1373
    %v1402 = vpack.c.b16 %v1378, %v1374
    %v1403 = vpack.c.b16 %v1379, %v1375
    %v1404 = vpack.c.b16 %v1380, %v1376
    %v1405 = vpack.c.b16 %v1385, %v1381
    %v1406 = vpack.c.b16 %v1386, %v1382
    %v1407 = vpack.c.b16 %v1387, %v1383
    %v1408 = vpack.c.b16 %v1388, %v1384
    %v1409 = vpack.c.b16 %v1393, %v1389
    %v1410 = vpack.c.b16 %v1394, %v1390
    %v1411 = vpack.c.b16 %v1395, %v1391
    %v1412 = vpack.c.b16 %v1396, %v1392
    %v1430 = vsel %vm371, %v1333, 0
    %v1433 = vsel %vm371, %v1334, 0
    %v1436 = vsel %vm371, %v1335, 0
    %v1439 = vsel %vm371, %v1336, 0
    %v1442 = vsel %vm371, %v1337, 0
    %v1445 = vsel %vm371, %v1338, 0
    %v1448 = vsel %vm371, %v1339, 0
    %v1451 = vsel %vm371, %v1340, 0
    %v1454 = vsel %vm371, %v1341, 0
    %v1457 = vsel %vm371, %v1342, 0
    %v1460 = vsel %vm371, %v1343, 0
    %v1463 = vsel %vm371, %v1344, 0
    %v1466 = vsel %vm371, %v1345, 0
    %v1469 = vsel %vm371, %v1346, 0
    %v1472 = vsel %vm371, %v1347, 0
    %v1475 = vsel %vm371, %v1348, 0
    %1477 = vmatpush.bf16.msra.mxu0 0
    %1478 = vmatpush.bf16.msra.mxu0 0
    %1479 = vmatpush.bf16.msra.mxu0 0
    %1480 = vmatpush.bf16.msra.mxu0 0
    %1481 = vmatpush.bf16.msra.mxu0 %v1409
    %1482 = vmatpush.bf16.msra.mxu0 %v1405
    %1483 = vmatpush.bf16.msra.mxu0 %v1401
    %1484 = vmatpush.bf16.msra.mxu0 %v1397
    %1485 = vmatmul.bf16.gmra.mxu0 %v1430
    %v1486 = vpop.f32.mrf.mxu0
    %v1487 = vadd.f32 0.0, %v1486
    %v1488 = vpop.f32.mrf.mxu0
    %v1489 = vadd.f32 0.0, %v1488
    %1490 = vmatmul.bf16.gmra.mxu0 %v1433
    %v1491 = vpop.f32.mrf.mxu0
    %v1492 = vadd.f32 0.0, %v1491
    %v1493 = vpop.f32.mrf.mxu0
    %v1494 = vadd.f32 0.0, %v1493
    %1495 = vmatmul.bf16.gmra.mxu0 %v1436
    %v1496 = vpop.f32.mrf.mxu0
    %v1497 = vadd.f32 0.0, %v1496
    %v1498 = vpop.f32.mrf.mxu0
    %v1499 = vadd.f32 0.0, %v1498
    %1500 = vmatmul.bf16.gmra.mxu0 %v1439
    %v1501 = vpop.f32.mrf.mxu0
    %v1502 = vadd.f32 0.0, %v1501
    %v1503 = vpop.f32.mrf.mxu0
    %v1504 = vadd.f32 0.0, %v1503
    %1505 = vmatmul.bf16.gmra.mxu0 %v1442
    %v1506 = vpop.f32.mrf.mxu0
    %v1507 = vadd.f32 0.0, %v1506
    %v1508 = vpop.f32.mrf.mxu0
    %v1509 = vadd.f32 0.0, %v1508
    %1510 = vmatmul.bf16.gmra.mxu0 %v1445
    %v1511 = vpop.f32.mrf.mxu0
    %v1512 = vadd.f32 0.0, %v1511
    %v1513 = vpop.f32.mrf.mxu0
    %v1514 = vadd.f32 0.0, %v1513
    %1515 = vmatmul.bf16.gmra.mxu0 %v1448
    %v1516 = vpop.f32.mrf.mxu0
    %v1517 = vadd.f32 0.0, %v1516
    %v1518 = vpop.f32.mrf.mxu0
    %v1519 = vadd.f32 0.0, %v1518
    %1520 = vmatmul.bf16.gmra.mxu0 %v1451
    %v1521 = vpop.f32.mrf.mxu0
    %v1522 = vadd.f32 0.0, %v1521
    %v1523 = vpop.f32.mrf.mxu0
    %v1524 = vadd.f32 0.0, %v1523
    %1525 = vmatmul.bf16.gmra.mxu0 %v1454
    %v1526 = vpop.f32.mrf.mxu0
    %v1527 = vadd.f32 0.0, %v1526
    %v1528 = vpop.f32.mrf.mxu0
    %v1529 = vadd.f32 0.0, %v1528
    %1530 = vmatmul.bf16.gmra.mxu0 %v1457
    %v1531 = vpop.f32.mrf.mxu0
    %v1532 = vadd.f32 0.0, %v1531
    %v1533 = vpop.f32.mrf.mxu0
    %v1534 = vadd.f32 0.0, %v1533
    %1535 = vmatmul.bf16.gmra.mxu0 %v1460
    %v1536 = vpop.f32.mrf.mxu0
    %v1537 = vadd.f32 0.0, %v1536
    %v1538 = vpop.f32.mrf.mxu0
    %v1539 = vadd.f32 0.0, %v1538
    %1540 = vmatmul.bf16.gmra.mxu0 %v1463
    %v1541 = vpop.f32.mrf.mxu0
    %v1542 = vadd.f32 0.0, %v1541
    %v1543 = vpop.f32.mrf.mxu0
    %v1544 = vadd.f32 0.0, %v1543
    %1545 = vmatmul.bf16.gmra.mxu0 %v1466
    %v1546 = vpop.f32.mrf.mxu0
    %v1547 = vadd.f32 0.0, %v1546
    %v1548 = vpop.f32.mrf.mxu0
    %v1549 = vadd.f32 0.0, %v1548
    %1550 = vmatmul.bf16.gmra.mxu0 %v1469
    %v1551 = vpop.f32.mrf.mxu0
    %v1552 = vadd.f32 0.0, %v1551
    %v1553 = vpop.f32.mrf.mxu0
    %v1554 = vadd.f32 0.0, %v1553
    %1555 = vmatmul.bf16.gmra.mxu0 %v1472
    %v1556 = vpop.f32.mrf.mxu0
    %v1557 = vadd.f32 0.0, %v1556
    %v1558 = vpop.f32.mrf.mxu0
    %v1559 = vadd.f32 0.0, %v1558
    %1560 = vmatmul.bf16.gmra.mxu0 %v1475
    %v1561 = vpop.f32.mrf.mxu0
    %v1562 = vadd.f32 0.0, %v1561
    %v1563 = vpop.f32.mrf.mxu0
    %v1564 = vadd.f32 0.0, %v1563
    %1565 = vdwg.mxu0
    %1566 = vmatpush.bf16.msra.mxu0 0
    %1567 = vmatpush.bf16.msra.mxu0 0
    %1568 = vmatpush.bf16.msra.mxu0 0
    %1569 = vmatpush.bf16.msra.mxu0 0
    %1570 = vmatpush.bf16.msra.mxu0 %v1410
    %1571 = vmatpush.bf16.msra.mxu0 %v1406
    %1572 = vmatpush.bf16.msra.mxu0 %v1402
    %1573 = vmatpush.bf16.msra.mxu0 %v1398
    %1574 = vmatmul.bf16.gmra.mxu0 %v1430
    %v1575 = vpop.f32.mrf.mxu0
    %v1576 = vadd.f32 0.0, %v1575
    %v1577 = vpop.f32.mrf.mxu0
    %v1578 = vadd.f32 0.0, %v1577
    %1579 = vmatmul.bf16.gmra.mxu0 %v1433
    %v1580 = vpop.f32.mrf.mxu0
    %v1581 = vadd.f32 0.0, %v1580
    %v1582 = vpop.f32.mrf.mxu0
    %v1583 = vadd.f32 0.0, %v1582
    %1584 = vmatmul.bf16.gmra.mxu0 %v1436
    %v1585 = vpop.f32.mrf.mxu0
    %v1586 = vadd.f32 0.0, %v1585
    %v1587 = vpop.f32.mrf.mxu0
    %v1588 = vadd.f32 0.0, %v1587
    %1589 = vmatmul.bf16.gmra.mxu0 %v1439
    %v1590 = vpop.f32.mrf.mxu0
    %v1591 = vadd.f32 0.0, %v1590
    %v1592 = vpop.f32.mrf.mxu0
    %v1593 = vadd.f32 0.0, %v1592
    %1594 = vmatmul.bf16.gmra.mxu0 %v1442
    %v1595 = vpop.f32.mrf.mxu0
    %v1596 = vadd.f32 0.0, %v1595
    %v1597 = vpop.f32.mrf.mxu0
    %v1598 = vadd.f32 0.0, %v1597
    %1599 = vmatmul.bf16.gmra.mxu0 %v1445
    %v1600 = vpop.f32.mrf.mxu0
    %v1601 = vadd.f32 0.0, %v1600
    %v1602 = vpop.f32.mrf.mxu0
    %v1603 = vadd.f32 0.0, %v1602
    %1604 = vmatmul.bf16.gmra.mxu0 %v1448
    %v1605 = vpop.f32.mrf.mxu0
    %v1606 = vadd.f32 0.0, %v1605
    %v1607 = vpop.f32.mrf.mxu0
    %v1608 = vadd.f32 0.0, %v1607
    %1609 = vmatmul.bf16.gmra.mxu0 %v1451
    %v1610 = vpop.f32.mrf.mxu0
    %v1611 = vadd.f32 0.0, %v1610
    %v1612 = vpop.f32.mrf.mxu0
    %v1613 = vadd.f32 0.0, %v1612
    %1614 = vmatmul.bf16.gmra.mxu0 %v1454
    %v1615 = vpop.f32.mrf.mxu0
    %v1616 = vadd.f32 0.0, %v1615
    %v1617 = vpop.f32.mrf.mxu0
    %v1618 = vadd.f32 0.0, %v1617
    %1619 = vmatmul.bf16.gmra.mxu0 %v1457
    %v1620 = vpop.f32.mrf.mxu0
    %v1621 = vadd.f32 0.0, %v1620
    %v1622 = vpop.f32.mrf.mxu0
    %v1623 = vadd.f32 0.0, %v1622
    %1624 = vmatmul.bf16.gmra.mxu0 %v1460
    %v1625 = vpop.f32.mrf.mxu0
    %v1626 = vadd.f32 0.0, %v1625
    %v1627 = vpop.f32.mrf.mxu0
    %v1628 = vadd.f32 0.0, %v1627
    %1629 = vmatmul.bf16.gmra.mxu0 %v1463
    %v1630 = vpop.f32.mrf.mxu0
    %v1631 = vadd.f32 0.0, %v1630
    %v1632 = vpop.f32.mrf.mxu0
    %v1633 = vadd.f32 0.0, %v1632
    %1634 = vmatmul.bf16.gmra.mxu0 %v1466
    %v1635 = vpop.f32.mrf.mxu0
    %v1636 = vadd.f32 0.0, %v1635
    %v1637 = vpop.f32.mrf.mxu0
    %v1638 = vadd.f32 0.0, %v1637
    %1639 = vmatmul.bf16.gmra.mxu0 %v1469
    %v1640 = vpop.f32.mrf.mxu0
    %v1641 = vadd.f32 0.0, %v1640
    %v1642 = vpop.f32.mrf.mxu0
    %v1643 = vadd.f32 0.0, %v1642
    %1644 = vmatmul.bf16.gmra.mxu0 %v1472
    %v1645 = vpop.f32.mrf.mxu0
    %v1646 = vadd.f32 0.0, %v1645
    %v1647 = vpop.f32.mrf.mxu0
    %v1648 = vadd.f32 0.0, %v1647
    %1649 = vmatmul.bf16.gmra.mxu0 %v1475
    %v1650 = vpop.f32.mrf.mxu0
    %v1651 = vadd.f32 0.0, %v1650
    %v1652 = vpop.f32.mrf.mxu0
    %v1653 = vadd.f32 0.0, %v1652
    %1654 = vdwg.mxu0
    %1655 = vmatpush.bf16.msra.mxu0 0
    %1656 = vmatpush.bf16.msra.mxu0 0
    %1657 = vmatpush.bf16.msra.mxu0 0
    %1658 = vmatpush.bf16.msra.mxu0 0
    %1659 = vmatpush.bf16.msra.mxu0 %v1411
    %1660 = vmatpush.bf16.msra.mxu0 %v1407
    %1661 = vmatpush.bf16.msra.mxu0 %v1403
    %1662 = vmatpush.bf16.msra.mxu0 %v1399
    %1663 = vmatmul.bf16.gmra.mxu0 %v1430
    %v1664 = vpop.f32.mrf.mxu0
    %v1665 = vadd.f32 0.0, %v1664
    %v1666 = vpop.f32.mrf.mxu0
    %v1667 = vadd.f32 0.0, %v1666
    %1668 = vmatmul.bf16.gmra.mxu0 %v1433
    %v1669 = vpop.f32.mrf.mxu0
    %v1670 = vadd.f32 0.0, %v1669
    %v1671 = vpop.f32.mrf.mxu0
    %v1672 = vadd.f32 0.0, %v1671
    %1673 = vmatmul.bf16.gmra.mxu0 %v1436
    %v1674 = vpop.f32.mrf.mxu0
    %v1675 = vadd.f32 0.0, %v1674
    %v1676 = vpop.f32.mrf.mxu0
    %v1677 = vadd.f32 0.0, %v1676
    %1678 = vmatmul.bf16.gmra.mxu0 %v1439
    %v1679 = vpop.f32.mrf.mxu0
    %v1680 = vadd.f32 0.0, %v1679
    %v1681 = vpop.f32.mrf.mxu0
    %v1682 = vadd.f32 0.0, %v1681
    %1683 = vmatmul.bf16.gmra.mxu0 %v1442
    %v1684 = vpop.f32.mrf.mxu0
    %v1685 = vadd.f32 0.0, %v1684
    %v1686 = vpop.f32.mrf.mxu0
    %v1687 = vadd.f32 0.0, %v1686
    %1688 = vmatmul.bf16.gmra.mxu0 %v1445
    %v1689 = vpop.f32.mrf.mxu0
    %v1690 = vadd.f32 0.0, %v1689
    %v1691 = vpop.f32.mrf.mxu0
    %v1692 = vadd.f32 0.0, %v1691
    %1693 = vmatmul.bf16.gmra.mxu0 %v1448
    %v1694 = vpop.f32.mrf.mxu0
    %v1695 = vadd.f32 0.0, %v1694
    %v1696 = vpop.f32.mrf.mxu0
    %v1697 = vadd.f32 0.0, %v1696
    %1698 = vmatmul.bf16.gmra.mxu0 %v1451
    %v1699 = vpop.f32.mrf.mxu0
    %v1700 = vadd.f32 0.0, %v1699
    %v1701 = vpop.f32.mrf.mxu0
    %v1702 = vadd.f32 0.0, %v1701
    %1703 = vmatmul.bf16.gmra.mxu0 %v1454
    %v1704 = vpop.f32.mrf.mxu0
    %v1705 = vadd.f32 0.0, %v1704
    %v1706 = vpop.f32.mrf.mxu0
    %v1707 = vadd.f32 0.0, %v1706
    %1708 = vmatmul.bf16.gmra.mxu0 %v1457
    %v1709 = vpop.f32.mrf.mxu0
    %v1710 = vadd.f32 0.0, %v1709
    %v1711 = vpop.f32.mrf.mxu0
    %v1712 = vadd.f32 0.0, %v1711
    %1713 = vmatmul.bf16.gmra.mxu0 %v1460
    %v1714 = vpop.f32.mrf.mxu0
    %v1715 = vadd.f32 0.0, %v1714
    %v1716 = vpop.f32.mrf.mxu0
    %v1717 = vadd.f32 0.0, %v1716
    %1718 = vmatmul.bf16.gmra.mxu0 %v1463
    %v1719 = vpop.f32.mrf.mxu0
    %v1720 = vadd.f32 0.0, %v1719
    %v1721 = vpop.f32.mrf.mxu0
    %v1722 = vadd.f32 0.0, %v1721
    %1723 = vmatmul.bf16.gmra.mxu0 %v1466
    %v1724 = vpop.f32.mrf.mxu0
    %v1725 = vadd.f32 0.0, %v1724
    %v1726 = vpop.f32.mrf.mxu0
    %v1727 = vadd.f32 0.0, %v1726
    %1728 = vmatmul.bf16.gmra.mxu0 %v1469
    %v1729 = vpop.f32.mrf.mxu0
    %v1730 = vadd.f32 0.0, %v1729
    %v1731 = vpop.f32.mrf.mxu0
    %v1732 = vadd.f32 0.0, %v1731
    %1733 = vmatmul.bf16.gmra.mxu0 %v1472
    %v1734 = vpop.f32.mrf.mxu0
    %v1735 = vadd.f32 0.0, %v1734
    %v1736 = vpop.f32.mrf.mxu0
    %v1737 = vadd.f32 0.0, %v1736
    %1738 = vmatmul.bf16.gmra.mxu0 %v1475
    %v1739 = vpop.f32.mrf.mxu0
    %v1740 = vadd.f32 0.0, %v1739
    %v1741 = vpop.f32.mrf.mxu0
    %v1742 = vadd.f32 0.0, %v1741
    %1743 = vdwg.mxu0
    %1744 = vmatpush.bf16.msra.mxu0 0
    %1745 = vmatpush.bf16.msra.mxu0 0
    %1746 = vmatpush.bf16.msra.mxu0 0
    %1747 = vmatpush.bf16.msra.mxu0 0
    %1748 = vmatpush.bf16.msra.mxu0 %v1412
    %1749 = vmatpush.bf16.msra.mxu0 %v1408
    %1750 = vmatpush.bf16.msra.mxu0 %v1404
    %1751 = vmatpush.bf16.msra.mxu0 %v1400
    %1752 = vmatmul.bf16.gmra.mxu0 %v1430
    %v1753 = vpop.f32.mrf.mxu0
    %v1754 = vadd.f32 0.0, %v1753
    %v1755 = vpop.f32.mrf.mxu0
    %v1756 = vadd.f32 0.0, %v1755
    %1757 = vmatmul.bf16.gmra.mxu0 %v1433
    %v1758 = vpop.f32.mrf.mxu0
    %v1759 = vadd.f32 0.0, %v1758
    %v1760 = vpop.f32.mrf.mxu0
    %v1761 = vadd.f32 0.0, %v1760
    %1762 = vmatmul.bf16.gmra.mxu0 %v1436
    %v1763 = vpop.f32.mrf.mxu0
    %v1764 = vadd.f32 0.0, %v1763
    %v1765 = vpop.f32.mrf.mxu0
    %v1766 = vadd.f32 0.0, %v1765
    %1767 = vmatmul.bf16.gmra.mxu0 %v1439
    %v1768 = vpop.f32.mrf.mxu0
    %v1769 = vadd.f32 0.0, %v1768
    %v1770 = vpop.f32.mrf.mxu0
    %v1771 = vadd.f32 0.0, %v1770
    %1772 = vmatmul.bf16.gmra.mxu0 %v1442
    %v1773 = vpop.f32.mrf.mxu0
    %v1774 = vadd.f32 0.0, %v1773
    %v1775 = vpop.f32.mrf.mxu0
    %v1776 = vadd.f32 0.0, %v1775
    %1777 = vmatmul.bf16.gmra.mxu0 %v1445
    %v1778 = vpop.f32.mrf.mxu0
    %v1779 = vadd.f32 0.0, %v1778
    %v1780 = vpop.f32.mrf.mxu0
    %v1781 = vadd.f32 0.0, %v1780
    %1782 = vmatmul.bf16.gmra.mxu0 %v1448
    %v1783 = vpop.f32.mrf.mxu0
    %v1784 = vadd.f32 0.0, %v1783
    %v1785 = vpop.f32.mrf.mxu0
    %v1786 = vadd.f32 0.0, %v1785
    %1787 = vmatmul.bf16.gmra.mxu0 %v1451
    %v1788 = vpop.f32.mrf.mxu0
    %v1789 = vadd.f32 0.0, %v1788
    %v1790 = vpop.f32.mrf.mxu0
    %v1791 = vadd.f32 0.0, %v1790
    %1792 = vmatmul.bf16.gmra.mxu0 %v1454
    %v1793 = vpop.f32.mrf.mxu0
    %v1794 = vadd.f32 0.0, %v1793
    %v1795 = vpop.f32.mrf.mxu0
    %v1796 = vadd.f32 0.0, %v1795
    %1797 = vmatmul.bf16.gmra.mxu0 %v1457
    %v1798 = vpop.f32.mrf.mxu0
    %v1799 = vadd.f32 0.0, %v1798
    %v1800 = vpop.f32.mrf.mxu0
    %v1801 = vadd.f32 0.0, %v1800
    %1802 = vmatmul.bf16.gmra.mxu0 %v1460
    %v1803 = vpop.f32.mrf.mxu0
    %v1804 = vadd.f32 0.0, %v1803
    %v1805 = vpop.f32.mrf.mxu0
    %v1806 = vadd.f32 0.0, %v1805
    %1807 = vmatmul.bf16.gmra.mxu0 %v1463
    %v1808 = vpop.f32.mrf.mxu0
    %v1809 = vadd.f32 0.0, %v1808
    %v1810 = vpop.f32.mrf.mxu0
    %v1811 = vadd.f32 0.0, %v1810
    %1812 = vmatmul.bf16.gmra.mxu0 %v1466
    %v1813 = vpop.f32.mrf.mxu0
    %v1814 = vadd.f32 0.0, %v1813
    %v1815 = vpop.f32.mrf.mxu0
    %v1816 = vadd.f32 0.0, %v1815
    %1817 = vmatmul.bf16.gmra.mxu0 %v1469
    %v1818 = vpop.f32.mrf.mxu0
    %v1819 = vadd.f32 0.0, %v1818
    %v1820 = vpop.f32.mrf.mxu0
    %v1821 = vadd.f32 0.0, %v1820
    %1822 = vmatmul.bf16.gmra.mxu0 %v1472
    %v1823 = vpop.f32.mrf.mxu0
    %v1824 = vadd.f32 0.0, %v1823
    %v1825 = vpop.f32.mrf.mxu0
    %v1826 = vadd.f32 0.0, %v1825
    %1827 = vmatmul.bf16.gmra.mxu0 %v1475
    %v1828 = vpop.f32.mrf.mxu0
    %v1829 = vadd.f32 0.0, %v1828
    %v1830 = vpop.f32.mrf.mxu0
    %v1831 = vadd.f32 0.0, %v1830
    %1832 = vdwg.mxu0
    %v1833 = vadd.f32 %v874, %v1487
    %v1834 = vadd.f32 %v963, %v1576
    %v1835 = vadd.f32 %v1052, %v1665
    %v1836 = vadd.f32 %v1141, %v1754
    %v1837 = vadd.f32 %v876, %v1489
    %v1838 = vadd.f32 %v965, %v1578
    %v1839 = vadd.f32 %v1054, %v1667
    %v1840 = vadd.f32 %v1143, %v1756
    %v1841 = vadd.f32 %v879, %v1492
    %v1842 = vadd.f32 %v968, %v1581
    %v1843 = vadd.f32 %v1057, %v1670
    %v1844 = vadd.f32 %v1146, %v1759
    %v1845 = vadd.f32 %v881, %v1494
    %v1846 = vadd.f32 %v970, %v1583
    %v1847 = vadd.f32 %v1059, %v1672
    %v1848 = vadd.f32 %v1148, %v1761
    %v1849 = vadd.f32 %v884, %v1497
    %v1850 = vadd.f32 %v973, %v1586
    %v1851 = vadd.f32 %v1062, %v1675
    %v1852 = vadd.f32 %v1151, %v1764
    %v1853 = vadd.f32 %v886, %v1499
    %v1854 = vadd.f32 %v975, %v1588
    %v1855 = vadd.f32 %v1064, %v1677
    %v1856 = vadd.f32 %v1153, %v1766
    %v1857 = vadd.f32 %v889, %v1502
    %v1858 = vadd.f32 %v978, %v1591
    %v1859 = vadd.f32 %v1067, %v1680
    %v1860 = vadd.f32 %v1156, %v1769
    %v1861 = vadd.f32 %v891, %v1504
    %v1862 = vadd.f32 %v980, %v1593
    %v1863 = vadd.f32 %v1069, %v1682
    %v1864 = vadd.f32 %v1158, %v1771
    %v1865 = vadd.f32 %v894, %v1507
    %v1866 = vadd.f32 %v983, %v1596
    %v1867 = vadd.f32 %v1072, %v1685
    %v1868 = vadd.f32 %v1161, %v1774
    %v1869 = vadd.f32 %v896, %v1509
    %v1870 = vadd.f32 %v985, %v1598
    %v1871 = vadd.f32 %v1074, %v1687
    %v1872 = vadd.f32 %v1163, %v1776
    %v1873 = vadd.f32 %v899, %v1512
    %v1874 = vadd.f32 %v988, %v1601
    %v1875 = vadd.f32 %v1077, %v1690
    %v1876 = vadd.f32 %v1166, %v1779
    %v1877 = vadd.f32 %v901, %v1514
    %v1878 = vadd.f32 %v990, %v1603
    %v1879 = vadd.f32 %v1079, %v1692
    %v1880 = vadd.f32 %v1168, %v1781
    %v1881 = vadd.f32 %v904, %v1517
    %v1882 = vadd.f32 %v993, %v1606
    %v1883 = vadd.f32 %v1082, %v1695
    %v1884 = vadd.f32 %v1171, %v1784
    %v1885 = vadd.f32 %v906, %v1519
    %v1886 = vadd.f32 %v995, %v1608
    %v1887 = vadd.f32 %v1084, %v1697
    %v1888 = vadd.f32 %v1173, %v1786
    %v1889 = vadd.f32 %v909, %v1522
    %v1890 = vadd.f32 %v998, %v1611
    %v1891 = vadd.f32 %v1087, %v1700
    %v1892 = vadd.f32 %v1176, %v1789
    %v1893 = vadd.f32 %v911, %v1524
    %v1894 = vadd.f32 %v1000, %v1613
    %v1895 = vadd.f32 %v1089, %v1702
    %v1896 = vadd.f32 %v1178, %v1791
    %v1897 = vadd.f32 %v914, %v1527
    %v1898 = vadd.f32 %v1003, %v1616
    %v1899 = vadd.f32 %v1092, %v1705
    %v1900 = vadd.f32 %v1181, %v1794
    %v1901 = vadd.f32 %v916, %v1529
    %v1902 = vadd.f32 %v1005, %v1618
    %v1903 = vadd.f32 %v1094, %v1707
    %v1904 = vadd.f32 %v1183, %v1796
    %v1905 = vadd.f32 %v919, %v1532
    %v1906 = vadd.f32 %v1008, %v1621
    %v1907 = vadd.f32 %v1097, %v1710
    %v1908 = vadd.f32 %v1186, %v1799
    %v1909 = vadd.f32 %v921, %v1534
    %v1910 = vadd.f32 %v1010, %v1623
    %v1911 = vadd.f32 %v1099, %v1712
    %v1912 = vadd.f32 %v1188, %v1801
    %v1913 = vadd.f32 %v924, %v1537
    %v1914 = vadd.f32 %v1013, %v1626
    %v1915 = vadd.f32 %v1102, %v1715
    %v1916 = vadd.f32 %v1191, %v1804
    %v1917 = vadd.f32 %v926, %v1539
    %v1918 = vadd.f32 %v1015, %v1628
    %v1919 = vadd.f32 %v1104, %v1717
    %v1920 = vadd.f32 %v1193, %v1806
    %v1921 = vadd.f32 %v929, %v1542
    %v1922 = vadd.f32 %v1018, %v1631
    %v1923 = vadd.f32 %v1107, %v1720
    %v1924 = vadd.f32 %v1196, %v1809
    %v1925 = vadd.f32 %v931, %v1544
    %v1926 = vadd.f32 %v1020, %v1633
    %v1927 = vadd.f32 %v1109, %v1722
    %v1928 = vadd.f32 %v1198, %v1811
    %v1929 = vadd.f32 %v934, %v1547
    %v1930 = vadd.f32 %v1023, %v1636
    %v1931 = vadd.f32 %v1112, %v1725
    %v1932 = vadd.f32 %v1201, %v1814
    %v1933 = vadd.f32 %v936, %v1549
    %v1934 = vadd.f32 %v1025, %v1638
    %v1935 = vadd.f32 %v1114, %v1727
    %v1936 = vadd.f32 %v1203, %v1816
    %v1937 = vadd.f32 %v939, %v1552
    %v1938 = vadd.f32 %v1028, %v1641
    %v1939 = vadd.f32 %v1117, %v1730
    %v1940 = vadd.f32 %v1206, %v1819
    %v1941 = vadd.f32 %v941, %v1554
    %v1942 = vadd.f32 %v1030, %v1643
    %v1943 = vadd.f32 %v1119, %v1732
    %v1944 = vadd.f32 %v1208, %v1821
    %v1945 = vadd.f32 %v944, %v1557
    %v1946 = vadd.f32 %v1033, %v1646
    %v1947 = vadd.f32 %v1122, %v1735
    %v1948 = vadd.f32 %v1211, %v1824
    %v1949 = vadd.f32 %v946, %v1559
    %v1950 = vadd.f32 %v1035, %v1648
    %v1951 = vadd.f32 %v1124, %v1737
    %v1952 = vadd.f32 %v1213, %v1826
    %v1953 = vadd.f32 %v949, %v1562
    %v1954 = vadd.f32 %v1038, %v1651
    %v1955 = vadd.f32 %v1127, %v1740
    %v1956 = vadd.f32 %v1216, %v1829
    %v1957 = vadd.f32 %v951, %v1564
    %v1958 = vadd.f32 %v1040, %v1653
    %v1959 = vadd.f32 %v1129, %v1742
    %v1960 = vadd.f32 %v1218, %v1831
    %v1961 = vld [vmem:[%s2] sm:$0xf]
    %v1963 = vperm.slane %v1961, 0
    %v1964 = vperm.slane %v1961, 1
    %v1965 = vperm.slane %v1961, 2
    %v1966 = vperm.slane %v1961, 3
    %v1971 = vadd.f32 %v1833, %v1963
    %v1972 = vadd.f32 %v1834, %v1964
    %v1973 = vadd.f32 %v1835, %v1965
    %v1974 = vadd.f32 %v1836, %v1966
    %v1975 = vadd.f32 %v1837, %v1963
    %v1976 = vadd.f32 %v1838, %v1964
    %v1977 = vadd.f32 %v1839, %v1965
    %v1978 = vadd.f32 %v1840, %v1966
    %v1979 = vadd.f32 %v1841, %v1963
    %v1980 = vadd.f32 %v1842, %v1964
    %v1981 = vadd.f32 %v1843, %v1965
    %v1982 = vadd.f32 %v1844, %v1966
    %v1983 = vadd.f32 %v1845, %v1963
    %v1984 = vadd.f32 %v1846, %v1964
    %v1985 = vadd.f32 %v1847, %v1965
    %v1986 = vadd.f32 %v1848, %v1966
    %v1987 = vadd.f32 %v1849, %v1963
    %v1988 = vadd.f32 %v1850, %v1964
    %v1989 = vadd.f32 %v1851, %v1965
    %v1990 = vadd.f32 %v1852, %v1966
    %v1991 = vadd.f32 %v1853, %v1963
    %v1992 = vadd.f32 %v1854, %v1964
    %v1993 = vadd.f32 %v1855, %v1965
    %v1994 = vadd.f32 %v1856, %v1966
    %v1995 = vadd.f32 %v1857, %v1963
    %v1996 = vadd.f32 %v1858, %v1964
    %v1997 = vadd.f32 %v1859, %v1965
    %v1998 = vadd.f32 %v1860, %v1966
    %v1999 = vadd.f32 %v1861, %v1963
    %v2000 = vadd.f32 %v1862, %v1964
    %v2001 = vadd.f32 %v1863, %v1965
    %v2002 = vadd.f32 %v1864, %v1966
    %v2003 = vadd.f32 %v1865, %v1963
    %v2004 = vadd.f32 %v1866, %v1964
    %v2005 = vadd.f32 %v1867, %v1965
    %v2006 = vadd.f32 %v1868, %v1966
    %v2007 = vadd.f32 %v1869, %v1963
    %v2008 = vadd.f32 %v1870, %v1964
    %v2009 = vadd.f32 %v1871, %v1965
    %v2010 = vadd.f32 %v1872, %v1966
    %v2011 = vadd.f32 %v1873, %v1963
    %v2012 = vadd.f32 %v1874, %v1964
    %v2013 = vadd.f32 %v1875, %v1965
    %v2014 = vadd.f32 %v1876, %v1966
    %v2015 = vadd.f32 %v1877, %v1963
    %v2016 = vadd.f32 %v1878, %v1964
    %v2017 = vadd.f32 %v1879, %v1965
    %v2018 = vadd.f32 %v1880, %v1966
    %v2019 = vadd.f32 %v1881, %v1963
    %v2020 = vadd.f32 %v1882, %v1964
    %v2021 = vadd.f32 %v1883, %v1965
    %v2022 = vadd.f32 %v1884, %v1966
    %v2023 = vadd.f32 %v1885, %v1963
    %v2024 = vadd.f32 %v1886, %v1964
    %v2025 = vadd.f32 %v1887, %v1965
    %v2026 = vadd.f32 %v1888, %v1966
    %v2027 = vadd.f32 %v1889, %v1963
    %v2028 = vadd.f32 %v1890, %v1964
    %v2029 = vadd.f32 %v1891, %v1965
    %v2030 = vadd.f32 %v1892, %v1966
    %v2031 = vadd.f32 %v1893, %v1963
    %v2032 = vadd.f32 %v1894, %v1964
    %v2033 = vadd.f32 %v1895, %v1965
    %v2034 = vadd.f32 %v1896, %v1966
    %v2035 = vadd.f32 %v1897, %v1963
    %v2036 = vadd.f32 %v1898, %v1964
    %v2037 = vadd.f32 %v1899, %v1965
    %v2038 = vadd.f32 %v1900, %v1966
    %v2039 = vadd.f32 %v1901, %v1963
    %v2040 = vadd.f32 %v1902, %v1964
    %v2041 = vadd.f32 %v1903, %v1965
    %v2042 = vadd.f32 %v1904, %v1966
    %v2043 = vadd.f32 %v1905, %v1963
    %v2044 = vadd.f32 %v1906, %v1964
    %v2045 = vadd.f32 %v1907, %v1965
    %v2046 = vadd.f32 %v1908, %v1966
    %v2047 = vadd.f32 %v1909, %v1963
    %v2048 = vadd.f32 %v1910, %v1964
    %v2049 = vadd.f32 %v1911, %v1965
    %v2050 = vadd.f32 %v1912, %v1966
    %v2051 = vadd.f32 %v1913, %v1963
    %v2052 = vadd.f32 %v1914, %v1964
    %v2053 = vadd.f32 %v1915, %v1965
    %v2054 = vadd.f32 %v1916, %v1966
    %v2055 = vadd.f32 %v1917, %v1963
    %v2056 = vadd.f32 %v1918, %v1964
    %v2057 = vadd.f32 %v1919, %v1965
    %v2058 = vadd.f32 %v1920, %v1966
    %v2059 = vadd.f32 %v1921, %v1963
    %v2060 = vadd.f32 %v1922, %v1964
    %v2061 = vadd.f32 %v1923, %v1965
    %v2062 = vadd.f32 %v1924, %v1966
    %v2063 = vadd.f32 %v1925, %v1963
    %v2064 = vadd.f32 %v1926, %v1964
    %v2065 = vadd.f32 %v1927, %v1965
    %v2066 = vadd.f32 %v1928, %v1966
    %v2067 = vadd.f32 %v1929, %v1963
    %v2068 = vadd.f32 %v1930, %v1964
    %v2069 = vadd.f32 %v1931, %v1965
    %v2070 = vadd.f32 %v1932, %v1966
    %v2071 = vadd.f32 %v1933, %v1963
    %v2072 = vadd.f32 %v1934, %v1964
    %v2073 = vadd.f32 %v1935, %v1965
    %v2074 = vadd.f32 %v1936, %v1966
    %v2075 = vadd.f32 %v1937, %v1963
    %v2076 = vadd.f32 %v1938, %v1964
    %v2077 = vadd.f32 %v1939, %v1965
    %v2078 = vadd.f32 %v1940, %v1966
    %v2079 = vadd.f32 %v1941, %v1963
    %v2080 = vadd.f32 %v1942, %v1964
    %v2081 = vadd.f32 %v1943, %v1965
    %v2082 = vadd.f32 %v1944, %v1966
    %v2083 = vadd.f32 %v1945, %v1963
    %v2084 = vadd.f32 %v1946, %v1964
    %v2085 = vadd.f32 %v1947, %v1965
    %v2086 = vadd.f32 %v1948, %v1966
    %v2087 = vadd.f32 %v1949, %v1963
    %v2088 = vadd.f32 %v1950, %v1964
    %v2089 = vadd.f32 %v1951, %v1965
    %v2090 = vadd.f32 %v1952, %v1966
    %v2091 = vadd.f32 %v1953, %v1963
    %v2092 = vadd.f32 %v1954, %v1964
    %v2093 = vadd.f32 %v1955, %v1965
    %v2094 = vadd.f32 %v1956, %v1966
    %v2095 = vadd.f32 %v1957, %v1963
    %v2096 = vadd.f32 %v1958, %v1964
    %v2097 = vadd.f32 %v1959, %v1965
    %v2098 = vadd.f32 %v1960, %v1966
    %v2099 = vmax.f32 %v1971, 0.0
    %v2100 = vmax.f32 %v1972, 0.0
    %v2101 = vmax.f32 %v1973, 0.0
    %v2102 = vmax.f32 %v1974, 0.0
    %v2103 = vmax.f32 %v1975, 0.0
    %v2104 = vmax.f32 %v1976, 0.0
    %v2105 = vmax.f32 %v1977, 0.0
    %v2106 = vmax.f32 %v1978, 0.0
    %v2107 = vmax.f32 %v1979, 0.0
    %v2108 = vmax.f32 %v1980, 0.0
    %v2109 = vmax.f32 %v1981, 0.0
    %v2110 = vmax.f32 %v1982, 0.0
    %v2111 = vmax.f32 %v1983, 0.0
    %v2112 = vmax.f32 %v1984, 0.0
    %v2113 = vmax.f32 %v1985, 0.0
    %v2114 = vmax.f32 %v1986, 0.0
    %v2115 = vmax.f32 %v1987, 0.0
    %v2116 = vmax.f32 %v1988, 0.0
    %v2117 = vmax.f32 %v1989, 0.0
    %v2118 = vmax.f32 %v1990, 0.0
    %v2119 = vmax.f32 %v1991, 0.0
    %v2120 = vmax.f32 %v1992, 0.0
    %v2121 = vmax.f32 %v1993, 0.0
    %v2122 = vmax.f32 %v1994, 0.0
    %v2123 = vmax.f32 %v1995, 0.0
    %v2124 = vmax.f32 %v1996, 0.0
    %v2125 = vmax.f32 %v1997, 0.0
    %v2126 = vmax.f32 %v1998, 0.0
    %v2127 = vmax.f32 %v1999, 0.0
    %v2128 = vmax.f32 %v2000, 0.0
    %v2129 = vmax.f32 %v2001, 0.0
    %v2130 = vmax.f32 %v2002, 0.0
    %v2131 = vmax.f32 %v2003, 0.0
    %v2132 = vmax.f32 %v2004, 0.0
    %v2133 = vmax.f32 %v2005, 0.0
    %v2134 = vmax.f32 %v2006, 0.0
    %v2135 = vmax.f32 %v2007, 0.0
    %v2136 = vmax.f32 %v2008, 0.0
    %v2137 = vmax.f32 %v2009, 0.0
    %v2138 = vmax.f32 %v2010, 0.0
    %v2139 = vmax.f32 %v2011, 0.0
    %v2140 = vmax.f32 %v2012, 0.0
    %v2141 = vmax.f32 %v2013, 0.0
    %v2142 = vmax.f32 %v2014, 0.0
    %v2143 = vmax.f32 %v2015, 0.0
    %v2144 = vmax.f32 %v2016, 0.0
    %v2145 = vmax.f32 %v2017, 0.0
    %v2146 = vmax.f32 %v2018, 0.0
    %v2147 = vmax.f32 %v2019, 0.0
    %v2148 = vmax.f32 %v2020, 0.0
    %v2149 = vmax.f32 %v2021, 0.0
    %v2150 = vmax.f32 %v2022, 0.0
    %v2151 = vmax.f32 %v2023, 0.0
    %v2152 = vmax.f32 %v2024, 0.0
    %v2153 = vmax.f32 %v2025, 0.0
    %v2154 = vmax.f32 %v2026, 0.0
    %v2155 = vmax.f32 %v2027, 0.0
    %v2156 = vmax.f32 %v2028, 0.0
    %v2157 = vmax.f32 %v2029, 0.0
    %v2158 = vmax.f32 %v2030, 0.0
    %v2159 = vmax.f32 %v2031, 0.0
    %v2160 = vmax.f32 %v2032, 0.0
    %v2161 = vmax.f32 %v2033, 0.0
    %v2162 = vmax.f32 %v2034, 0.0
    %v2163 = vmax.f32 %v2035, 0.0
    %v2164 = vmax.f32 %v2036, 0.0
    %v2165 = vmax.f32 %v2037, 0.0
    %v2166 = vmax.f32 %v2038, 0.0
    %v2167 = vmax.f32 %v2039, 0.0
    %v2168 = vmax.f32 %v2040, 0.0
    %v2169 = vmax.f32 %v2041, 0.0
    %v2170 = vmax.f32 %v2042, 0.0
    %v2171 = vmax.f32 %v2043, 0.0
    %v2172 = vmax.f32 %v2044, 0.0
    %v2173 = vmax.f32 %v2045, 0.0
    %v2174 = vmax.f32 %v2046, 0.0
    %v2175 = vmax.f32 %v2047, 0.0
    %v2176 = vmax.f32 %v2048, 0.0
    %v2177 = vmax.f32 %v2049, 0.0
    %v2178 = vmax.f32 %v2050, 0.0
    %v2179 = vmax.f32 %v2051, 0.0
    %v2180 = vmax.f32 %v2052, 0.0
    %v2181 = vmax.f32 %v2053, 0.0
    %v2182 = vmax.f32 %v2054, 0.0
    %v2183 = vmax.f32 %v2055, 0.0
    %v2184 = vmax.f32 %v2056, 0.0
    %v2185 = vmax.f32 %v2057, 0.0
    %v2186 = vmax.f32 %v2058, 0.0
    %v2187 = vmax.f32 %v2059, 0.0
    %v2188 = vmax.f32 %v2060, 0.0
    %v2189 = vmax.f32 %v2061, 0.0
    %v2190 = vmax.f32 %v2062, 0.0
    %v2191 = vmax.f32 %v2063, 0.0
    %v2192 = vmax.f32 %v2064, 0.0
    %v2193 = vmax.f32 %v2065, 0.0
    %v2194 = vmax.f32 %v2066, 0.0
    %v2195 = vmax.f32 %v2067, 0.0
    %v2196 = vmax.f32 %v2068, 0.0
    %v2197 = vmax.f32 %v2069, 0.0
    %v2198 = vmax.f32 %v2070, 0.0
    %v2199 = vmax.f32 %v2071, 0.0
    %v2200 = vmax.f32 %v2072, 0.0
    %v2201 = vmax.f32 %v2073, 0.0
    %v2202 = vmax.f32 %v2074, 0.0
    %v2203 = vmax.f32 %v2075, 0.0
    %v2204 = vmax.f32 %v2076, 0.0
    %v2205 = vmax.f32 %v2077, 0.0
    %v2206 = vmax.f32 %v2078, 0.0
    %v2207 = vmax.f32 %v2079, 0.0
    %v2208 = vmax.f32 %v2080, 0.0
    %v2209 = vmax.f32 %v2081, 0.0
    %v2210 = vmax.f32 %v2082, 0.0
    %v2211 = vmax.f32 %v2083, 0.0
    %v2212 = vmax.f32 %v2084, 0.0
    %v2213 = vmax.f32 %v2085, 0.0
    %v2214 = vmax.f32 %v2086, 0.0
    %v2215 = vmax.f32 %v2087, 0.0
    %v2216 = vmax.f32 %v2088, 0.0
    %v2217 = vmax.f32 %v2089, 0.0
    %v2218 = vmax.f32 %v2090, 0.0
    %v2219 = vmax.f32 %v2091, 0.0
    %v2220 = vmax.f32 %v2092, 0.0
    %v2221 = vmax.f32 %v2093, 0.0
    %v2222 = vmax.f32 %v2094, 0.0
    %v2223 = vmax.f32 %v2095, 0.0
    %v2224 = vmax.f32 %v2096, 0.0
    %v2225 = vmax.f32 %v2097, 0.0
    %v2226 = vmax.f32 %v2098, 0.0
    %v2227 = vmax.f32 %v2099, %v2107
    %v2228 = vmax.f32 %v2100, %v2108
    %v2229 = vmax.f32 %v2101, %v2109
    %v2230 = vmax.f32 %v2102, %v2110
    %v2231 = vmax.f32 %v2103, %v2111
    %v2232 = vmax.f32 %v2104, %v2112
    %v2233 = vmax.f32 %v2105, %v2113
    %v2234 = vmax.f32 %v2106, %v2114
    %v2235 = vmax.f32 %v2115, %v2123
    %v2236 = vmax.f32 %v2116, %v2124
    %v2237 = vmax.f32 %v2117, %v2125
    %v2238 = vmax.f32 %v2118, %v2126
    %v2239 = vmax.f32 %v2119, %v2127
    %v2240 = vmax.f32 %v2120, %v2128
    %v2241 = vmax.f32 %v2121, %v2129
    %v2242 = vmax.f32 %v2122, %v2130
    %v2243 = vmax.f32 %v2131, %v2139
    %v2244 = vmax.f32 %v2132, %v2140
    %v2245 = vmax.f32 %v2133, %v2141
    %v2246 = vmax.f32 %v2134, %v2142
    %v2247 = vmax.f32 %v2135, %v2143
    %v2248 = vmax.f32 %v2136, %v2144
    %v2249 = vmax.f32 %v2137, %v2145
    %v2250 = vmax.f32 %v2138, %v2146
    %v2251 = vmax.f32 %v2147, %v2155
    %v2252 = vmax.f32 %v2148, %v2156
    %v2253 = vmax.f32 %v2149, %v2157
    %v2254 = vmax.f32 %v2150, %v2158
    %v2255 = vmax.f32 %v2151, %v2159
    %v2256 = vmax.f32 %v2152, %v2160
    %v2257 = vmax.f32 %v2153, %v2161
    %v2258 = vmax.f32 %v2154, %v2162
    %v2259 = vmax.f32 %v2163, %v2171
    %v2260 = vmax.f32 %v2164, %v2172
    %v2261 = vmax.f32 %v2165, %v2173
    %v2262 = vmax.f32 %v2166, %v2174
    %v2263 = vmax.f32 %v2167, %v2175
    %v2264 = vmax.f32 %v2168, %v2176
    %v2265 = vmax.f32 %v2169, %v2177
    %v2266 = vmax.f32 %v2170, %v2178
    %v2267 = vmax.f32 %v2179, %v2187
    %v2268 = vmax.f32 %v2180, %v2188
    %v2269 = vmax.f32 %v2181, %v2189
    %v2270 = vmax.f32 %v2182, %v2190
    %v2271 = vmax.f32 %v2183, %v2191
    %v2272 = vmax.f32 %v2184, %v2192
    %v2273 = vmax.f32 %v2185, %v2193
    %v2274 = vmax.f32 %v2186, %v2194
    %v2275 = vmax.f32 %v2195, %v2203
    %v2276 = vmax.f32 %v2196, %v2204
    %v2277 = vmax.f32 %v2197, %v2205
    %v2278 = vmax.f32 %v2198, %v2206
    %v2279 = vmax.f32 %v2199, %v2207
    %v2280 = vmax.f32 %v2200, %v2208
    %v2281 = vmax.f32 %v2201, %v2209
    %v2282 = vmax.f32 %v2202, %v2210
    %v2283 = vmax.f32 %v2211, %v2219
    %v2284 = vmax.f32 %v2212, %v2220
    %v2285 = vmax.f32 %v2213, %v2221
    %v2286 = vmax.f32 %v2214, %v2222
    %v2287 = vmax.f32 %v2215, %v2223
    %v2288 = vmax.f32 %v2216, %v2224
    %v2289 = vmax.f32 %v2217, %v2225
    %v2290 = vmax.f32 %v2218, %v2226
    %v2291 = vmax.f32 %v2227, %v2229
    %v2292 = vmax.f32 %v2228, %v2230
    %v2293 = vmax.f32 %v2231, %v2233
    %v2294 = vmax.f32 %v2232, %v2234
    %v2295 = vmax.f32 %v2235, %v2237
    %v2296 = vmax.f32 %v2236, %v2238
    %v2297 = vmax.f32 %v2239, %v2241
    %v2298 = vmax.f32 %v2240, %v2242
    %v2299 = vmax.f32 %v2243, %v2245
    %v2300 = vmax.f32 %v2244, %v2246
    %v2301 = vmax.f32 %v2247, %v2249
    %v2302 = vmax.f32 %v2248, %v2250
    %v2303 = vmax.f32 %v2251, %v2253
    %v2304 = vmax.f32 %v2252, %v2254
    %v2305 = vmax.f32 %v2255, %v2257
    %v2306 = vmax.f32 %v2256, %v2258
    %v2307 = vmax.f32 %v2259, %v2261
    %v2308 = vmax.f32 %v2260, %v2262
    %v2309 = vmax.f32 %v2263, %v2265
    %v2310 = vmax.f32 %v2264, %v2266
    %v2311 = vmax.f32 %v2267, %v2269
    %v2312 = vmax.f32 %v2268, %v2270
    %v2313 = vmax.f32 %v2271, %v2273
    %v2314 = vmax.f32 %v2272, %v2274
    %v2315 = vmax.f32 %v2275, %v2277
    %v2316 = vmax.f32 %v2276, %v2278
    %v2317 = vmax.f32 %v2279, %v2281
    %v2318 = vmax.f32 %v2280, %v2282
    %v2319 = vmax.f32 %v2283, %v2285
    %v2320 = vmax.f32 %v2284, %v2286
    %v2321 = vmax.f32 %v2287, %v2289
    %v2322 = vmax.f32 %v2288, %v2290
    %2323 = vst [vmem:[#allocation3] sm:$0xff] 0
    %2324 = vst [vmem:[#allocation3 + $0x8] sm:$0xff] 0
    %2325 = vst [vmem:[#allocation3 + $0x90] sm:$0xff] 0
    %2326 = vst [vmem:[#allocation3 + $0x98] sm:$0xff] 0
    %v2327 = vpack.c.bf16 %v2292, %v2291
    %v2328 = vpack.c.bf16 %v2294, %v2293
    %v2329 = vpack.c.bf16 %v2296, %v2295
    %v2330 = vpack.c.bf16 %v2298, %v2297
    %v2331 = vpack.c.bf16 %v2300, %v2299
    %v2332 = vpack.c.bf16 %v2302, %v2301
    %v2333 = vpack.c.bf16 %v2304, %v2303
    %v2334 = vpack.c.bf16 %v2306, %v2305
    %v2335 = vpack.c.bf16 %v2308, %v2307
    %v2336 = vpack.c.bf16 %v2310, %v2309
    %v2337 = vpack.c.bf16 %v2312, %v2311
    %v2338 = vpack.c.bf16 %v2314, %v2313
    %v2339 = vpack.c.bf16 %v2316, %v2315
    %v2340 = vpack.c.bf16 %v2318, %v2317
    %v2341 = vpack.c.bf16 %v2320, %v2319
    %v2342 = vpack.c.bf16 %v2322, %v2321
    %2343 = vst [vmem:[#allocation3 + $0x10] sm:$0xff] %v2327
    %2344 = vst [vmem:[#allocation3 + $0x18] sm:$0xff] %v2328
    %2345 = vst [vmem:[#allocation3 + $0x20] sm:$0xff] %v2329
    %2346 = vst [vmem:[#allocation3 + $0x28] sm:$0xff] %v2330
    %2347 = vst [vmem:[#allocation3 + $0x30] sm:$0xff] %v2331
    %2348 = vst [vmem:[#allocation3 + $0x38] sm:$0xff] %v2332
    %2349 = vst [vmem:[#allocation3 + $0x40] sm:$0xff] %v2333
    %2350 = vst [vmem:[#allocation3 + $0x48] sm:$0xff] %v2334
    %2351 = vst [vmem:[#allocation3 + $0x50] sm:$0xff] %v2335
    %2352 = vst [vmem:[#allocation3 + $0x58] sm:$0xff] %v2336
    %2353 = vst [vmem:[#allocation3 + $0x60] sm:$0xff] %v2337
    %2354 = vst [vmem:[#allocation3 + $0x68] sm:$0xff] %v2338
    %2355 = vst [vmem:[#allocation3 + $0x70] sm:$0xff] %v2339
    %2356 = vst [vmem:[#allocation3 + $0x78] sm:$0xff] %v2340
    %2357 = vst [vmem:[#allocation3 + $0x80] sm:$0xff] %v2341
    %2358 = vst [vmem:[#allocation3 + $0x88] sm:$0xff] %v2342
    %v2359 = vld [vmem:[#allocation3] sm:$0xff]
    %v2360 = vld [vmem:[#allocation3 + $0x8] sm:$0xff]
    %v2361 = vld [vmem:[#allocation3 + $0x10] sm:$0xff]
    %v2362 = vld [vmem:[#allocation3 + $0x18] sm:$0xff]
    %v2363 = vld [vmem:[#allocation3 + $0x20] sm:$0xff]
    %v2364 = vld [vmem:[#allocation3 + $0x28] sm:$0xff]
    %v2365 = vld [vmem:[#allocation3 + $0x30] sm:$0xff]
    %v2366 = vld [vmem:[#allocation3 + $0x38] sm:$0xff]
    %v2367 = vld [vmem:[#allocation3 + $0x40] sm:$0xff]
    %v2368 = vld [vmem:[#allocation3 + $0x48] sm:$0xff]
    %v2369 = vld [vmem:[#allocation3 + $0x50] sm:$0xff]
    %v2370 = vld [vmem:[#allocation3 + $0x58] sm:$0xff]
    %v2371 = vld [vmem:[#allocation3 + $0x60] sm:$0xff]
    %v2372 = vld [vmem:[#allocation3 + $0x68] sm:$0xff]
    %v2373 = vld [vmem:[#allocation3 + $0x70] sm:$0xff]
    %v2374 = vld [vmem:[#allocation3 + $0x78] sm:$0xff]
    %v2375 = vld [vmem:[#allocation3 + $0x80] sm:$0xff]
    %v2376 = vld [vmem:[#allocation3 + $0x88] sm:$0xff]
    %v2377 = vld [vmem:[#allocation3 + $0x20] sm:$0xff]
    %v2378 = vld [vmem:[#allocation3 + $0x28] sm:$0xff]
    %v2379 = vld [vmem:[#allocation3 + $0x30] sm:$0xff]
    %v2380 = vld [vmem:[#allocation3 + $0x38] sm:$0xff]
    %v2381 = vld [vmem:[#allocation3 + $0x40] sm:$0xff]
    %v2382 = vld [vmem:[#allocation3 + $0x48] sm:$0xff]
    %v2383 = vld [vmem:[#allocation3 + $0x50] sm:$0xff]
    %v2384 = vld [vmem:[#allocation3 + $0x58] sm:$0xff]
    %v2385 = vld [vmem:[#allocation3 + $0x60] sm:$0xff]
    %v2386 = vld [vmem:[#allocation3 + $0x68] sm:$0xff]
    %v2387 = vld [vmem:[#allocation3 + $0x70] sm:$0xff]
    %v2388 = vld [vmem:[#allocation3 + $0x78] sm:$0xff]
    %v2389 = vld [vmem:[#allocation3 + $0x80] sm:$0xff]
    %v2390 = vld [vmem:[#allocation3 + $0x88] sm:$0xff]
    %v2391 = vld [vmem:[#allocation3 + $0x90] sm:$0xff]
    %v2392 = vld [vmem:[#allocation3 + $0x98] sm:$0xff]
    %v2409 = vunpack.c.l.b16 %v2359
    %v2410 = vunpack.c.h.b16 %v2359
    %v2411 = vunpack.c.l.b16 %v2360
    %v2412 = vunpack.c.h.b16 %v2360
    %v2413 = vunpack.c.l.b16 %v2361
    %v2414 = vunpack.c.h.b16 %v2361
    %v2415 = vunpack.c.l.b16 %v2362
    %v2416 = vunpack.c.h.b16 %v2362
    %v2417 = vunpack.c.l.b16 %v2363
    %v2418 = vunpack.c.h.b16 %v2363
    %v2419 = vunpack.c.l.b16 %v2364
    %v2420 = vunpack.c.h.b16 %v2364
    %v2421 = vunpack.c.l.b16 %v2365
    %v2422 = vunpack.c.h.b16 %v2365
    %v2423 = vunpack.c.l.b16 %v2366
    %v2424 = vunpack.c.h.b16 %v2366
    %v2425 = vunpack.c.l.b16 %v2367
    %v2426 = vunpack.c.h.b16 %v2367
    %v2427 = vunpack.c.l.b16 %v2368
    %v2428 = vunpack.c.h.b16 %v2368
    %v2429 = vunpack.c.l.b16 %v2369
    %v2430 = vunpack.c.h.b16 %v2369
    %v2431 = vunpack.c.l.b16 %v2370
    %v2432 = vunpack.c.h.b16 %v2370
    %v2433 = vunpack.c.l.b16 %v2371
    %v2434 = vunpack.c.h.b16 %v2371
    %v2435 = vunpack.c.l.b16 %v2372
    %v2436 = vunpack.c.h.b16 %v2372
    %v2437 = vunpack.c.l.b16 %v2373
    %v2438 = vunpack.c.h.b16 %v2373
    %v2439 = vunpack.c.l.b16 %v2374
    %v2440 = vunpack.c.h.b16 %v2374
    %v2441 = vpack.c.b16 %v2411, %v2409
    %v2442 = vpack.c.b16 %v2412, %v2410
    %v2443 = vpack.c.b16 %v2415, %v2413
    %v2444 = vpack.c.b16 %v2416, %v2414
    %v2445 = vpack.c.b16 %v2419, %v2417
    %v2446 = vpack.c.b16 %v2420, %v2418
    %v2447 = vpack.c.b16 %v2423, %v2421
    %v2448 = vpack.c.b16 %v2424, %v2422
    %v2449 = vpack.c.b16 %v2427, %v2425
    %v2450 = vpack.c.b16 %v2428, %v2426
    %v2451 = vpack.c.b16 %v2431, %v2429
    %v2452 = vpack.c.b16 %v2432, %v2430
    %v2453 = vpack.c.b16 %v2435, %v2433
    %v2454 = vpack.c.b16 %v2436, %v2434
    %v2455 = vpack.c.b16 %v2439, %v2437
    %v2456 = vpack.c.b16 %v2440, %v2438
    %v2475 = vunpack.c.l.b16 %v2375
    %v2476 = vunpack.c.h.b16 %v2375
    %v2477 = vunpack.c.l.b16 %v2376
    %v2478 = vunpack.c.h.b16 %v2376
    %v2479 = vpack.c.b16 %v2477, %v2475
    %v2480 = vpack.c.b16 %v2478, %v2476
    %v2499 = vunpack.c.l.b16 %v2377
    %v2500 = vunpack.c.h.b16 %v2377
    %v2501 = vunpack.c.l.b16 %v2378
    %v2502 = vunpack.c.h.b16 %v2378
    %v2503 = vunpack.c.l.b16 %v2379
    %v2504 = vunpack.c.h.b16 %v2379
    %v2505 = vunpack.c.l.b16 %v2380
    %v2506 = vunpack.c.h.b16 %v2380
    %v2507 = vunpack.c.l.b16 %v2381
    %v2508 = vunpack.c.h.b16 %v2381
    %v2509 = vunpack.c.l.b16 %v2382
    %v2510 = vunpack.c.h.b16 %v2382
    %v2511 = vunpack.c.l.b16 %v2383
    %v2512 = vunpack.c.h.b16 %v2383
    %v2513 = vunpack.c.l.b16 %v2384
    %v2514 = vunpack.c.h.b16 %v2384
    %v2515 = vunpack.c.l.b16 %v2385
    %v2516 = vunpack.c.h.b16 %v2385
    %v2517 = vunpack.c.l.b16 %v2386
    %v2518 = vunpack.c.h.b16 %v2386
    %v2519 = vunpack.c.l.b16 %v2387
    %v2520 = vunpack.c.h.b16 %v2387
    %v2521 = vunpack.c.l.b16 %v2388
    %v2522 = vunpack.c.h.b16 %v2388
    %v2523 = vunpack.c.l.b16 %v2389
    %v2524 = vunpack.c.h.b16 %v2389
    %v2525 = vunpack.c.l.b16 %v2390
    %v2526 = vunpack.c.h.b16 %v2390
    %v2527 = vunpack.c.l.b16 %v2391
    %v2528 = vunpack.c.h.b16 %v2391
    %v2529 = vunpack.c.l.b16 %v2392
    %v2530 = vunpack.c.h.b16 %v2392
    %v2531 = vpack.c.b16 %v2501, %v2499
    %v2532 = vpack.c.b16 %v2502, %v2500
    %v2533 = vpack.c.b16 %v2505, %v2503
    %v2534 = vpack.c.b16 %v2506, %v2504
    %v2535 = vpack.c.b16 %v2509, %v2507
    %v2536 = vpack.c.b16 %v2510, %v2508
    %v2537 = vpack.c.b16 %v2513, %v2511
    %v2538 = vpack.c.b16 %v2514, %v2512
    %v2539 = vpack.c.b16 %v2517, %v2515
    %v2540 = vpack.c.b16 %v2518, %v2516
    %v2541 = vpack.c.b16 %v2521, %v2519
    %v2542 = vpack.c.b16 %v2522, %v2520
    %v2543 = vpack.c.b16 %v2525, %v2523
    %v2544 = vpack.c.b16 %v2526, %v2524
    %v2545 = vpack.c.b16 %v2529, %v2527
    %v2546 = vpack.c.b16 %v2530, %v2528
    %v2563 = vld [vmem:[#allocation8] sm:$0xff]
    %v2564 = vld [vmem:[#allocation8 + $0x8] sm:$0xff]
    %v2565 = vld [vmem:[#allocation8 + $0x10] sm:$0xff]
    %v2566 = vld [vmem:[#allocation8 + $0x18] sm:$0xff]
    %v2567 = vld [vmem:[#allocation8 + $0x20] sm:$0xff]
    %v2568 = vld [vmem:[#allocation8 + $0x28] sm:$0xff]
    %v2569 = vld [vmem:[#allocation8 + $0x30] sm:$0xff]
    %v2570 = vld [vmem:[#allocation8 + $0x38] sm:$0xff]
    %v2571 = vld [vmem:[#allocation8 + $0x40] sm:$0xff]
    %v2572 = vld [vmem:[#allocation8 + $0x48] sm:$0xff]
    %v2573 = vld [vmem:[#allocation8 + $0x50] sm:$0xff]
    %v2574 = vld [vmem:[#allocation8 + $0x58] sm:$0xff]
    %v2575 = vld [vmem:[#allocation8 + $0x60] sm:$0xff]
    %v2576 = vld [vmem:[#allocation8 + $0x68] sm:$0xff]
    %v2577 = vld [vmem:[#allocation8 + $0x70] sm:$0xff]
    %v2578 = vld [vmem:[#allocation8 + $0x78] sm:$0xff]
    %v2579 = vld [vmem:[#allocation8 + $0x80] sm:$0xff]
    %v2580 = vld [vmem:[#allocation8 + $0x88] sm:$0xff]
    %v2581 = vld [vmem:[#allocation8 + $0x90] sm:$0xff]
    %v2582 = vld [vmem:[#allocation8 + $0x98] sm:$0xff]
    %v2583 = vld [vmem:[#allocation8 + $0xa0] sm:$0xff]
    %v2584 = vld [vmem:[#allocation8 + $0xa8] sm:$0xff]
    %v2585 = vld [vmem:[#allocation8 + $0xb0] sm:$0xff]
    %v2586 = vld [vmem:[#allocation8 + $0xb8] sm:$0xff]
    %v2587 = vld [vmem:[#allocation8 + $0xc0] sm:$0xff]
    %v2588 = vld [vmem:[#allocation8 + $0xc8] sm:$0xff]
    %v2589 = vld [vmem:[#allocation8 + $0xd0] sm:$0xff]
    %v2590 = vld [vmem:[#allocation8 + $0xd8] sm:$0xff]
    %v2591 = vld [vmem:[#allocation8 + $0xe0] sm:$0xff]
    %v2592 = vld [vmem:[#allocation8 + $0xe8] sm:$0xff]
    %v2593 = vld [vmem:[#allocation8 + $0xf0] sm:$0xff]
    %v2594 = vld [vmem:[#allocation8 + $0xf8] sm:$0xff]
    %v2595 = vld [vmem:[#allocation8 + $0x100] sm:$0xff]
    %v2596 = vld [vmem:[#allocation8 + $0x108] sm:$0xff]
    %v2597 = vld [vmem:[#allocation8 + $0x110] sm:$0xff]
    %v2598 = vld [vmem:[#allocation8 + $0x118] sm:$0xff]
    %v2599 = vld [vmem:[#allocation8 + $0x120] sm:$0xff]
    %v2600 = vld [vmem:[#allocation8 + $0x128] sm:$0xff]
    %v2601 = vld [vmem:[#allocation8 + $0x130] sm:$0xff]
    %v2602 = vld [vmem:[#allocation8 + $0x138] sm:$0xff]
    %v2603 = vld [vmem:[#allocation8 + $0x140] sm:$0xff]
    %v2604 = vld [vmem:[#allocation8 + $0x148] sm:$0xff]
    %v2605 = vld [vmem:[#allocation8 + $0x150] sm:$0xff]
    %v2606 = vld [vmem:[#allocation8 + $0x158] sm:$0xff]
    %v2607 = vld [vmem:[#allocation8 + $0x160] sm:$0xff]
    %v2608 = vld [vmem:[#allocation8 + $0x168] sm:$0xff]
    %v2609 = vld [vmem:[#allocation8 + $0x170] sm:$0xff]
    %v2610 = vld [vmem:[#allocation8 + $0x178] sm:$0xff]
    %v2611 = vld [vmem:[#allocation8 + $0x180] sm:$0xff]
    %v2612 = vld [vmem:[#allocation8 + $0x188] sm:$0xff]
    %v2613 = vld [vmem:[#allocation8 + $0x190] sm:$0xff]
    %v2614 = vld [vmem:[#allocation8 + $0x198] sm:$0xff]
    %v2615 = vld [vmem:[#allocation8 + $0x1a0] sm:$0xff]
    %v2616 = vld [vmem:[#allocation8 + $0x1a8] sm:$0xff]
    %v2617 = vld [vmem:[#allocation8 + $0x1b0] sm:$0xff]
    %v2618 = vld [vmem:[#allocation8 + $0x1b8] sm:$0xff]
    %v2619 = vld [vmem:[#allocation8 + $0x1c0] sm:$0xff]
    %v2620 = vld [vmem:[#allocation8 + $0x1c8] sm:$0xff]
    %v2621 = vld [vmem:[#allocation8 + $0x1d0] sm:$0xff]
    %v2622 = vld [vmem:[#allocation8 + $0x1d8] sm:$0xff]
    %v2623 = vld [vmem:[#allocation8 + $0x1e0] sm:$0xff]
    %v2624 = vld [vmem:[#allocation8 + $0x1e8] sm:$0xff]
    %v2625 = vld [vmem:[#allocation8 + $0x1f0] sm:$0xff]
    %v2626 = vld [vmem:[#allocation8 + $0x1f8] sm:$0xff]
    %v2627 = vld [vmem:[#allocation8 + $0x200] sm:$0xff]
    %v2628 = vld [vmem:[#allocation8 + $0x208] sm:$0xff]
    %v2629 = vld [vmem:[#allocation8 + $0x210] sm:$0xff]
    %v2630 = vld [vmem:[#allocation8 + $0x218] sm:$0xff]
    %v2631 = vld [vmem:[#allocation8 + $0x220] sm:$0xff]
    %v2632 = vld [vmem:[#allocation8 + $0x228] sm:$0xff]
    %v2633 = vld [vmem:[#allocation8 + $0x230] sm:$0xff]
    %v2634 = vld [vmem:[#allocation8 + $0x238] sm:$0xff]
    %v2635 = vld [vmem:[#allocation8 + $0x240] sm:$0xff]
    %v2636 = vld [vmem:[#allocation8 + $0x248] sm:$0xff]
    %v2637 = vld [vmem:[#allocation8 + $0x250] sm:$0xff]
    %v2638 = vld [vmem:[#allocation8 + $0x258] sm:$0xff]
    %v2639 = vld [vmem:[#allocation8 + $0x260] sm:$0xff]
    %v2640 = vld [vmem:[#allocation8 + $0x268] sm:$0xff]
    %v2641 = vld [vmem:[#allocation8 + $0x270] sm:$0xff]
    %v2642 = vld [vmem:[#allocation8 + $0x278] sm:$0xff]
    %v2643 = vld [vmem:[#allocation8 + $0x280] sm:$0xff]
    %v2644 = vld [vmem:[#allocation8 + $0x288] sm:$0xff]
    %v2645 = vld [vmem:[#allocation8 + $0x290] sm:$0xff]
    %v2646 = vld [vmem:[#allocation8 + $0x298] sm:$0xff]
    %v2647 = vld [vmem:[#allocation8 + $0x2a0] sm:$0xff]
    %v2648 = vld [vmem:[#allocation8 + $0x2a8] sm:$0xff]
    %v2649 = vld [vmem:[#allocation8 + $0x2b0] sm:$0xff]
    %v2650 = vld [vmem:[#allocation8 + $0x2b8] sm:$0xff]
    %v2651 = vld [vmem:[#allocation8 + $0x2c0] sm:$0xff]
    %v2652 = vld [vmem:[#allocation8 + $0x2c8] sm:$0xff]
    %v2653 = vld [vmem:[#allocation8 + $0x2d0] sm:$0xff]
    %v2654 = vld [vmem:[#allocation8 + $0x2d8] sm:$0xff]
    %v2655 = vld [vmem:[#allocation8 + $0x2e0] sm:$0xff]
    %v2656 = vld [vmem:[#allocation8 + $0x2e8] sm:$0xff]
    %v2657 = vld [vmem:[#allocation8 + $0x2f0] sm:$0xff]
    %v2658 = vld [vmem:[#allocation8 + $0x2f8] sm:$0xff]
    %v2659 = vld [vmem:[%s4] sm:$0x3]
    %v2661 = vperm.slane %v2659, 0
    %v2662 = vperm.slane %v2659, 1
    %v2761 = vunpack.c.l.b16 %v2563
    %v2762 = vunpack.c.h.b16 %v2563
    %v2763 = vunpack.c.l.b16 %v2564
    %v2764 = vunpack.c.h.b16 %v2564
    %v2765 = vunpack.c.l.b16 %v2565
    %v2766 = vunpack.c.h.b16 %v2565
    %v2767 = vunpack.c.l.b16 %v2566
    %v2768 = vunpack.c.h.b16 %v2566
    %v2769 = vunpack.c.l.b16 %v2567
    %v2770 = vunpack.c.h.b16 %v2567
    %v2771 = vunpack.c.l.b16 %v2568
    %v2772 = vunpack.c.h.b16 %v2568
    %v2773 = vunpack.c.l.b16 %v2569
    %v2774 = vunpack.c.h.b16 %v2569
    %v2775 = vunpack.c.l.b16 %v2570
    %v2776 = vunpack.c.h.b16 %v2570
    %v2777 = vunpack.c.l.b16 %v2571
    %v2778 = vunpack.c.h.b16 %v2571
    %v2779 = vunpack.c.l.b16 %v2572
    %v2780 = vunpack.c.h.b16 %v2572
    %v2781 = vunpack.c.l.b16 %v2573
    %v2782 = vunpack.c.h.b16 %v2573
    %v2783 = vunpack.c.l.b16 %v2574
    %v2784 = vunpack.c.h.b16 %v2574
    %v2785 = vunpack.c.l.b16 %v2575
    %v2786 = vunpack.c.h.b16 %v2575
    %v2787 = vunpack.c.l.b16 %v2576
    %v2788 = vunpack.c.h.b16 %v2576
    %v2789 = vunpack.c.l.b16 %v2577
    %v2790 = vunpack.c.h.b16 %v2577
    %v2791 = vunpack.c.l.b16 %v2578
    %v2792 = vunpack.c.h.b16 %v2578
    %v2793 = vunpack.c.l.b16 %v2579
    %v2794 = vunpack.c.h.b16 %v2579
    %v2795 = vunpack.c.l.b16 %v2580
    %v2796 = vunpack.c.h.b16 %v2580
    %v2797 = vunpack.c.l.b16 %v2581
    %v2798 = vunpack.c.h.b16 %v2581
    %v2799 = vunpack.c.l.b16 %v2582
    %v2800 = vunpack.c.h.b16 %v2582
    %v2801 = vunpack.c.l.b16 %v2583
    %v2802 = vunpack.c.h.b16 %v2583
    %v2803 = vunpack.c.l.b16 %v2584
    %v2804 = vunpack.c.h.b16 %v2584
    %v2805 = vunpack.c.l.b16 %v2585
    %v2806 = vunpack.c.h.b16 %v2585
    %v2807 = vunpack.c.l.b16 %v2586
    %v2808 = vunpack.c.h.b16 %v2586
    %v2809 = vunpack.c.l.b16 %v2587
    %v2810 = vunpack.c.h.b16 %v2587
    %v2811 = vunpack.c.l.b16 %v2588
    %v2812 = vunpack.c.h.b16 %v2588
    %v2813 = vunpack.c.l.b16 %v2589
    %v2814 = vunpack.c.h.b16 %v2589
    %v2815 = vunpack.c.l.b16 %v2590
    %v2816 = vunpack.c.h.b16 %v2590
    %v2817 = vunpack.c.l.b16 %v2591
    %v2818 = vunpack.c.h.b16 %v2591
    %v2819 = vunpack.c.l.b16 %v2592
    %v2820 = vunpack.c.h.b16 %v2592
    %v2821 = vunpack.c.l.b16 %v2593
    %v2822 = vunpack.c.h.b16 %v2593
    %v2823 = vunpack.c.l.b16 %v2594
    %v2824 = vunpack.c.h.b16 %v2594
    %v2825 = vunpack.c.l.b16 %v2595
    %v2826 = vunpack.c.h.b16 %v2595
    %v2827 = vunpack.c.l.b16 %v2596
    %v2828 = vunpack.c.h.b16 %v2596
    %v2829 = vunpack.c.l.b16 %v2597
    %v2830 = vunpack.c.h.b16 %v2597
    %v2831 = vunpack.c.l.b16 %v2598
    %v2832 = vunpack.c.h.b16 %v2598
    %v2833 = vunpack.c.l.b16 %v2599
    %v2834 = vunpack.c.h.b16 %v2599
    %v2835 = vunpack.c.l.b16 %v2600
    %v2836 = vunpack.c.h.b16 %v2600
    %v2837 = vunpack.c.l.b16 %v2601
    %v2838 = vunpack.c.h.b16 %v2601
    %v2839 = vunpack.c.l.b16 %v2602
    %v2840 = vunpack.c.h.b16 %v2602
    %v2841 = vunpack.c.l.b16 %v2603
    %v2842 = vunpack.c.h.b16 %v2603
    %v2843 = vunpack.c.l.b16 %v2604
    %v2844 = vunpack.c.h.b16 %v2604
    %v2845 = vunpack.c.l.b16 %v2605
    %v2846 = vunpack.c.h.b16 %v2605
    %v2847 = vunpack.c.l.b16 %v2606
    %v2848 = vunpack.c.h.b16 %v2606
    %v2849 = vunpack.c.l.b16 %v2607
    %v2850 = vunpack.c.h.b16 %v2607
    %v2851 = vunpack.c.l.b16 %v2608
    %v2852 = vunpack.c.h.b16 %v2608
    %v2853 = vunpack.c.l.b16 %v2609
    %v2854 = vunpack.c.h.b16 %v2609
    %v2855 = vunpack.c.l.b16 %v2610
    %v2856 = vunpack.c.h.b16 %v2610
    %v2857 = vunpack.c.l.b16 %v2611
    %v2858 = vunpack.c.h.b16 %v2611
    %v2859 = vunpack.c.l.b16 %v2612
    %v2860 = vunpack.c.h.b16 %v2612
    %v2861 = vunpack.c.l.b16 %v2613
    %v2862 = vunpack.c.h.b16 %v2613
    %v2863 = vunpack.c.l.b16 %v2614
    %v2864 = vunpack.c.h.b16 %v2614
    %v2865 = vunpack.c.l.b16 %v2615
    %v2866 = vunpack.c.h.b16 %v2615
    %v2867 = vunpack.c.l.b16 %v2616
    %v2868 = vunpack.c.h.b16 %v2616
    %v2869 = vunpack.c.l.b16 %v2617
    %v2870 = vunpack.c.h.b16 %v2617
    %v2871 = vunpack.c.l.b16 %v2618
    %v2872 = vunpack.c.h.b16 %v2618
    %v2873 = vunpack.c.l.b16 %v2619
    %v2874 = vunpack.c.h.b16 %v2619
    %v2875 = vunpack.c.l.b16 %v2620
    %v2876 = vunpack.c.h.b16 %v2620
    %v2877 = vunpack.c.l.b16 %v2621
    %v2878 = vunpack.c.h.b16 %v2621
    %v2879 = vunpack.c.l.b16 %v2622
    %v2880 = vunpack.c.h.b16 %v2622
    %v2881 = vunpack.c.l.b16 %v2623
    %v2882 = vunpack.c.h.b16 %v2623
    %v2883 = vunpack.c.l.b16 %v2624
    %v2884 = vunpack.c.h.b16 %v2624
    %v2885 = vunpack.c.l.b16 %v2625
    %v2886 = vunpack.c.h.b16 %v2625
    %v2887 = vunpack.c.l.b16 %v2626
    %v2888 = vunpack.c.h.b16 %v2626
    %v2889 = vunpack.c.l.b16 %v2627
    %v2890 = vunpack.c.h.b16 %v2627
    %v2891 = vunpack.c.l.b16 %v2628
    %v2892 = vunpack.c.h.b16 %v2628
    %v2893 = vunpack.c.l.b16 %v2629
    %v2894 = vunpack.c.h.b16 %v2629
    %v2895 = vunpack.c.l.b16 %v2630
    %v2896 = vunpack.c.h.b16 %v2630
    %v2897 = vunpack.c.l.b16 %v2631
    %v2898 = vunpack.c.h.b16 %v2631
    %v2899 = vunpack.c.l.b16 %v2632
    %v2900 = vunpack.c.h.b16 %v2632
    %v2901 = vunpack.c.l.b16 %v2633
    %v2902 = vunpack.c.h.b16 %v2633
    %v2903 = vunpack.c.l.b16 %v2634
    %v2904 = vunpack.c.h.b16 %v2634
    %v2905 = vunpack.c.l.b16 %v2635
    %v2906 = vunpack.c.h.b16 %v2635
    %v2907 = vunpack.c.l.b16 %v2636
    %v2908 = vunpack.c.h.b16 %v2636
    %v2909 = vunpack.c.l.b16 %v2637
    %v2910 = vunpack.c.h.b16 %v2637
    %v2911 = vunpack.c.l.b16 %v2638
    %v2912 = vunpack.c.h.b16 %v2638
    %v2913 = vunpack.c.l.b16 %v2639
    %v2914 = vunpack.c.h.b16 %v2639
    %v2915 = vunpack.c.l.b16 %v2640
    %v2916 = vunpack.c.h.b16 %v2640
    %v2917 = vunpack.c.l.b16 %v2641
    %v2918 = vunpack.c.h.b16 %v2641
    %v2919 = vunpack.c.l.b16 %v2642
    %v2920 = vunpack.c.h.b16 %v2642
    %v2921 = vunpack.c.l.b16 %v2643
    %v2922 = vunpack.c.h.b16 %v2643
    %v2923 = vunpack.c.l.b16 %v2644
    %v2924 = vunpack.c.h.b16 %v2644
    %v2925 = vunpack.c.l.b16 %v2645
    %v2926 = vunpack.c.h.b16 %v2645
    %v2927 = vunpack.c.l.b16 %v2646
    %v2928 = vunpack.c.h.b16 %v2646
    %v2929 = vunpack.c.l.b16 %v2647
    %v2930 = vunpack.c.h.b16 %v2647
    %v2931 = vunpack.c.l.b16 %v2648
    %v2932 = vunpack.c.h.b16 %v2648
    %v2933 = vunpack.c.l.b16 %v2649
    %v2934 = vunpack.c.h.b16 %v2649
    %v2935 = vunpack.c.l.b16 %v2650
    %v2936 = vunpack.c.h.b16 %v2650
    %v2937 = vunpack.c.l.b16 %v2651
    %v2938 = vunpack.c.h.b16 %v2651
    %v2939 = vunpack.c.l.b16 %v2652
    %v2940 = vunpack.c.h.b16 %v2652
    %v2941 = vunpack.c.l.b16 %v2653
    %v2942 = vunpack.c.h.b16 %v2653
    %v2943 = vunpack.c.l.b16 %v2654
    %v2944 = vunpack.c.h.b16 %v2654
    %v2945 = vunpack.c.l.b16 %v2655
    %v2946 = vunpack.c.h.b16 %v2655
    %v2947 = vunpack.c.l.b16 %v2656
    %v2948 = vunpack.c.h.b16 %v2656
    %v2949 = vunpack.c.l.b16 %v2657
    %v2950 = vunpack.c.h.b16 %v2657
    %v2951 = vunpack.c.l.b16 %v2658
    %v2952 = vunpack.c.h.b16 %v2658
    %v2953 = vpack.c.b16 %v2763, %v2761
    %v2954 = vpack.c.b16 %v2764, %v2762
    %v2955 = vpack.c.b16 %v2767, %v2765
    %v2956 = vpack.c.b16 %v2768, %v2766
    %v2957 = vpack.c.b16 %v2771, %v2769
    %v2958 = vpack.c.b16 %v2772, %v2770
    %v2959 = vpack.c.b16 %v2775, %v2773
    %v2960 = vpack.c.b16 %v2776, %v2774
    %v2961 = vpack.c.b16 %v2779, %v2777
    %v2962 = vpack.c.b16 %v2780, %v2778
    %v2963 = vpack.c.b16 %v2783, %v2781
    %v2964 = vpack.c.b16 %v2784, %v2782
    %v2965 = vpack.c.b16 %v2787, %v2785
    %v2966 = vpack.c.b16 %v2788, %v2786
    %v2967 = vpack.c.b16 %v2791, %v2789
    %v2968 = vpack.c.b16 %v2792, %v2790
    %v2969 = vpack.c.b16 %v2795, %v2793
    %v2970 = vpack.c.b16 %v2796, %v2794
    %v2971 = vpack.c.b16 %v2799, %v2797
    %v2972 = vpack.c.b16 %v2800, %v2798
    %v2973 = vpack.c.b16 %v2803, %v2801
    %v2974 = vpack.c.b16 %v2804, %v2802
    %v2975 = vpack.c.b16 %v2807, %v2805
    %v2976 = vpack.c.b16 %v2808, %v2806
    %v2977 = vpack.c.b16 %v2811, %v2809
    %v2978 = vpack.c.b16 %v2812, %v2810
    %v2979 = vpack.c.b16 %v2815, %v2813
    %v2980 = vpack.c.b16 %v2816, %v2814
    %v2981 = vpack.c.b16 %v2819, %v2817
    %v2982 = vpack.c.b16 %v2820, %v2818
    %v2983 = vpack.c.b16 %v2823, %v2821
    %v2984 = vpack.c.b16 %v2824, %v2822
    %v2985 = vpack.c.b16 %v2827, %v2825
    %v2986 = vpack.c.b16 %v2828, %v2826
    %v2987 = vpack.c.b16 %v2831, %v2829
    %v2988 = vpack.c.b16 %v2832, %v2830
    %v2989 = vpack.c.b16 %v2835, %v2833
    %v2990 = vpack.c.b16 %v2836, %v2834
    %v2991 = vpack.c.b16 %v2839, %v2837
    %v2992 = vpack.c.b16 %v2840, %v2838
    %v2993 = vpack.c.b16 %v2843, %v2841
    %v2994 = vpack.c.b16 %v2844, %v2842
    %v2995 = vpack.c.b16 %v2847, %v2845
    %v2996 = vpack.c.b16 %v2848, %v2846
    %v2997 = vpack.c.b16 %v2851, %v2849
    %v2998 = vpack.c.b16 %v2852, %v2850
    %v2999 = vpack.c.b16 %v2855, %v2853
    %v3000 = vpack.c.b16 %v2856, %v2854
    %v3001 = vpack.c.b16 %v2859, %v2857
    %v3002 = vpack.c.b16 %v2860, %v2858
    %v3003 = vpack.c.b16 %v2863, %v2861
    %v3004 = vpack.c.b16 %v2864, %v2862
    %v3005 = vpack.c.b16 %v2867, %v2865
    %v3006 = vpack.c.b16 %v2868, %v2866
    %v3007 = vpack.c.b16 %v2871, %v2869
    %v3008 = vpack.c.b16 %v2872, %v2870
    %v3009 = vpack.c.b16 %v2875, %v2873
    %v3010 = vpack.c.b16 %v2876, %v2874
    %v3011 = vpack.c.b16 %v2879, %v2877
    %v3012 = vpack.c.b16 %v2880, %v2878
    %v3013 = vpack.c.b16 %v2883, %v2881
    %v3014 = vpack.c.b16 %v2884, %v2882
    %v3015 = vpack.c.b16 %v2887, %v2885
    %v3016 = vpack.c.b16 %v2888, %v2886
    %v3017 = vpack.c.b16 %v2891, %v2889
    %v3018 = vpack.c.b16 %v2892, %v2890
    %v3019 = vpack.c.b16 %v2895, %v2893
    %v3020 = vpack.c.b16 %v2896, %v2894
    %v3021 = vpack.c.b16 %v2899, %v2897
    %v3022 = vpack.c.b16 %v2900, %v2898
    %v3023 = vpack.c.b16 %v2903, %v2901
    %v3024 = vpack.c.b16 %v2904, %v2902
    %v3025 = vpack.c.b16 %v2907, %v2905
    %v3026 = vpack.c.b16 %v2908, %v2906
    %v3027 = vpack.c.b16 %v2911, %v2909
    %v3028 = vpack.c.b16 %v2912, %v2910
    %v3029 = vpack.c.b16 %v2915, %v2913
    %v3030 = vpack.c.b16 %v2916, %v2914
    %v3031 = vpack.c.b16 %v2919, %v2917
    %v3032 = vpack.c.b16 %v2920, %v2918
    %v3033 = vpack.c.b16 %v2923, %v2921
    %v3034 = vpack.c.b16 %v2924, %v2922
    %v3035 = vpack.c.b16 %v2927, %v2925
    %v3036 = vpack.c.b16 %v2928, %v2926
    %v3037 = vpack.c.b16 %v2931, %v2929
    %v3038 = vpack.c.b16 %v2932, %v2930
    %v3039 = vpack.c.b16 %v2935, %v2933
    %v3040 = vpack.c.b16 %v2936, %v2934
    %v3041 = vpack.c.b16 %v2939, %v2937
    %v3042 = vpack.c.b16 %v2940, %v2938
    %v3043 = vpack.c.b16 %v2943, %v2941
    %v3044 = vpack.c.b16 %v2944, %v2942
    %v3045 = vpack.c.b16 %v2947, %v2945
    %v3046 = vpack.c.b16 %v2948, %v2946
    %v3047 = vpack.c.b16 %v2951, %v2949
    %v3048 = vpack.c.b16 %v2952, %v2950
    %3145 = vmatpush.bf16.msra.mxu0 %v2967
    %3146 = vmatpush.bf16.msra.mxu0 %v2965
    %3147 = vmatpush.bf16.msra.mxu0 %v2963
    %3148 = vmatpush.bf16.msra.mxu0 %v2961
    %3149 = vmatpush.bf16.msra.mxu0 %v2959
    %3150 = vmatpush.bf16.msra.mxu0 %v2957
    %3151 = vmatpush.bf16.msra.mxu0 %v2955
    %3152 = vmatpush.bf16.msra.mxu0 %v2953
    %3153 = vmatmul.bf16.gmra.mxu0 %v2441
    %v3154 = vpop.f32.mrf.mxu0
    %v3155 = vadd.f32 %v2661, %v3154
    %v3156 = vpop.f32.mrf.mxu0
    %v3157 = vadd.f32 %v2661, %v3156
    %3158 = vmatmul.bf16.gmra.mxu0 %v2443
    %v3159 = vpop.f32.mrf.mxu0
    %v3160 = vadd.f32 %v2661, %v3159
    %v3161 = vpop.f32.mrf.mxu0
    %v3162 = vadd.f32 %v2661, %v3161
    %3163 = vmatmul.bf16.gmra.mxu0 %v2445
    %v3164 = vpop.f32.mrf.mxu0
    %v3165 = vadd.f32 %v2661, %v3164
    %v3166 = vpop.f32.mrf.mxu0
    %v3167 = vadd.f32 %v2661, %v3166
    %3168 = vmatmul.bf16.gmra.mxu0 %v2447
    %v3169 = vpop.f32.mrf.mxu0
    %v3170 = vadd.f32 %v2661, %v3169
    %v3171 = vpop.f32.mrf.mxu0
    %v3172 = vadd.f32 %v2661, %v3171
    %3173 = vmatmul.bf16.gmra.mxu0 %v2449
    %v3174 = vpop.f32.mrf.mxu0
    %v3175 = vadd.f32 %v2661, %v3174
    %v3176 = vpop.f32.mrf.mxu0
    %v3177 = vadd.f32 %v2661, %v3176
    %3178 = vmatmul.bf16.gmra.mxu0 %v2451
    %v3179 = vpop.f32.mrf.mxu0
    %v3180 = vadd.f32 %v2661, %v3179
    %v3181 = vpop.f32.mrf.mxu0
    %v3182 = vadd.f32 %v2661, %v3181
    %3183 = vmatmul.bf16.gmra.mxu0 %v2453
    %v3184 = vpop.f32.mrf.mxu0
    %v3185 = vadd.f32 %v2661, %v3184
    %v3186 = vpop.f32.mrf.mxu0
    %v3187 = vadd.f32 %v2661, %v3186
    %3188 = vmatmul.bf16.gmra.mxu0 %v2455
    %v3189 = vpop.f32.mrf.mxu0
    %v3190 = vadd.f32 %v2661, %v3189
    %v3191 = vpop.f32.mrf.mxu0
    %v3192 = vadd.f32 %v2661, %v3191
    %3193 = vdwg.mxu0
    %3194 = vmatpush.bf16.msra.mxu0 %v2983
    %3195 = vmatpush.bf16.msra.mxu0 %v2981
    %3196 = vmatpush.bf16.msra.mxu0 %v2979
    %3197 = vmatpush.bf16.msra.mxu0 %v2977
    %3198 = vmatpush.bf16.msra.mxu0 %v2975
    %3199 = vmatpush.bf16.msra.mxu0 %v2973
    %3200 = vmatpush.bf16.msra.mxu0 %v2971
    %3201 = vmatpush.bf16.msra.mxu0 %v2969
    %3202 = vmatmul.bf16.gmra.mxu0 %v2442
    %v3203 = vpop.f32.mrf.mxu0
    %v3204 = vadd.f32 %v3155, %v3203
    %v3205 = vpop.f32.mrf.mxu0
    %v3206 = vadd.f32 %v3157, %v3205
    %3207 = vmatmul.bf16.gmra.mxu0 %v2444
    %v3208 = vpop.f32.mrf.mxu0
    %v3209 = vadd.f32 %v3160, %v3208
    %v3210 = vpop.f32.mrf.mxu0
    %v3211 = vadd.f32 %v3162, %v3210
    %3212 = vmatmul.bf16.gmra.mxu0 %v2446
    %v3213 = vpop.f32.mrf.mxu0
    %v3214 = vadd.f32 %v3165, %v3213
    %v3215 = vpop.f32.mrf.mxu0
    %v3216 = vadd.f32 %v3167, %v3215
    %3217 = vmatmul.bf16.gmra.mxu0 %v2448
    %v3218 = vpop.f32.mrf.mxu0
    %v3219 = vadd.f32 %v3170, %v3218
    %v3220 = vpop.f32.mrf.mxu0
    %v3221 = vadd.f32 %v3172, %v3220
    %3222 = vmatmul.bf16.gmra.mxu0 %v2450
    %v3223 = vpop.f32.mrf.mxu0
    %v3224 = vadd.f32 %v3175, %v3223
    %v3225 = vpop.f32.mrf.mxu0
    %v3226 = vadd.f32 %v3177, %v3225
    %3227 = vmatmul.bf16.gmra.mxu0 %v2452
    %v3228 = vpop.f32.mrf.mxu0
    %v3229 = vadd.f32 %v3180, %v3228
    %v3230 = vpop.f32.mrf.mxu0
    %v3231 = vadd.f32 %v3182, %v3230
    %3232 = vmatmul.bf16.gmra.mxu0 %v2454
    %v3233 = vpop.f32.mrf.mxu0
    %v3234 = vadd.f32 %v3185, %v3233
    %v3235 = vpop.f32.mrf.mxu0
    %v3236 = vadd.f32 %v3187, %v3235
    %3237 = vmatmul.bf16.gmra.mxu0 %v2456
    %v3238 = vpop.f32.mrf.mxu0
    %v3239 = vadd.f32 %v3190, %v3238
    %v3240 = vpop.f32.mrf.mxu0
    %v3241 = vadd.f32 %v3192, %v3240
    %3242 = vdwg.mxu0
    %3243 = vmatpush.bf16.msra.mxu0 %v2999
    %3244 = vmatpush.bf16.msra.mxu0 %v2997
    %3245 = vmatpush.bf16.msra.mxu0 %v2995
    %3246 = vmatpush.bf16.msra.mxu0 %v2993
    %3247 = vmatpush.bf16.msra.mxu0 %v2991
    %3248 = vmatpush.bf16.msra.mxu0 %v2989
    %3249 = vmatpush.bf16.msra.mxu0 %v2987
    %3250 = vmatpush.bf16.msra.mxu0 %v2985
    %3251 = vmatmul.bf16.gmra.mxu0 %v2443
    %v3252 = vpop.f32.mrf.mxu0
    %v3253 = vadd.f32 %v3204, %v3252
    %v3254 = vpop.f32.mrf.mxu0
    %v3255 = vadd.f32 %v3206, %v3254
    %3256 = vmatmul.bf16.gmra.mxu0 %v2445
    %v3257 = vpop.f32.mrf.mxu0
    %v3258 = vadd.f32 %v3209, %v3257
    %v3259 = vpop.f32.mrf.mxu0
    %v3260 = vadd.f32 %v3211, %v3259
    %3261 = vmatmul.bf16.gmra.mxu0 %v2447
    %v3262 = vpop.f32.mrf.mxu0
    %v3263 = vadd.f32 %v3214, %v3262
    %v3264 = vpop.f32.mrf.mxu0
    %v3265 = vadd.f32 %v3216, %v3264
    %3266 = vmatmul.bf16.gmra.mxu0 %v2449
    %v3267 = vpop.f32.mrf.mxu0
    %v3268 = vadd.f32 %v3219, %v3267
    %v3269 = vpop.f32.mrf.mxu0
    %v3270 = vadd.f32 %v3221, %v3269
    %3271 = vmatmul.bf16.gmra.mxu0 %v2451
    %v3272 = vpop.f32.mrf.mxu0
    %v3273 = vadd.f32 %v3224, %v3272
    %v3274 = vpop.f32.mrf.mxu0
    %v3275 = vadd.f32 %v3226, %v3274
    %3276 = vmatmul.bf16.gmra.mxu0 %v2453
    %v3277 = vpop.f32.mrf.mxu0
    %v3278 = vadd.f32 %v3229, %v3277
    %v3279 = vpop.f32.mrf.mxu0
    %v3280 = vadd.f32 %v3231, %v3279
    %3281 = vmatmul.bf16.gmra.mxu0 %v2455
    %v3282 = vpop.f32.mrf.mxu0
    %v3283 = vadd.f32 %v3234, %v3282
    %v3284 = vpop.f32.mrf.mxu0
    %v3285 = vadd.f32 %v3236, %v3284
    %3286 = vmatmul.bf16.gmra.mxu0 %v2479
    %v3287 = vpop.f32.mrf.mxu0
    %v3288 = vadd.f32 %v3239, %v3287
    %v3289 = vpop.f32.mrf.mxu0
    %v3290 = vadd.f32 %v3241, %v3289
    %3291 = vdwg.mxu0
    %3292 = vmatpush.bf16.msra.mxu0 %v3015
    %3293 = vmatpush.bf16.msra.mxu0 %v3013
    %3294 = vmatpush.bf16.msra.mxu0 %v3011
    %3295 = vmatpush.bf16.msra.mxu0 %v3009
    %3296 = vmatpush.bf16.msra.mxu0 %v3007
    %3297 = vmatpush.bf16.msra.mxu0 %v3005
    %3298 = vmatpush.bf16.msra.mxu0 %v3003
    %3299 = vmatpush.bf16.msra.mxu0 %v3001
    %3300 = vmatmul.bf16.gmra.mxu0 %v2444
    %v3301 = vpop.f32.mrf.mxu0
    %v3302 = vadd.f32 %v3253, %v3301
    %v3303 = vpop.f32.mrf.mxu0
    %v3304 = vadd.f32 %v3255, %v3303
    %3305 = vmatmul.bf16.gmra.mxu0 %v2446
    %v3306 = vpop.f32.mrf.mxu0
    %v3307 = vadd.f32 %v3258, %v3306
    %v3308 = vpop.f32.mrf.mxu0
    %v3309 = vadd.f32 %v3260, %v3308
    %3310 = vmatmul.bf16.gmra.mxu0 %v2448
    %v3311 = vpop.f32.mrf.mxu0
    %v3312 = vadd.f32 %v3263, %v3311
    %v3313 = vpop.f32.mrf.mxu0
    %v3314 = vadd.f32 %v3265, %v3313
    %3315 = vmatmul.bf16.gmra.mxu0 %v2450
    %v3316 = vpop.f32.mrf.mxu0
    %v3317 = vadd.f32 %v3268, %v3316
    %v3318 = vpop.f32.mrf.mxu0
    %v3319 = vadd.f32 %v3270, %v3318
    %3320 = vmatmul.bf16.gmra.mxu0 %v2452
    %v3321 = vpop.f32.mrf.mxu0
    %v3322 = vadd.f32 %v3273, %v3321
    %v3323 = vpop.f32.mrf.mxu0
    %v3324 = vadd.f32 %v3275, %v3323
    %3325 = vmatmul.bf16.gmra.mxu0 %v2454
    %v3326 = vpop.f32.mrf.mxu0
    %v3327 = vadd.f32 %v3278, %v3326
    %v3328 = vpop.f32.mrf.mxu0
    %v3329 = vadd.f32 %v3280, %v3328
    %3330 = vmatmul.bf16.gmra.mxu0 %v2456
    %v3331 = vpop.f32.mrf.mxu0
    %v3332 = vadd.f32 %v3283, %v3331
    %v3333 = vpop.f32.mrf.mxu0
    %v3334 = vadd.f32 %v3285, %v3333
    %3335 = vmatmul.bf16.gmra.mxu0 %v2480
    %v3336 = vpop.f32.mrf.mxu0
    %v3337 = vadd.f32 %v3288, %v3336
    %v3338 = vpop.f32.mrf.mxu0
    %v3339 = vadd.f32 %v3290, %v3338
    %3340 = vdwg.mxu0
    %3341 = vmatpush.bf16.msra.mxu0 %v3031
    %3342 = vmatpush.bf16.msra.mxu0 %v3029
    %3343 = vmatpush.bf16.msra.mxu0 %v3027
    %3344 = vmatpush.bf16.msra.mxu0 %v3025
    %3345 = vmatpush.bf16.msra.mxu0 %v3023
    %3346 = vmatpush.bf16.msra.mxu0 %v3021
    %3347 = vmatpush.bf16.msra.mxu0 %v3019
    %3348 = vmatpush.bf16.msra.mxu0 %v3017
    %3349 = vmatmul.bf16.gmra.mxu0 %v2531
    %v3350 = vpop.f32.mrf.mxu0
    %v3351 = vadd.f32 %v3302, %v3350
    %v3352 = vpop.f32.mrf.mxu0
    %v3353 = vadd.f32 %v3304, %v3352
    %3354 = vmatmul.bf16.gmra.mxu0 %v2533
    %v3355 = vpop.f32.mrf.mxu0
    %v3356 = vadd.f32 %v3307, %v3355
    %v3357 = vpop.f32.mrf.mxu0
    %v3358 = vadd.f32 %v3309, %v3357
    %3359 = vmatmul.bf16.gmra.mxu0 %v2535
    %v3360 = vpop.f32.mrf.mxu0
    %v3361 = vadd.f32 %v3312, %v3360
    %v3362 = vpop.f32.mrf.mxu0
    %v3363 = vadd.f32 %v3314, %v3362
    %3364 = vmatmul.bf16.gmra.mxu0 %v2537
    %v3365 = vpop.f32.mrf.mxu0
    %v3366 = vadd.f32 %v3317, %v3365
    %v3367 = vpop.f32.mrf.mxu0
    %v3368 = vadd.f32 %v3319, %v3367
    %3369 = vmatmul.bf16.gmra.mxu0 %v2539
    %v3370 = vpop.f32.mrf.mxu0
    %v3371 = vadd.f32 %v3322, %v3370
    %v3372 = vpop.f32.mrf.mxu0
    %v3373 = vadd.f32 %v3324, %v3372
    %3374 = vmatmul.bf16.gmra.mxu0 %v2541
    %v3375 = vpop.f32.mrf.mxu0
    %v3376 = vadd.f32 %v3327, %v3375
    %v3377 = vpop.f32.mrf.mxu0
    %v3378 = vadd.f32 %v3329, %v3377
    %3379 = vmatmul.bf16.gmra.mxu0 %v2543
    %v3380 = vpop.f32.mrf.mxu0
    %v3381 = vadd.f32 %v3332, %v3380
    %v3382 = vpop.f32.mrf.mxu0
    %v3383 = vadd.f32 %v3334, %v3382
    %3384 = vmatmul.bf16.gmra.mxu0 %v2545
    %v3385 = vpop.f32.mrf.mxu0
    %v3386 = vadd.f32 %v3337, %v3385
    %v3387 = vpop.f32.mrf.mxu0
    %v3388 = vadd.f32 %v3339, %v3387
    %3389 = vdwg.mxu0
    %3390 = vmatpush.bf16.msra.mxu0 %v3047
    %3391 = vmatpush.bf16.msra.mxu0 %v3045
    %3392 = vmatpush.bf16.msra.mxu0 %v3043
    %3393 = vmatpush.bf16.msra.mxu0 %v3041
    %3394 = vmatpush.bf16.msra.mxu0 %v3039
    %3395 = vmatpush.bf16.msra.mxu0 %v3037
    %3396 = vmatpush.bf16.msra.mxu0 %v3035
    %3397 = vmatpush.bf16.msra.mxu0 %v3033
    %3398 = vmatmul.bf16.gmra.mxu0 %v2532
    %v3399 = vpop.f32.mrf.mxu0
    %v3400 = vadd.f32 %v3351, %v3399
    %v3401 = vpop.f32.mrf.mxu0
    %v3402 = vadd.f32 %v3353, %v3401
    %3403 = vmatmul.bf16.gmra.mxu0 %v2534
    %v3404 = vpop.f32.mrf.mxu0
    %v3405 = vadd.f32 %v3356, %v3404
    %v3406 = vpop.f32.mrf.mxu0
    %v3407 = vadd.f32 %v3358, %v3406
    %3408 = vmatmul.bf16.gmra.mxu0 %v2536
    %v3409 = vpop.f32.mrf.mxu0
    %v3410 = vadd.f32 %v3361, %v3409
    %v3411 = vpop.f32.mrf.mxu0
    %v3412 = vadd.f32 %v3363, %v3411
    %3413 = vmatmul.bf16.gmra.mxu0 %v2538
    %v3414 = vpop.f32.mrf.mxu0
    %v3415 = vadd.f32 %v3366, %v3414
    %v3416 = vpop.f32.mrf.mxu0
    %v3417 = vadd.f32 %v3368, %v3416
    %3418 = vmatmul.bf16.gmra.mxu0 %v2540
    %v3419 = vpop.f32.mrf.mxu0
    %v3420 = vadd.f32 %v3371, %v3419
    %v3421 = vpop.f32.mrf.mxu0
    %v3422 = vadd.f32 %v3373, %v3421
    %3423 = vmatmul.bf16.gmra.mxu0 %v2542
    %v3424 = vpop.f32.mrf.mxu0
    %v3425 = vadd.f32 %v3376, %v3424
    %v3426 = vpop.f32.mrf.mxu0
    %v3427 = vadd.f32 %v3378, %v3426
    %3428 = vmatmul.bf16.gmra.mxu0 %v2544
    %v3429 = vpop.f32.mrf.mxu0
    %v3430 = vadd.f32 %v3381, %v3429
    %v3431 = vpop.f32.mrf.mxu0
    %v3432 = vadd.f32 %v3383, %v3431
    %3433 = vmatmul.bf16.gmra.mxu0 %v2546
    %v3434 = vpop.f32.mrf.mxu0
    %v3435 = vadd.f32 %v3386, %v3434
    %v3436 = vpop.f32.mrf.mxu0
    %v3437 = vadd.f32 %v3388, %v3436
    %3438 = vdwg.mxu0
    %3439 = vmatpush.bf16.msra.mxu0 %v2968
    %3440 = vmatpush.bf16.msra.mxu0 %v2966
    %3441 = vmatpush.bf16.msra.mxu0 %v2964
    %3442 = vmatpush.bf16.msra.mxu0 %v2962
    %3443 = vmatpush.bf16.msra.mxu0 %v2960
    %3444 = vmatpush.bf16.msra.mxu0 %v2958
    %3445 = vmatpush.bf16.msra.mxu0 %v2956
    %3446 = vmatpush.bf16.msra.mxu0 %v2954
    %3447 = vmatmul.bf16.gmra.mxu0 %v2441
    %v3448 = vpop.f32.mrf.mxu0
    %v3449 = vadd.f32 %v2662, %v3448
    %v3450 = vpop.f32.mrf.mxu0
    %v3451 = vadd.f32 %v2662, %v3450
    %3452 = vmatmul.bf16.gmra.mxu0 %v2443
    %v3453 = vpop.f32.mrf.mxu0
    %v3454 = vadd.f32 %v2662, %v3453
    %v3455 = vpop.f32.mrf.mxu0
    %v3456 = vadd.f32 %v2662, %v3455
    %3457 = vmatmul.bf16.gmra.mxu0 %v2445
    %v3458 = vpop.f32.mrf.mxu0
    %v3459 = vadd.f32 %v2662, %v3458
    %v3460 = vpop.f32.mrf.mxu0
    %v3461 = vadd.f32 %v2662, %v3460
    %3462 = vmatmul.bf16.gmra.mxu0 %v2447
    %v3463 = vpop.f32.mrf.mxu0
    %v3464 = vadd.f32 %v2662, %v3463
    %v3465 = vpop.f32.mrf.mxu0
    %v3466 = vadd.f32 %v2662, %v3465
    %3467 = vmatmul.bf16.gmra.mxu0 %v2449
    %v3468 = vpop.f32.mrf.mxu0
    %v3469 = vadd.f32 %v2662, %v3468
    %v3470 = vpop.f32.mrf.mxu0
    %v3471 = vadd.f32 %v2662, %v3470
    %3472 = vmatmul.bf16.gmra.mxu0 %v2451
    %v3473 = vpop.f32.mrf.mxu0
    %v3474 = vadd.f32 %v2662, %v3473
    %v3475 = vpop.f32.mrf.mxu0
    %v3476 = vadd.f32 %v2662, %v3475
    %3477 = vmatmul.bf16.gmra.mxu0 %v2453
    %v3478 = vpop.f32.mrf.mxu0
    %v3479 = vadd.f32 %v2662, %v3478
    %v3480 = vpop.f32.mrf.mxu0
    %v3481 = vadd.f32 %v2662, %v3480
    %3482 = vmatmul.bf16.gmra.mxu0 %v2455
    %v3483 = vpop.f32.mrf.mxu0
    %v3484 = vadd.f32 %v2662, %v3483
    %v3485 = vpop.f32.mrf.mxu0
    %v3486 = vadd.f32 %v2662, %v3485
    %3487 = vdwg.mxu0
    %3488 = vmatpush.bf16.msra.mxu0 %v2984
    %3489 = vmatpush.bf16.msra.mxu0 %v2982
    %3490 = vmatpush.bf16.msra.mxu0 %v2980
    %3491 = vmatpush.bf16.msra.mxu0 %v2978
    %3492 = vmatpush.bf16.msra.mxu0 %v2976
    %3493 = vmatpush.bf16.msra.mxu0 %v2974
    %3494 = vmatpush.bf16.msra.mxu0 %v2972
    %3495 = vmatpush.bf16.msra.mxu0 %v2970
    %3496 = vmatmul.bf16.gmra.mxu0 %v2442
    %v3497 = vpop.f32.mrf.mxu0
    %v3498 = vadd.f32 %v3449, %v3497
    %v3499 = vpop.f32.mrf.mxu0
    %v3500 = vadd.f32 %v3451, %v3499
    %3501 = vmatmul.bf16.gmra.mxu0 %v2444
    %v3502 = vpop.f32.mrf.mxu0
    %v3503 = vadd.f32 %v3454, %v3502
    %v3504 = vpop.f32.mrf.mxu0
    %v3505 = vadd.f32 %v3456, %v3504
    %3506 = vmatmul.bf16.gmra.mxu0 %v2446
    %v3507 = vpop.f32.mrf.mxu0
    %v3508 = vadd.f32 %v3459, %v3507
    %v3509 = vpop.f32.mrf.mxu0
    %v3510 = vadd.f32 %v3461, %v3509
    %3511 = vmatmul.bf16.gmra.mxu0 %v2448
    %v3512 = vpop.f32.mrf.mxu0
    %v3513 = vadd.f32 %v3464, %v3512
    %v3514 = vpop.f32.mrf.mxu0
    %v3515 = vadd.f32 %v3466, %v3514
    %3516 = vmatmul.bf16.gmra.mxu0 %v2450
    %v3517 = vpop.f32.mrf.mxu0
    %v3518 = vadd.f32 %v3469, %v3517
    %v3519 = vpop.f32.mrf.mxu0
    %v3520 = vadd.f32 %v3471, %v3519
    %3521 = vmatmul.bf16.gmra.mxu0 %v2452
    %v3522 = vpop.f32.mrf.mxu0
    %v3523 = vadd.f32 %v3474, %v3522
    %v3524 = vpop.f32.mrf.mxu0
    %v3525 = vadd.f32 %v3476, %v3524
    %3526 = vmatmul.bf16.gmra.mxu0 %v2454
    %v3527 = vpop.f32.mrf.mxu0
    %v3528 = vadd.f32 %v3479, %v3527
    %v3529 = vpop.f32.mrf.mxu0
    %v3530 = vadd.f32 %v3481, %v3529
    %3531 = vmatmul.bf16.gmra.mxu0 %v2456
    %v3532 = vpop.f32.mrf.mxu0
    %v3533 = vadd.f32 %v3484, %v3532
    %v3534 = vpop.f32.mrf.mxu0
    %v3535 = vadd.f32 %v3486, %v3534
    %3536 = vdwg.mxu0
    %3537 = vmatpush.bf16.msra.mxu0 %v3000
    %3538 = vmatpush.bf16.msra.mxu0 %v2998
    %3539 = vmatpush.bf16.msra.mxu0 %v2996
    %3540 = vmatpush.bf16.msra.mxu0 %v2994
    %3541 = vmatpush.bf16.msra.mxu0 %v2992
    %3542 = vmatpush.bf16.msra.mxu0 %v2990
    %3543 = vmatpush.bf16.msra.mxu0 %v2988
    %3544 = vmatpush.bf16.msra.mxu0 %v2986
    %3545 = vmatmul.bf16.gmra.mxu0 %v2443
    %v3546 = vpop.f32.mrf.mxu0
    %v3547 = vadd.f32 %v3498, %v3546
    %v3548 = vpop.f32.mrf.mxu0
    %v3549 = vadd.f32 %v3500, %v3548
    %3550 = vmatmul.bf16.gmra.mxu0 %v2445
    %v3551 = vpop.f32.mrf.mxu0
    %v3552 = vadd.f32 %v3503, %v3551
    %v3553 = vpop.f32.mrf.mxu0
    %v3554 = vadd.f32 %v3505, %v3553
    %3555 = vmatmul.bf16.gmra.mxu0 %v2447
    %v3556 = vpop.f32.mrf.mxu0
    %v3557 = vadd.f32 %v3508, %v3556
    %v3558 = vpop.f32.mrf.mxu0
    %v3559 = vadd.f32 %v3510, %v3558
    %3560 = vmatmul.bf16.gmra.mxu0 %v2449
    %v3561 = vpop.f32.mrf.mxu0
    %v3562 = vadd.f32 %v3513, %v3561
    %v3563 = vpop.f32.mrf.mxu0
    %v3564 = vadd.f32 %v3515, %v3563
    %3565 = vmatmul.bf16.gmra.mxu0 %v2451
    %v3566 = vpop.f32.mrf.mxu0
    %v3567 = vadd.f32 %v3518, %v3566
    %v3568 = vpop.f32.mrf.mxu0
    %v3569 = vadd.f32 %v3520, %v3568
    %3570 = vmatmul.bf16.gmra.mxu0 %v2453
    %v3571 = vpop.f32.mrf.mxu0
    %v3572 = vadd.f32 %v3523, %v3571
    %v3573 = vpop.f32.mrf.mxu0
    %v3574 = vadd.f32 %v3525, %v3573
    %3575 = vmatmul.bf16.gmra.mxu0 %v2455
    %v3576 = vpop.f32.mrf.mxu0
    %v3577 = vadd.f32 %v3528, %v3576
    %v3578 = vpop.f32.mrf.mxu0
    %v3579 = vadd.f32 %v3530, %v3578
    %3580 = vmatmul.bf16.gmra.mxu0 %v2479
    %v3581 = vpop.f32.mrf.mxu0
    %v3582 = vadd.f32 %v3533, %v3581
    %v3583 = vpop.f32.mrf.mxu0
    %v3584 = vadd.f32 %v3535, %v3583
    %3585 = vdwg.mxu0
    %3586 = vmatpush.bf16.msra.mxu0 %v3016
    %3587 = vmatpush.bf16.msra.mxu0 %v3014
    %3588 = vmatpush.bf16.msra.mxu0 %v3012
    %3589 = vmatpush.bf16.msra.mxu0 %v3010
    %3590 = vmatpush.bf16.msra.mxu0 %v3008
    %3591 = vmatpush.bf16.msra.mxu0 %v3006
    %3592 = vmatpush.bf16.msra.mxu0 %v3004
    %3593 = vmatpush.bf16.msra.mxu0 %v3002
    %3594 = vmatmul.bf16.gmra.mxu0 %v2444
    %v3595 = vpop.f32.mrf.mxu0
    %v3596 = vadd.f32 %v3547, %v3595
    %v3597 = vpop.f32.mrf.mxu0
    %v3598 = vadd.f32 %v3549, %v3597
    %3599 = vmatmul.bf16.gmra.mxu0 %v2446
    %v3600 = vpop.f32.mrf.mxu0
    %v3601 = vadd.f32 %v3552, %v3600
    %v3602 = vpop.f32.mrf.mxu0
    %v3603 = vadd.f32 %v3554, %v3602
    %3604 = vmatmul.bf16.gmra.mxu0 %v2448
    %v3605 = vpop.f32.mrf.mxu0
    %v3606 = vadd.f32 %v3557, %v3605
    %v3607 = vpop.f32.mrf.mxu0
    %v3608 = vadd.f32 %v3559, %v3607
    %3609 = vmatmul.bf16.gmra.mxu0 %v2450
    %v3610 = vpop.f32.mrf.mxu0
    %v3611 = vadd.f32 %v3562, %v3610
    %v3612 = vpop.f32.mrf.mxu0
    %v3613 = vadd.f32 %v3564, %v3612
    %3614 = vmatmul.bf16.gmra.mxu0 %v2452
    %v3615 = vpop.f32.mrf.mxu0
    %v3616 = vadd.f32 %v3567, %v3615
    %v3617 = vpop.f32.mrf.mxu0
    %v3618 = vadd.f32 %v3569, %v3617
    %3619 = vmatmul.bf16.gmra.mxu0 %v2454
    %v3620 = vpop.f32.mrf.mxu0
    %v3621 = vadd.f32 %v3572, %v3620
    %v3622 = vpop.f32.mrf.mxu0
    %v3623 = vadd.f32 %v3574, %v3622
    %3624 = vmatmul.bf16.gmra.mxu0 %v2456
    %v3625 = vpop.f32.mrf.mxu0
    %v3626 = vadd.f32 %v3577, %v3625
    %v3627 = vpop.f32.mrf.mxu0
    %v3628 = vadd.f32 %v3579, %v3627
    %3629 = vmatmul.bf16.gmra.mxu0 %v2480
    %v3630 = vpop.f32.mrf.mxu0
    %v3631 = vadd.f32 %v3582, %v3630
    %v3632 = vpop.f32.mrf.mxu0
    %v3633 = vadd.f32 %v3584, %v3632
    %3634 = vdwg.mxu0
    %3635 = vmatpush.bf16.msra.mxu0 %v3032
    %3636 = vmatpush.bf16.msra.mxu0 %v3030
    %3637 = vmatpush.bf16.msra.mxu0 %v3028
    %3638 = vmatpush.bf16.msra.mxu0 %v3026
    %3639 = vmatpush.bf16.msra.mxu0 %v3024
    %3640 = vmatpush.bf16.msra.mxu0 %v3022
    %3641 = vmatpush.bf16.msra.mxu0 %v3020
    %3642 = vmatpush.bf16.msra.mxu0 %v3018
    %3643 = vmatmul.bf16.gmra.mxu0 %v2531
    %v3644 = vpop.f32.mrf.mxu0
    %v3645 = vadd.f32 %v3596, %v3644
    %v3646 = vpop.f32.mrf.mxu0
    %v3647 = vadd.f32 %v3598, %v3646
    %3648 = vmatmul.bf16.gmra.mxu0 %v2533
    %v3649 = vpop.f32.mrf.mxu0
    %v3650 = vadd.f32 %v3601, %v3649
    %v3651 = vpop.f32.mrf.mxu0
    %v3652 = vadd.f32 %v3603, %v3651
    %3653 = vmatmul.bf16.gmra.mxu0 %v2535
    %v3654 = vpop.f32.mrf.mxu0
    %v3655 = vadd.f32 %v3606, %v3654
    %v3656 = vpop.f32.mrf.mxu0
    %v3657 = vadd.f32 %v3608, %v3656
    %3658 = vmatmul.bf16.gmra.mxu0 %v2537
    %v3659 = vpop.f32.mrf.mxu0
    %v3660 = vadd.f32 %v3611, %v3659
    %v3661 = vpop.f32.mrf.mxu0
    %v3662 = vadd.f32 %v3613, %v3661
    %3663 = vmatmul.bf16.gmra.mxu0 %v2539
    %v3664 = vpop.f32.mrf.mxu0
    %v3665 = vadd.f32 %v3616, %v3664
    %v3666 = vpop.f32.mrf.mxu0
    %v3667 = vadd.f32 %v3618, %v3666
    %3668 = vmatmul.bf16.gmra.mxu0 %v2541
    %v3669 = vpop.f32.mrf.mxu0
    %v3670 = vadd.f32 %v3621, %v3669
    %v3671 = vpop.f32.mrf.mxu0
    %v3672 = vadd.f32 %v3623, %v3671
    %3673 = vmatmul.bf16.gmra.mxu0 %v2543
    %v3674 = vpop.f32.mrf.mxu0
    %v3675 = vadd.f32 %v3626, %v3674
    %v3676 = vpop.f32.mrf.mxu0
    %v3677 = vadd.f32 %v3628, %v3676
    %3678 = vmatmul.bf16.gmra.mxu0 %v2545
    %v3679 = vpop.f32.mrf.mxu0
    %v3680 = vadd.f32 %v3631, %v3679
    %v3681 = vpop.f32.mrf.mxu0
    %v3682 = vadd.f32 %v3633, %v3681
    %3683 = vdwg.mxu0
    %3684 = vmatpush.bf16.msra.mxu0 %v3048
    %3685 = vmatpush.bf16.msra.mxu0 %v3046
    %3686 = vmatpush.bf16.msra.mxu0 %v3044
    %3687 = vmatpush.bf16.msra.mxu0 %v3042
    %3688 = vmatpush.bf16.msra.mxu0 %v3040
    %3689 = vmatpush.bf16.msra.mxu0 %v3038
    %3690 = vmatpush.bf16.msra.mxu0 %v3036
    %3691 = vmatpush.bf16.msra.mxu0 %v3034
    %3692 = vmatmul.bf16.gmra.mxu0 %v2532
    %v3693 = vpop.f32.mrf.mxu0
    %v3694 = vadd.f32 %v3645, %v3693
    %v3695 = vpop.f32.mrf.mxu0
    %v3696 = vadd.f32 %v3647, %v3695
    %3697 = vmatmul.bf16.gmra.mxu0 %v2534
    %v3698 = vpop.f32.mrf.mxu0
    %v3699 = vadd.f32 %v3650, %v3698
    %v3700 = vpop.f32.mrf.mxu0
    %v3701 = vadd.f32 %v3652, %v3700
    %3702 = vmatmul.bf16.gmra.mxu0 %v2536
    %v3703 = vpop.f32.mrf.mxu0
    %v3704 = vadd.f32 %v3655, %v3703
    %v3705 = vpop.f32.mrf.mxu0
    %v3706 = vadd.f32 %v3657, %v3705
    %3707 = vmatmul.bf16.gmra.mxu0 %v2538
    %v3708 = vpop.f32.mrf.mxu0
    %v3709 = vadd.f32 %v3660, %v3708
    %v3710 = vpop.f32.mrf.mxu0
    %v3711 = vadd.f32 %v3662, %v3710
    %3712 = vmatmul.bf16.gmra.mxu0 %v2540
    %v3713 = vpop.f32.mrf.mxu0
    %v3714 = vadd.f32 %v3665, %v3713
    %v3715 = vpop.f32.mrf.mxu0
    %v3716 = vadd.f32 %v3667, %v3715
    %3717 = vmatmul.bf16.gmra.mxu0 %v2542
    %v3718 = vpop.f32.mrf.mxu0
    %v3719 = vadd.f32 %v3670, %v3718
    %v3720 = vpop.f32.mrf.mxu0
    %v3721 = vadd.f32 %v3672, %v3720
    %3722 = vmatmul.bf16.gmra.mxu0 %v2544
    %v3723 = vpop.f32.mrf.mxu0
    %v3724 = vadd.f32 %v3675, %v3723
    %v3725 = vpop.f32.mrf.mxu0
    %v3726 = vadd.f32 %v3677, %v3725
    %3727 = vmatmul.bf16.gmra.mxu0 %v2546
    %v3728 = vpop.f32.mrf.mxu0
    %v3729 = vadd.f32 %v3680, %v3728
    %v3730 = vpop.f32.mrf.mxu0
    %v3731 = vadd.f32 %v3682, %v3730
    %3732 = vdwg.mxu0
    %v3733 = vmax.f32 %v3400, 0.0
    %v3734 = vmax.f32 %v3694, 0.0
    %v3735 = vmax.f32 %v3402, 0.0
    %v3736 = vmax.f32 %v3696, 0.0
    %v3737 = vmax.f32 %v3405, 0.0
    %v3738 = vmax.f32 %v3699, 0.0
    %v3739 = vmax.f32 %v3407, 0.0
    %v3740 = vmax.f32 %v3701, 0.0
    %v3741 = vmax.f32 %v3410, 0.0
    %v3742 = vmax.f32 %v3704, 0.0
    %v3743 = vmax.f32 %v3412, 0.0
    %v3744 = vmax.f32 %v3706, 0.0
    %v3745 = vmax.f32 %v3415, 0.0
    %v3746 = vmax.f32 %v3709, 0.0
    %v3747 = vmax.f32 %v3417, 0.0
    %v3748 = vmax.f32 %v3711, 0.0
    %v3749 = vmax.f32 %v3420, 0.0
    %v3750 = vmax.f32 %v3714, 0.0
    %v3751 = vmax.f32 %v3422, 0.0
    %v3752 = vmax.f32 %v3716, 0.0
    %v3753 = vmax.f32 %v3425, 0.0
    %v3754 = vmax.f32 %v3719, 0.0
    %v3755 = vmax.f32 %v3427, 0.0
    %v3756 = vmax.f32 %v3721, 0.0
    %v3757 = vmax.f32 %v3430, 0.0
    %v3758 = vmax.f32 %v3724, 0.0
    %v3759 = vmax.f32 %v3432, 0.0
    %v3760 = vmax.f32 %v3726, 0.0
    %v3761 = vmax.f32 %v3435, 0.0
    %v3762 = vmax.f32 %v3729, 0.0
    %v3763 = vmax.f32 %v3437, 0.0
    %v3764 = vmax.f32 %v3731, 0.0
    %v3765 = vmax.f32 %v3733, %v3737
    %v3766 = vmax.f32 %v3734, %v3738
    %v3767 = vmax.f32 %v3735, %v3739
    %v3768 = vmax.f32 %v3736, %v3740
    %v3769 = vmax.f32 %v3741, %v3745
    %v3770 = vmax.f32 %v3742, %v3746
    %v3771 = vmax.f32 %v3743, %v3747
    %v3772 = vmax.f32 %v3744, %v3748
    %v3773 = vmax.f32 %v3749, %v3753
    %v3774 = vmax.f32 %v3750, %v3754
    %v3775 = vmax.f32 %v3751, %v3755
    %v3776 = vmax.f32 %v3752, %v3756
    %v3777 = vmax.f32 %v3757, %v3761
    %v3778 = vmax.f32 %v3758, %v3762
    %v3779 = vmax.f32 %v3759, %v3763
    %v3780 = vmax.f32 %v3760, %v3764
    %v3781 = vmax.f32 %v3765, %v3766
    %v3782 = vmax.f32 %v3767, %v3768
    %v3783 = vmax.f32 %v3769, %v3770
    %v3784 = vmax.f32 %v3771, %v3772
    %v3785 = vmax.f32 %v3773, %v3774
    %v3786 = vmax.f32 %v3775, %v3776
    %v3787 = vmax.f32 %v3777, %v3778
    %v3788 = vmax.f32 %v3779, %v3780
    %3789 = vst [vmem:[#allocation4] sm:$0xf] 0
    %3790 = vst [vmem:[#allocation4 + $0x4] sm:$0xf] 0
    %3791 = vst [vmem:[#allocation4 + $0x28] sm:$0xf] 0
    %3792 = vst [vmem:[#allocation4 + $0x2c] sm:$0xf] 0
    %v3793 = vpack.c.bf16 %v3781, %v3781
    %v3794 = vpack.c.bf16 %v3782, %v3782
    %v3795 = vpack.c.bf16 %v3783, %v3783
    %v3796 = vpack.c.bf16 %v3784, %v3784
    %v3797 = vpack.c.bf16 %v3785, %v3785
    %v3798 = vpack.c.bf16 %v3786, %v3786
    %v3799 = vpack.c.bf16 %v3787, %v3787
    %v3800 = vpack.c.bf16 %v3788, %v3788
    %3801 = vst [vmem:[#allocation4 + $0x8] sm:$0xf] %v3793
    %3802 = vst [vmem:[#allocation4 + $0xc] sm:$0xf] %v3794
    %3803 = vst [vmem:[#allocation4 + $0x10] sm:$0xf] %v3795
    %3804 = vst [vmem:[#allocation4 + $0x14] sm:$0xf] %v3796
    %3805 = vst [vmem:[#allocation4 + $0x18] sm:$0xf] %v3797
    %3806 = vst [vmem:[#allocation4 + $0x1c] sm:$0xf] %v3798
    %3807 = vst [vmem:[#allocation4 + $0x20] sm:$0xf] %v3799
    %3808 = vst [vmem:[#allocation4 + $0x24] sm:$0xf] %v3800
    %v3809 = vld [vmem:[#allocation4] sm:$0xf]
    %v3810 = vld [vmem:[#allocation4 + $0x4] sm:$0xf]
    %v3811 = vld [vmem:[#allocation4 + $0x8] sm:$0xf]
    %v3812 = vld [vmem:[#allocation4 + $0xc] sm:$0xf]
    %v3813 = vld [vmem:[#allocation4 + $0x10] sm:$0xf]
    %v3814 = vld [vmem:[#allocation4 + $0x14] sm:$0xf]
    %v3815 = vld [vmem:[#allocation4 + $0x18] sm:$0xf]
    %v3816 = vld [vmem:[#allocation4 + $0x1c] sm:$0xf]
    %v3817 = vld [vmem:[#allocation4 + $0x20] sm:$0xf]
    %v3818 = vld [vmem:[#allocation4 + $0x24] sm:$0xf]
    %v3819 = vld [vmem:[#allocation4 + $0x10] sm:$0xf]
    %v3820 = vld [vmem:[#allocation4 + $0x14] sm:$0xf]
    %v3821 = vld [vmem:[#allocation4 + $0x18] sm:$0xf]
    %v3822 = vld [vmem:[#allocation4 + $0x1c] sm:$0xf]
    %v3823 = vld [vmem:[#allocation4 + $0x20] sm:$0xf]
    %v3824 = vld [vmem:[#allocation4 + $0x24] sm:$0xf]
    %v3825 = vld [vmem:[#allocation4 + $0x28] sm:$0xf]
    %v3826 = vld [vmem:[#allocation4 + $0x2c] sm:$0xf]
    %v3835 = vunpack.c.l.b16 %v3809
    %v3836 = vunpack.c.l.b16 %v3810
    %v3837 = vunpack.c.l.b16 %v3811
    %v3838 = vunpack.c.l.b16 %v3812
    %v3839 = vunpack.c.l.b16 %v3813
    %v3840 = vunpack.c.l.b16 %v3814
    %v3841 = vunpack.c.l.b16 %v3815
    %v3842 = vunpack.c.l.b16 %v3816
    %v3843 = vpack.c.b16 %v3836, %v3835
    %v3844 = vpack.c.b16 %v3838, %v3837
    %v3845 = vpack.c.b16 %v3840, %v3839
    %v3846 = vpack.c.b16 %v3842, %v3841
    %v3853 = vunpack.c.l.b16 %v3817
    %v3854 = vunpack.c.l.b16 %v3818
    %v3855 = vpack.c.b16 %v3854, %v3853
    %v3865 = vunpack.c.l.b16 %v3819
    %v3866 = vunpack.c.l.b16 %v3820
    %v3867 = vunpack.c.l.b16 %v3821
    %v3868 = vunpack.c.l.b16 %v3822
    %v3869 = vunpack.c.l.b16 %v3823
    %v3870 = vunpack.c.l.b16 %v3824
    %v3871 = vunpack.c.l.b16 %v3825
    %v3872 = vunpack.c.l.b16 %v3826
    %v3873 = vpack.c.b16 %v3866, %v3865
    %v3874 = vpack.c.b16 %v3868, %v3867
    %v3875 = vpack.c.b16 %v3870, %v3869
    %v3876 = vpack.c.b16 %v3872, %v3871
    %v3881 = vld [vmem:[#allocation10] sm:$0xff]
    %v3882 = vld [vmem:[#allocation10 + $0x8] sm:$0xff]
    %v3883 = vld [vmem:[#allocation10 + $0x10] sm:$0xff]
    %v3884 = vld [vmem:[#allocation10 + $0x18] sm:$0xff]
    %v3885 = vld [vmem:[#allocation10 + $0x20] sm:$0xff]
    %v3886 = vld [vmem:[#allocation10 + $0x28] sm:$0xff]
    %v3887 = vld [vmem:[#allocation10 + $0x30] sm:$0xff]
    %v3888 = vld [vmem:[#allocation10 + $0x38] sm:$0xff]
    %v3889 = vld [vmem:[#allocation10 + $0x40] sm:$0xff]
    %v3890 = vld [vmem:[#allocation10 + $0x48] sm:$0xff]
    %v3891 = vld [vmem:[#allocation10 + $0x50] sm:$0xff]
    %v3892 = vld [vmem:[#allocation10 + $0x58] sm:$0xff]
    %v3893 = vld [vmem:[#allocation10 + $0x60] sm:$0xff]
    %v3894 = vld [vmem:[#allocation10 + $0x68] sm:$0xff]
    %v3895 = vld [vmem:[#allocation10 + $0x70] sm:$0xff]
    %v3896 = vld [vmem:[#allocation10 + $0x78] sm:$0xff]
    %v3897 = vld [vmem:[#allocation10 + $0x80] sm:$0xff]
    %v3898 = vld [vmem:[#allocation10 + $0x88] sm:$0xff]
    %v3899 = vld [vmem:[#allocation10 + $0x90] sm:$0xff]
    %v3900 = vld [vmem:[#allocation10 + $0x98] sm:$0xff]
    %v3901 = vld [vmem:[#allocation10 + $0xa0] sm:$0xff]
    %v3902 = vld [vmem:[#allocation10 + $0xa8] sm:$0xff]
    %v3903 = vld [vmem:[#allocation10 + $0xb0] sm:$0xff]
    %v3904 = vld [vmem:[#allocation10 + $0xb8] sm:$0xff]
    %v3905 = vld [vmem:[#allocation10 + $0xc0] sm:$0xff]
    %v3906 = vld [vmem:[#allocation10 + $0xc8] sm:$0xff]
    %v3907 = vld [vmem:[#allocation10 + $0xd0] sm:$0xff]
    %v3908 = vld [vmem:[#allocation10 + $0xd8] sm:$0xff]
    %v3909 = vld [vmem:[#allocation10 + $0xe0] sm:$0xff]
    %v3910 = vld [vmem:[#allocation10 + $0xe8] sm:$0xff]
    %v3911 = vld [vmem:[#allocation10 + $0xf0] sm:$0xff]
    %v3912 = vld [vmem:[#allocation10 + $0xf8] sm:$0xff]
    %v3913 = vld [vmem:[#allocation10 + $0x100] sm:$0xff]
    %v3914 = vld [vmem:[#allocation10 + $0x108] sm:$0xff]
    %v3915 = vld [vmem:[#allocation10 + $0x110] sm:$0xff]
    %v3916 = vld [vmem:[#allocation10 + $0x118] sm:$0xff]
    %v3917 = vld [vmem:[#allocation10 + $0x120] sm:$0xff]
    %v3918 = vld [vmem:[#allocation10 + $0x128] sm:$0xff]
    %v3919 = vld [vmem:[#allocation10 + $0x130] sm:$0xff]
    %v3920 = vld [vmem:[#allocation10 + $0x138] sm:$0xff]
    %v3921 = vld [vmem:[#allocation10 + $0x140] sm:$0xff]
    %v3922 = vld [vmem:[#allocation10 + $0x148] sm:$0xff]
    %v3923 = vld [vmem:[#allocation10 + $0x150] sm:$0xff]
    %v3924 = vld [vmem:[#allocation10 + $0x158] sm:$0xff]
    %v3925 = vld [vmem:[#allocation10 + $0x160] sm:$0xff]
    %v3926 = vld [vmem:[#allocation10 + $0x168] sm:$0xff]
    %v3927 = vld [vmem:[#allocation10 + $0x170] sm:$0xff]
    %v3928 = vld [vmem:[#allocation10 + $0x178] sm:$0xff]
    %v3929 = vld [vmem:[%s6] sm:$0x3]
    %v3931 = vperm.slane %v3929, 0
    %v3932 = vperm.slane %v3929, 1
    %v3983 = vunpack.c.l.b16 %v3881
    %v3984 = vunpack.c.h.b16 %v3881
    %v3985 = vunpack.c.l.b16 %v3882
    %v3986 = vunpack.c.h.b16 %v3882
    %v3987 = vunpack.c.l.b16 %v3883
    %v3988 = vunpack.c.h.b16 %v3883
    %v3989 = vunpack.c.l.b16 %v3884
    %v3990 = vunpack.c.h.b16 %v3884
    %v3991 = vunpack.c.l.b16 %v3885
    %v3992 = vunpack.c.h.b16 %v3885
    %v3993 = vunpack.c.l.b16 %v3886
    %v3994 = vunpack.c.h.b16 %v3886
    %v3995 = vunpack.c.l.b16 %v3887
    %v3996 = vunpack.c.h.b16 %v3887
    %v3997 = vunpack.c.l.b16 %v3888
    %v3998 = vunpack.c.h.b16 %v3888
    %v3999 = vunpack.c.l.b16 %v3889
    %v4000 = vunpack.c.h.b16 %v3889
    %v4001 = vunpack.c.l.b16 %v3890
    %v4002 = vunpack.c.h.b16 %v3890
    %v4003 = vunpack.c.l.b16 %v3891
    %v4004 = vunpack.c.h.b16 %v3891
    %v4005 = vunpack.c.l.b16 %v3892
    %v4006 = vunpack.c.h.b16 %v3892
    %v4007 = vunpack.c.l.b16 %v3893
    %v4008 = vunpack.c.h.b16 %v3893
    %v4009 = vunpack.c.l.b16 %v3894
    %v4010 = vunpack.c.h.b16 %v3894
    %v4011 = vunpack.c.l.b16 %v3895
    %v4012 = vunpack.c.h.b16 %v3895
    %v4013 = vunpack.c.l.b16 %v3896
    %v4014 = vunpack.c.h.b16 %v3896
    %v4015 = vunpack.c.l.b16 %v3897
    %v4016 = vunpack.c.h.b16 %v3897
    %v4017 = vunpack.c.l.b16 %v3898
    %v4018 = vunpack.c.h.b16 %v3898
    %v4019 = vunpack.c.l.b16 %v3899
    %v4020 = vunpack.c.h.b16 %v3899
    %v4021 = vunpack.c.l.b16 %v3900
    %v4022 = vunpack.c.h.b16 %v3900
    %v4023 = vunpack.c.l.b16 %v3901
    %v4024 = vunpack.c.h.b16 %v3901
    %v4025 = vunpack.c.l.b16 %v3902
    %v4026 = vunpack.c.h.b16 %v3902
    %v4027 = vunpack.c.l.b16 %v3903
    %v4028 = vunpack.c.h.b16 %v3903
    %v4029 = vunpack.c.l.b16 %v3904
    %v4030 = vunpack.c.h.b16 %v3904
    %v4031 = vunpack.c.l.b16 %v3905
    %v4032 = vunpack.c.h.b16 %v3905
    %v4033 = vunpack.c.l.b16 %v3906
    %v4034 = vunpack.c.h.b16 %v3906
    %v4035 = vunpack.c.l.b16 %v3907
    %v4036 = vunpack.c.h.b16 %v3907
    %v4037 = vunpack.c.l.b16 %v3908
    %v4038 = vunpack.c.h.b16 %v3908
    %v4039 = vunpack.c.l.b16 %v3909
    %v4040 = vunpack.c.h.b16 %v3909
    %v4041 = vunpack.c.l.b16 %v3910
    %v4042 = vunpack.c.h.b16 %v3910
    %v4043 = vunpack.c.l.b16 %v3911
    %v4044 = vunpack.c.h.b16 %v3911
    %v4045 = vunpack.c.l.b16 %v3912
    %v4046 = vunpack.c.h.b16 %v3912
    %v4047 = vunpack.c.l.b16 %v3913
    %v4048 = vunpack.c.h.b16 %v3913
    %v4049 = vunpack.c.l.b16 %v3914
    %v4050 = vunpack.c.h.b16 %v3914
    %v4051 = vunpack.c.l.b16 %v3915
    %v4052 = vunpack.c.h.b16 %v3915
    %v4053 = vunpack.c.l.b16 %v3916
    %v4054 = vunpack.c.h.b16 %v3916
    %v4055 = vunpack.c.l.b16 %v3917
    %v4056 = vunpack.c.h.b16 %v3917
    %v4057 = vunpack.c.l.b16 %v3918
    %v4058 = vunpack.c.h.b16 %v3918
    %v4059 = vunpack.c.l.b16 %v3919
    %v4060 = vunpack.c.h.b16 %v3919
    %v4061 = vunpack.c.l.b16 %v3920
    %v4062 = vunpack.c.h.b16 %v3920
    %v4063 = vunpack.c.l.b16 %v3921
    %v4064 = vunpack.c.h.b16 %v3921
    %v4065 = vunpack.c.l.b16 %v3922
    %v4066 = vunpack.c.h.b16 %v3922
    %v4067 = vunpack.c.l.b16 %v3923
    %v4068 = vunpack.c.h.b16 %v3923
    %v4069 = vunpack.c.l.b16 %v3924
    %v4070 = vunpack.c.h.b16 %v3924
    %v4071 = vunpack.c.l.b16 %v3925
    %v4072 = vunpack.c.h.b16 %v3925
    %v4073 = vunpack.c.l.b16 %v3926
    %v4074 = vunpack.c.h.b16 %v3926
    %v4075 = vunpack.c.l.b16 %v3927
    %v4076 = vunpack.c.h.b16 %v3927
    %v4077 = vunpack.c.l.b16 %v3928
    %v4078 = vunpack.c.h.b16 %v3928
    %v4079 = vpack.c.b16 %v3985, %v3983
    %v4080 = vpack.c.b16 %v3986, %v3984
    %v4081 = vpack.c.b16 %v3989, %v3987
    %v4082 = vpack.c.b16 %v3990, %v3988
    %v4083 = vpack.c.b16 %v3993, %v3991
    %v4084 = vpack.c.b16 %v3994, %v3992
    %v4085 = vpack.c.b16 %v3997, %v3995
    %v4086 = vpack.c.b16 %v3998, %v3996
    %v4087 = vpack.c.b16 %v4001, %v3999
    %v4088 = vpack.c.b16 %v4002, %v4000
    %v4089 = vpack.c.b16 %v4005, %v4003
    %v4090 = vpack.c.b16 %v4006, %v4004
    %v4091 = vpack.c.b16 %v4009, %v4007
    %v4092 = vpack.c.b16 %v4010, %v4008
    %v4093 = vpack.c.b16 %v4013, %v4011
    %v4094 = vpack.c.b16 %v4014, %v4012
    %v4095 = vpack.c.b16 %v4017, %v4015
    %v4096 = vpack.c.b16 %v4018, %v4016
    %v4097 = vpack.c.b16 %v4021, %v4019
    %v4098 = vpack.c.b16 %v4022, %v4020
    %v4099 = vpack.c.b16 %v4025, %v4023
    %v4100 = vpack.c.b16 %v4026, %v4024
    %v4101 = vpack.c.b16 %v4029, %v4027
    %v4102 = vpack.c.b16 %v4030, %v4028
    %v4103 = vpack.c.b16 %v4033, %v4031
    %v4104 = vpack.c.b16 %v4034, %v4032
    %v4105 = vpack.c.b16 %v4037, %v4035
    %v4106 = vpack.c.b16 %v4038, %v4036
    %v4107 = vpack.c.b16 %v4041, %v4039
    %v4108 = vpack.c.b16 %v4042, %v4040
    %v4109 = vpack.c.b16 %v4045, %v4043
    %v4110 = vpack.c.b16 %v4046, %v4044
    %v4111 = vpack.c.b16 %v4049, %v4047
    %v4112 = vpack.c.b16 %v4050, %v4048
    %v4113 = vpack.c.b16 %v4053, %v4051
    %v4114 = vpack.c.b16 %v4054, %v4052
    %v4115 = vpack.c.b16 %v4057, %v4055
    %v4116 = vpack.c.b16 %v4058, %v4056
    %v4117 = vpack.c.b16 %v4061, %v4059
    %v4118 = vpack.c.b16 %v4062, %v4060
    %v4119 = vpack.c.b16 %v4065, %v4063
    %v4120 = vpack.c.b16 %v4066, %v4064
    %v4121 = vpack.c.b16 %v4069, %v4067
    %v4122 = vpack.c.b16 %v4070, %v4068
    %v4123 = vpack.c.b16 %v4073, %v4071
    %v4124 = vpack.c.b16 %v4074, %v4072
    %v4125 = vpack.c.b16 %v4077, %v4075
    %v4126 = vpack.c.b16 %v4078, %v4076
    %4175 = vmatpush.bf16.msra.mxu0 %v4093
    %4176 = vmatpush.bf16.msra.mxu0 %v4091
    %4177 = vmatpush.bf16.msra.mxu0 %v4089
    %4178 = vmatpush.bf16.msra.mxu0 %v4087
    %4179 = vmatpush.bf16.msra.mxu0 %v4085
    %4180 = vmatpush.bf16.msra.mxu0 %v4083
    %4181 = vmatpush.bf16.msra.mxu0 %v4081
    %4182 = vmatpush.bf16.msra.mxu0 %v4079
    %4183 = vmatmul.bf16.gmra.mxu0 %v3843
    %v4184 = vpop.f32.mrf.mxu0
    %v4185 = vadd.f32 %v3931, %v4184
    %v4186 = vpop.f32.mrf.mxu0
    %v4187 = vadd.f32 %v3931, %v4186
    %4188 = vmatmul.bf16.gmra.mxu0 %v3844
    %v4189 = vpop.f32.mrf.mxu0
    %v4190 = vadd.f32 %v3931, %v4189
    %v4191 = vpop.f32.mrf.mxu0
    %v4192 = vadd.f32 %v3931, %v4191
    %4193 = vmatmul.bf16.gmra.mxu0 %v3845
    %v4194 = vpop.f32.mrf.mxu0
    %v4195 = vadd.f32 %v3931, %v4194
    %v4196 = vpop.f32.mrf.mxu0
    %v4197 = vadd.f32 %v3931, %v4196
    %4198 = vmatmul.bf16.gmra.mxu0 %v3846
    %v4199 = vpop.f32.mrf.mxu0
    %v4200 = vadd.f32 %v3931, %v4199
    %v4201 = vpop.f32.mrf.mxu0
    %v4202 = vadd.f32 %v3931, %v4201
    %4203 = vdwg.mxu0
    %4204 = vmatpush.bf16.msra.mxu0 %v4109
    %4205 = vmatpush.bf16.msra.mxu0 %v4107
    %4206 = vmatpush.bf16.msra.mxu0 %v4105
    %4207 = vmatpush.bf16.msra.mxu0 %v4103
    %4208 = vmatpush.bf16.msra.mxu0 %v4101
    %4209 = vmatpush.bf16.msra.mxu0 %v4099
    %4210 = vmatpush.bf16.msra.mxu0 %v4097
    %4211 = vmatpush.bf16.msra.mxu0 %v4095
    %4212 = vmatmul.bf16.gmra.mxu0 %v3844
    %v4213 = vpop.f32.mrf.mxu0
    %v4214 = vadd.f32 %v4185, %v4213
    %v4215 = vpop.f32.mrf.mxu0
    %v4216 = vadd.f32 %v4187, %v4215
    %4217 = vmatmul.bf16.gmra.mxu0 %v3845
    %v4218 = vpop.f32.mrf.mxu0
    %v4219 = vadd.f32 %v4190, %v4218
    %v4220 = vpop.f32.mrf.mxu0
    %v4221 = vadd.f32 %v4192, %v4220
    %4222 = vmatmul.bf16.gmra.mxu0 %v3846
    %v4223 = vpop.f32.mrf.mxu0
    %v4224 = vadd.f32 %v4195, %v4223
    %v4225 = vpop.f32.mrf.mxu0
    %v4226 = vadd.f32 %v4197, %v4225
    %4227 = vmatmul.bf16.gmra.mxu0 %v3855
    %v4228 = vpop.f32.mrf.mxu0
    %v4229 = vadd.f32 %v4200, %v4228
    %v4230 = vpop.f32.mrf.mxu0
    %v4231 = vadd.f32 %v4202, %v4230
    %4232 = vdwg.mxu0
    %4233 = vmatpush.bf16.msra.mxu0 %v4125
    %4234 = vmatpush.bf16.msra.mxu0 %v4123
    %4235 = vmatpush.bf16.msra.mxu0 %v4121
    %4236 = vmatpush.bf16.msra.mxu0 %v4119
    %4237 = vmatpush.bf16.msra.mxu0 %v4117
    %4238 = vmatpush.bf16.msra.mxu0 %v4115
    %4239 = vmatpush.bf16.msra.mxu0 %v4113
    %4240 = vmatpush.bf16.msra.mxu0 %v4111
    %4241 = vmatmul.bf16.gmra.mxu0 %v3873
    %v4242 = vpop.f32.mrf.mxu0
    %v4243 = vadd.f32 %v4214, %v4242
    %v4244 = vpop.f32.mrf.mxu0
    %v4245 = vadd.f32 %v4216, %v4244
    %4246 = vmatmul.bf16.gmra.mxu0 %v3874
    %v4247 = vpop.f32.mrf.mxu0
    %v4248 = vadd.f32 %v4219, %v4247
    %v4249 = vpop.f32.mrf.mxu0
    %v4250 = vadd.f32 %v4221, %v4249
    %4251 = vmatmul.bf16.gmra.mxu0 %v3875
    %v4252 = vpop.f32.mrf.mxu0
    %v4253 = vadd.f32 %v4224, %v4252
    %v4254 = vpop.f32.mrf.mxu0
    %v4255 = vadd.f32 %v4226, %v4254
    %4256 = vmatmul.bf16.gmra.mxu0 %v3876
    %v4257 = vpop.f32.mrf.mxu0
    %v4258 = vadd.f32 %v4229, %v4257
    %v4259 = vpop.f32.mrf.mxu0
    %v4260 = vadd.f32 %v4231, %v4259
    %4261 = vdwg.mxu0
    %4262 = vmatpush.bf16.msra.mxu0 %v4094
    %4263 = vmatpush.bf16.msra.mxu0 %v4092
    %4264 = vmatpush.bf16.msra.mxu0 %v4090
    %4265 = vmatpush.bf16.msra.mxu0 %v4088
    %4266 = vmatpush.bf16.msra.mxu0 %v4086
    %4267 = vmatpush.bf16.msra.mxu0 %v4084
    %4268 = vmatpush.bf16.msra.mxu0 %v4082
    %4269 = vmatpush.bf16.msra.mxu0 %v4080
    %4270 = vmatmul.bf16.gmra.mxu0 %v3843
    %v4271 = vpop.f32.mrf.mxu0
    %v4272 = vadd.f32 %v3932, %v4271
    %v4273 = vpop.f32.mrf.mxu0
    %v4274 = vadd.f32 %v3932, %v4273
    %4275 = vmatmul.bf16.gmra.mxu0 %v3844
    %v4276 = vpop.f32.mrf.mxu0
    %v4277 = vadd.f32 %v3932, %v4276
    %v4278 = vpop.f32.mrf.mxu0
    %v4279 = vadd.f32 %v3932, %v4278
    %4280 = vmatmul.bf16.gmra.mxu0 %v3845
    %v4281 = vpop.f32.mrf.mxu0
    %v4282 = vadd.f32 %v3932, %v4281
    %v4283 = vpop.f32.mrf.mxu0
    %v4284 = vadd.f32 %v3932, %v4283
    %4285 = vmatmul.bf16.gmra.mxu0 %v3846
    %v4286 = vpop.f32.mrf.mxu0
    %v4287 = vadd.f32 %v3932, %v4286
    %v4288 = vpop.f32.mrf.mxu0
    %v4289 = vadd.f32 %v3932, %v4288
    %4290 = vdwg.mxu0
    %4291 = vmatpush.bf16.msra.mxu0 %v4110
    %4292 = vmatpush.bf16.msra.mxu0 %v4108
    %4293 = vmatpush.bf16.msra.mxu0 %v4106
    %4294 = vmatpush.bf16.msra.mxu0 %v4104
    %4295 = vmatpush.bf16.msra.mxu0 %v4102
    %4296 = vmatpush.bf16.msra.mxu0 %v4100
    %4297 = vmatpush.bf16.msra.mxu0 %v4098
    %4298 = vmatpush.bf16.msra.mxu0 %v4096
    %4299 = vmatmul.bf16.gmra.mxu0 %v3844
    %v4300 = vpop.f32.mrf.mxu0
    %v4301 = vadd.f32 %v4272, %v4300
    %v4302 = vpop.f32.mrf.mxu0
    %v4303 = vadd.f32 %v4274, %v4302
    %4304 = vmatmul.bf16.gmra.mxu0 %v3845
    %v4305 = vpop.f32.mrf.mxu0
    %v4306 = vadd.f32 %v4277, %v4305
    %v4307 = vpop.f32.mrf.mxu0
    %v4308 = vadd.f32 %v4279, %v4307
    %4309 = vmatmul.bf16.gmra.mxu0 %v3846
    %v4310 = vpop.f32.mrf.mxu0
    %v4311 = vadd.f32 %v4282, %v4310
    %v4312 = vpop.f32.mrf.mxu0
    %v4313 = vadd.f32 %v4284, %v4312
    %4314 = vmatmul.bf16.gmra.mxu0 %v3855
    %v4315 = vpop.f32.mrf.mxu0
    %v4316 = vadd.f32 %v4287, %v4315
    %v4317 = vpop.f32.mrf.mxu0
    %v4318 = vadd.f32 %v4289, %v4317
    %4319 = vdwg.mxu0
    %4320 = vmatpush.bf16.msra.mxu0 %v4126
    %4321 = vmatpush.bf16.msra.mxu0 %v4124
    %4322 = vmatpush.bf16.msra.mxu0 %v4122
    %4323 = vmatpush.bf16.msra.mxu0 %v4120
    %4324 = vmatpush.bf16.msra.mxu0 %v4118
    %4325 = vmatpush.bf16.msra.mxu0 %v4116
    %4326 = vmatpush.bf16.msra.mxu0 %v4114
    %4327 = vmatpush.bf16.msra.mxu0 %v4112
    %4328 = vmatmul.bf16.gmra.mxu0 %v3873
    %v4329 = vpop.f32.mrf.mxu0
    %v4330 = vadd.f32 %v4301, %v4329
    %v4331 = vpop.f32.mrf.mxu0
    %v4332 = vadd.f32 %v4303, %v4331
    %4333 = vmatmul.bf16.gmra.mxu0 %v3874
    %v4334 = vpop.f32.mrf.mxu0
    %v4335 = vadd.f32 %v4306, %v4334
    %v4336 = vpop.f32.mrf.mxu0
    %v4337 = vadd.f32 %v4308, %v4336
    %4338 = vmatmul.bf16.gmra.mxu0 %v3875
    %v4339 = vpop.f32.mrf.mxu0
    %v4340 = vadd.f32 %v4311, %v4339
    %v4341 = vpop.f32.mrf.mxu0
    %v4342 = vadd.f32 %v4313, %v4341
    %4343 = vmatmul.bf16.gmra.mxu0 %v3876
    %v4344 = vpop.f32.mrf.mxu0
    %v4345 = vadd.f32 %v4316, %v4344
    %v4346 = vpop.f32.mrf.mxu0
    %v4347 = vadd.f32 %v4318, %v4346
    %4348 = vdwg.mxu0
    %v4349 = vmax.f32 %v4243, 0.0
    %v4350 = vmax.f32 %v4330, 0.0
    %v4351 = vmax.f32 %v4245, 0.0
    %v4352 = vmax.f32 %v4332, 0.0
    %v4353 = vmax.f32 %v4248, 0.0
    %v4354 = vmax.f32 %v4335, 0.0
    %v4355 = vmax.f32 %v4250, 0.0
    %v4356 = vmax.f32 %v4337, 0.0
    %v4357 = vmax.f32 %v4253, 0.0
    %v4358 = vmax.f32 %v4340, 0.0
    %v4359 = vmax.f32 %v4255, 0.0
    %v4360 = vmax.f32 %v4342, 0.0
    %v4361 = vmax.f32 %v4258, 0.0
    %v4362 = vmax.f32 %v4345, 0.0
    %v4363 = vmax.f32 %v4260, 0.0
    %v4364 = vmax.f32 %v4347, 0.0
    %v4365 = vmax.f32 %v4349, %v4353
    %v4366 = vmax.f32 %v4350, %v4354
    %v4367 = vmax.f32 %v4351, %v4355
    %v4368 = vmax.f32 %v4352, %v4356
    %v4369 = vmax.f32 %v4357, %v4361
    %v4370 = vmax.f32 %v4358, %v4362
    %v4371 = vmax.f32 %v4359, %v4363
    %v4372 = vmax.f32 %v4360, %v4364
    %v4373 = vmax.f32 %v4365, %v4366
    %v4374 = vmax.f32 %v4367, %v4368
    %v4375 = vmax.f32 %v4369, %v4370
    %v4376 = vmax.f32 %v4371, %v4372
    %4377 = vst [vmem:[#allocation11] sm:$0xff] %v4373
    %4378 = vst [vmem:[#allocation11 + $0x8] sm:$0xff] %v4374
    %4379 = vst [vmem:[#allocation11 + $0x10] sm:$0xff] %v4375
    %4380 = vst [vmem:[#allocation11 + $0x18] sm:$0xff] %v4376
    // Predicated region
    $region42: #{tpu_custom_call.1} parent=1 // pred_check
      _
    $region43: #{tpu_custom_call.1} parent=1 // pred_check_branch
      %4382 = sbr.rel (0) target = $region45
    $region44: #{tpu_custom_call.1} parent=1 // pred_region
      %4384 = vsyncadd [#allocation7], 0
      %s4385 = sshll.u32 [#allocation11], 4
      %s4386 = int_to_ptr.vmem [resolvable:$true] %s4385
      %s4387 = sshll.u32 %s7, 4
      %s4388 = int_to_ptr.hbm [resolvable:$true] %s4387
      %4393 = dma.vmem_to_hbm [thread:$0]  %s4386, 512, %s4388, [#allocation7], 128, 128, 8
    $region45: #{tpu_custom_call.1} parent=1 // pred_fallthru
      _
    // Predicated region
    $region46: #{tpu_custom_call.1} parent=1 // pred_check
      _
    $region47: #{tpu_custom_call.1} parent=1 // pred_check_branch
      %4395 = sbr.rel (0) target = $region49
    $region48: #{tpu_custom_call.1} parent=1 // pred_region
      %4397 = dma.done [#allocation7], 512
    $region49: #{tpu_custom_call.1} parent=1 // pred_fallthru
      _
    %4398 = vsyncpa [#allocation6], 1
    %4399 = vsyncpa [#allocation9], 1
    %4400 = vsyncpa [#allocation7], 1

</llo_original>
